<compile_context>
chip_gen: v6e
topology: v6e:2x2x1
jax: 0.10.0
libtpu: 0.0.40
codegen_flags: <defaults>
</compile_context>

<pallas_src>
import jax
import jax.numpy as jnp
from jax import lax
from jax.experimental import pallas as pl
from jax.experimental.pallas import tpu as pltpu


def _round_up(a, b):
    return -(-a // b) * b


def _make_quantize_kernel(n_valid, tile_n, mxu_dtype):
    def kernel(x_ref, e_ref, et_ref, nbias_ref, idx_ref, q_ref, ind_ref, dsum_ref):
        # x_ref:     (tile_n, D)    input tile (original dtype)
        # e_ref:     (D, n_codes)   codebook, mxu dtype, resident
        # et_ref:    (n_codes, D)   codebook transpose, mxu dtype, resident
        # nbias_ref: (1, n_codes)   -0.5*||e_j||^2 (f32, -inf on padded cols), resident
        # idx_ref:   (2, n_codes)   [256*(j>>8) ; j&255] as mxu dtype (exact), resident
        # q_ref:     (tile_n, D)    quantized rows (mxu dtype, lossless)
        # ind_ref:   (1, 1, tile_n) nearest-code indices, lane-dense
        # dsum_ref:  (1, 1, D)      per-tile masked sum((q - x)^2), reduced over rows
        x = x_ref[...]
        n_codes = e_ref.shape[1]

        # score_j = x.e_j - 0.5*||e_j||^2 ; argmax(score) == argmin(dist)
        # (the per-row ||x||^2 term cannot change the argmin and is dropped).
        xe = jnp.dot(x.astype(mxu_dtype), e_ref[...],
                     preferred_element_type=jnp.float32)            # (tile_n, n_codes)
        score = xe + nbias_ref[...]

        # argmax with first-occurrence tie-breaking (max -> where -> min), f32.
        m = jnp.max(score, axis=1, keepdims=True)
        lane = lax.broadcasted_iota(jnp.int32, score.shape, 1)
        ind_col = jnp.min(jnp.where(score == m, lane, n_codes),
                          axis=1, keepdims=True)                    # (tile_n, 1) i32

        # exact one-hot in mxu dtype; feeds both MXU matmuls below.
        onehot = (lane == ind_col).astype(mxu_dtype)                # (tile_n, n_codes)

        # embedding gather as one-hot @ embed^T (MXU, bf16 one-hot is exact).
        q = jnp.dot(onehot, et_ref[...],
                    preferred_element_type=jnp.float32)             # (tile_n, D)
        q_ref[...] = q.astype(q_ref.dtype)

        # lane-dense indices without a sublane->lane relayout: a tiny NT matmul
        # (2, n_codes) x onehot^T -> (2, tile_n); hi/lo rows are exact integers
        # in mxu dtype, so the f32 result is the exact index. NaN rows give an
        # all-zero one-hot -> index 0 and q = 0 (never out of range).
        hl = lax.dot_general(idx_ref[...], onehot, (((1,), (1,)), ((), ())),
                             preferred_element_type=jnp.float32)    # (2, tile_n)
        ind_row = jnp.sum(hl, axis=0, keepdims=True).astype(jnp.int32)
        ind_ref[...] = ind_row.reshape(ind_ref.shape)

        # masked per-tile partial SSE (exclude padded tail rows), reduced over
        # rows only -> lane-dense (1, D) slab.
        row = pl.program_id(0) * tile_n + lax.broadcasted_iota(
            jnp.int32, (tile_n, 1), 0)
        err = q - x.astype(jnp.float32)
        err2 = jnp.where(row < n_valid, err * err, 0.0)
        dsum_ref[...] = jnp.sum(err2, axis=0, keepdims=True).reshape(dsum_ref.shape)

    return kernel


def quantize_forward(x, embed, *, tile_n=None, mxu_dtype=jnp.bfloat16):
    """Forward pass of Quantize (eval / main branch).

    x:     (..., dim) channels-last activations.
    embed: (dim, n_embed) codebook.
    Returns (quantize_st, diff, embed_ind) like the PyTorch module.
    """
    *lead, D = x.shape
    assert embed.shape[0] == D
    n_embed = embed.shape[1]
    flat = x.reshape(-1, D)
    N = flat.shape[0]

    # ---- one-time codebook prep (never repeated per tile) ----
    # Codewords are rounded to the MXU dtype once; ||e||^2 is computed from the
    # rounded codebook so the argmin is self-consistent with the rows actually
    # returned.  n_embed is padded to a lane multiple (128); padded columns get
    # bias = -inf so they can never win the argmax.
    n_codes = _round_up(n_embed, 128)
    e_mxu = embed.astype(mxu_dtype)
    if n_codes != n_embed:
        e_mxu = jnp.pad(e_mxu, ((0, 0), (0, n_codes - n_embed)))
    et_mxu = e_mxu.T                                                  # (n_codes, D)
    e_f32 = e_mxu.astype(jnp.float32)
    nbias = -0.5 * jnp.sum(e_f32 * e_f32, axis=0, keepdims=True)      # (1, n_codes) f32
    if n_codes != n_embed:
        nbias = jnp.where(jnp.arange(n_codes)[None, :] < n_embed, nbias, -jnp.inf)
    j = jnp.arange(n_codes, dtype=jnp.int32)
    idx_rows = jnp.stack([j - (j % 256), j % 256]).astype(mxu_dtype)  # (2, n_codes), exact

    # ---- per-generation tile size & VMEM budget ----
    try:
        vmem_cap = int(pltpu.get_tpu_info().vmem_capacity_bytes)
    except Exception:
        vmem_cap = 64 * 1024 * 1024            # conservative: v7x per-TensorCore VMEM
    if tile_n is None:
        tile_n = 2048 if vmem_cap >= 100 * 1024 * 1024 else 1024      # v5e/v6e vs v7x

    x_bytes = jnp.dtype(x.dtype).itemsize
    e_bytes = jnp.dtype(mxu_dtype).itemsize

    def vmem_need(tn):
        per_tile = 2 * tn * D * (x_bytes + e_bytes)        # x + q double buffers
        per_tile += 2 * 8 * tn * 4                         # lane-dense ind blocks
        per_tile += 2 * 8 * max(D, 128) * 4                # dsum blocks
        resident = 2 * (2 * D * n_codes * e_bytes          # e + e^T (worst case x2 bufs)
                        + 8 * n_codes * 4                  # bias (f32)
                        + 16 * n_codes * e_bytes)          # index hi/lo rows
        temps = tn * n_codes * (4 + 4 + e_bytes) + 3 * tn * D * 4
        return per_tile + resident + temps

    # Shrink for small N, stay a multiple of 128 (full vregs / MXU M dim), and
    # prefer >= 2 tiles so dual-TensorCore parts can shard the "parallel" axis.
    one_tile = _round_up(max(N, 1), 128)
    tile_n = _round_up(min(int(tile_n), one_tile), 128)
    if one_tile > 128 and -(-N // tile_n) < 2:
        tile_n = _round_up(-(-N // 2), 128)
    while tile_n > 128 and vmem_need(tile_n) > 0.6 * vmem_cap:
        tile_n = _round_up(tile_n // 2, 128)

    num_tiles = -(-N // tile_n)
    n_pad = num_tiles * tile_n
    if n_pad != N:
        flat = jnp.pad(flat, ((0, n_pad - N), (0, 0)))

    vmem_limit = int(min(max(1.5 * vmem_need(tile_n), 32 * 1024 * 1024),
                         0.9 * vmem_cap))

    kernel = _make_quantize_kernel(N, tile_n, mxu_dtype)
    out_shape = (
        jax.ShapeDtypeStruct((n_pad, D), mxu_dtype),               # q (bf16 rows, lossless)
        jax.ShapeDtypeStruct((num_tiles, 1, tile_n), jnp.int32),   # lane-dense indices
        jax.ShapeDtypeStruct((num_tiles, 1, D), jnp.float32),      # per-tile SSE partials
    )
    out_specs = (
        pl.BlockSpec((tile_n, D), lambda i: (i, 0)),
        pl.BlockSpec((1, 1, tile_n), lambda i: (i, 0, 0)),
        pl.BlockSpec((1, 1, D), lambda i: (i, 0, 0)),
    )

    def build(single_buffer_residents):
        def res_spec(shape):
            nd = len(shape)
            imap = lambda i: (0,) * nd
            if single_buffer_residents:
                return pl.BlockSpec(shape, imap, pipeline_mode=pl.Buffered(1))
            return pl.BlockSpec(shape, imap)

        in_specs = [
            pl.BlockSpec((tile_n, D), lambda i: (i, 0)),   # x tile (pipelined)
            res_spec((D, n_codes)),                        # codebook (resident)
            res_spec((n_codes, D)),                        # codebook^T (resident)
            res_spec((1, n_codes)),                        # -0.5*||e||^2 (resident)
            res_spec((2, n_codes)),                        # index hi/lo rows (resident)
        ]
        return pl.pallas_call(
            kernel,
            grid=(num_tiles,),
            out_shape=out_shape,
            in_specs=in_specs,
            out_specs=out_specs,
            compiler_params=pltpu.CompilerParams(
                dimension_semantics=("parallel",),
                vmem_limit_bytes=vmem_limit,
            ),
        )

    args = (flat, e_mxu, et_mxu, nbias, idx_rows)
    try:
        q, ind, dsum = build(True)(*args)
    except Exception:
        # pl.Buffered(1) unavailable on this jax version: fall back to default
        # (double-buffered) resident specs; the constant index_map still avoids
        # any re-DMA of the codebook, it just costs one extra VMEM copy each.
        q, ind, dsum = build(False)(*args)

    quantize = q[:N].astype(x.dtype).reshape(*lead, D)
    embed_ind = ind.reshape(-1)[:N].reshape(*lead)
    diff = dsum.sum() / (N * D)                 # mean over the true N rows
    # straight-through estimator: quantize = input + (quantize - input).detach()
    quantize_st = x + lax.stop_gradient(quantize - x)
    return quantize_st, diff, embed_ind


if __name__ == "__main__":
    key = jax.random.PRNGKey(0)
    k_x, k_e = jax.random.split(key)

    # Small module-consistent shapes.  N = 2*10*9 = 180 rows -> two 128-row
    # tiles (exercises the >=2-tile megacore path and the masked tail);
    # n_embed = 200 exercises the pad-to-128-lanes codebook path.
    B, H, W, D, N_EMBED = 2, 10, 9, 32, 200
    x = jax.random.normal(k_x, (B, H, W, D), dtype=jnp.float32)
    embed = jax.random.normal(k_e, (D, N_EMBED), dtype=jnp.float32)  # torch.randn(dim, n_embed)

    quantize, diff, embed_ind = quantize_forward(x, embed)
    jax.block_until_ready((quantize, diff, embed_ind))

    # Pure-JAX reference mirroring the kernel numerics (bf16 codewords, f32
    # accumulation, bias from the bf16-rounded codebook); equals the PyTorch
    # module up to the documented bf16 codebook rounding.
    flat = x.reshape(-1, D)
    e_bf = embed.astype(jnp.bfloat16)
    e_f = e_bf.astype(jnp.float32)
    score = (jnp.dot(flat.astype(jnp.bfloat16), e_bf,
                     preferred_element_type=jnp.float32)
             - 0.5 * jnp.sum(e_f * e_f, axis=0, keepdims=True))
    ref_ind = jnp.argmax(score, axis=1).astype(jnp.int32)
    ref_q = e_f.T[ref_ind].reshape(B, H, W, D)
    ref_diff = jnp.mean((ref_q - x) ** 2)

    assert embed_ind.shape == (B, H, W)
    assert quantize.shape == x.shape and quantize.dtype == x.dtype
    assert jnp.array_equal(embed_ind.reshape(-1), ref_ind), "indices mismatch"
    assert jnp.allclose(quantize, ref_q, atol=1e-5), "quantize mismatch"
    assert jnp.allclose(diff, ref_diff, atol=1e-6, rtol=1e-4), "diff mismatch"

    print("KERNEL_OK")
</pallas_src>

<mosaic_0001>
module attributes {stable_mosaic.version = 11 : i64} {
  func.func @kernel(%arg0: i32, %arg1: memref<128x32xf32, #tpu.memory_space<vmem>>, %arg2: memref<32x256xbf16, #tpu.memory_space<vmem>>, %arg3: memref<256x32xbf16, #tpu.memory_space<vmem>>, %arg4: memref<1x256xf32, #tpu.memory_space<vmem>>, %arg5: memref<2x256xbf16, #tpu.memory_space<vmem>>, %arg6: memref<128x32xbf16, #tpu.memory_space<vmem>>, %arg7: memref<1x1x128xi32, #tpu.memory_space<vmem>>, %arg8: memref<1x1x32xf32, #tpu.memory_space<vmem>>) attributes {dimension_semantics = [#tpu.dimension_semantics<parallel>], iteration_bounds = array<i64: 2>, scalar_prefetch = 0 : i64, scratch_operands = 0 : i64, tpu.core_type = #tpu.core_type<tc>, window_params = [{transform_indices = @transform_0, window_bounds = array<i64: 128, 32>}, {pipeline_mode = #tpu.pipeline_mode<synchronous>, transform_indices = @transform_1, window_bounds = array<i64: 32, 256>}, {pipeline_mode = #tpu.pipeline_mode<synchronous>, transform_indices = @transform_2, window_bounds = array<i64: 256, 32>}, {pipeline_mode = #tpu.pipeline_mode<synchronous>, transform_indices = @transform_3, window_bounds = array<i64: 1, 256>}, {pipeline_mode = #tpu.pipeline_mode<synchronous>, transform_indices = @transform_4, window_bounds = array<i64: 2, 256>}, {transform_indices = @transform_5, window_bounds = array<i64: 128, 32>}, {transform_indices = @transform_6, window_bounds = array<i64: 1, 1, 128>}, {transform_indices = @transform_7, window_bounds = array<i64: 1, 1, 32>}]} {
    %c0 = arith.constant 0 : index
    %c0_0 = arith.constant 0 : index
    %0 = vector.load %arg1[%c0, %c0_0] : memref<128x32xf32, #tpu.memory_space<vmem>>, vector<128x32xf32>
    %1 = arith.truncf %0 : vector<128x32xf32> to vector<128x32xbf16>
    %c0_1 = arith.constant 0 : index
    %c0_2 = arith.constant 0 : index
    %2 = vector.load %arg2[%c0_1, %c0_2] : memref<32x256xbf16, #tpu.memory_space<vmem>>, vector<32x256xbf16>
    %cst = arith.constant dense<0.000000e+00> : vector<128x256xf32>
    %3 = tpu.matmul %1, %2, %cst {dimension_numbers = #tpu.dot_dimension_numbers<[1], [0], [0], [1], [0, 0, 1, 1], [], []>} : vector<128x32xbf16>, vector<32x256xbf16>, vector<128x256xf32> -> vector<128x256xf32>
    %c0_3 = arith.constant 0 : index
    %c0_4 = arith.constant 0 : index
    %4 = vector.load %arg4[%c0_3, %c0_4] : memref<1x256xf32, #tpu.memory_space<vmem>>, vector<1x256xf32>
    %5 = vector.broadcast %4 : vector<1x256xf32> to vector<128x256xf32>
    %6 = arith.addf %3, %5 : vector<128x256xf32>
    %cst_5 = arith.constant dense<0xFF800000> : vector<128xf32>
    %7 = vector.multi_reduction <maximumf>, %6, %cst_5 [1] : vector<128x256xf32> to vector<128xf32>
    %8 = vector.shape_cast %7 : vector<128xf32> to vector<128x1xf32>
    %9 = tpu.iota {dimensions = array<i32: 1>} : vector<128x256xi32>
    %10 = vector.broadcast %8 : vector<128x1xf32> to vector<128x256xf32>
    %11 = arith.cmpf oeq, %6, %10 : vector<128x256xf32>
    %c256_i32 = arith.constant 256 : i32
    %12 = vector.broadcast %c256_i32 : i32 to vector<128x256xi32>
    %13 = arith.select %11, %9, %12 : vector<128x256xi1>, vector<128x256xi32>
    %cst_6 = arith.constant dense<2147483647> : vector<128xi32>
    %14 = vector.multi_reduction <minsi>, %13, %cst_6 [1] : vector<128x256xi32> to vector<128xi32>
    %15 = vector.shape_cast %14 : vector<128xi32> to vector<128x1xi32>
    %16 = vector.broadcast %15 : vector<128x1xi32> to vector<128x256xi32>
    %17 = arith.cmpi eq, %9, %16 : vector<128x256xi32>
    %18 = arith.extui %17 : vector<128x256xi1> to vector<128x256xi32>
    %19 = arith.sitofp %18 : vector<128x256xi32> to vector<128x256xf32>
    %20 = arith.truncf %19 : vector<128x256xf32> to vector<128x256xbf16>
    %c0_7 = arith.constant 0 : index
    %c0_8 = arith.constant 0 : index
    %21 = vector.load %arg3[%c0_7, %c0_8] : memref<256x32xbf16, #tpu.memory_space<vmem>>, vector<256x32xbf16>
    %cst_9 = arith.constant dense<0.000000e+00> : vector<128x32xf32>
    %22 = tpu.matmul %20, %21, %cst_9 {dimension_numbers = #tpu.dot_dimension_numbers<[1], [0], [0], [1], [0, 0, 1, 1], [], []>} : vector<128x256xbf16>, vector<256x32xbf16>, vector<128x32xf32> -> vector<128x32xf32>
    %23 = arith.truncf %22 : vector<128x32xf32> to vector<128x32xbf16>
    %c0_10 = arith.constant 0 : index
    %c0_11 = arith.constant 0 : index
    %24 = vector.load %arg6[%c0_10, %c0_11] : memref<128x32xbf16, #tpu.memory_space<vmem>>, vector<128x32xbf16>
    tpu.vector_store %arg6[%c0_10, %c0_11], %23 {strides = array<i32>} : memref<128x32xbf16, #tpu.memory_space<vmem>>, vector<128x32xbf16>,
    %c0_12 = arith.constant 0 : index
    %c0_13 = arith.constant 0 : index
    %25 = vector.load %arg5[%c0_12, %c0_13] : memref<2x256xbf16, #tpu.memory_space<vmem>>, vector<2x256xbf16>
    %cst_14 = arith.constant dense<0.000000e+00> : vector<2x128xf32>
    %26 = tpu.matmul %25, %20, %cst_14 {dimension_numbers = #tpu.dot_dimension_numbers<[1], [1], [0], [0], [0, 0, 1, 0], [], []>} : vector<2x256xbf16>, vector<128x256xbf16>, vector<2x128xf32> -> vector<2x128xf32>
    %cst_15 = arith.constant dense<0.000000e+00> : vector<128xf32>
    %27 = vector.multi_reduction <add>, %26, %cst_15 [0] : vector<2x128xf32> to vector<128xf32>
    %28 = vector.shape_cast %27 : vector<128xf32> to vector<1x128xf32>
    %29 = arith.fptosi %28 : vector<1x128xf32> to vector<1x128xi32>
    %30 = vector.shape_cast %29 : vector<1x128xi32> to vector<1x1x128xi32>
    %c0_16 = arith.constant 0 : index
    %c0_17 = arith.constant 0 : index
    %c0_18 = arith.constant 0 : index
    %31 = vector.load %arg7[%c0_16, %c0_17, %c0_18] : memref<1x1x128xi32, #tpu.memory_space<vmem>>, vector<1x1x128xi32>
    tpu.vector_store %arg7[%c0_16, %c0_17, %c0_18], %30 {strides = array<i32>} : memref<1x1x128xi32, #tpu.memory_space<vmem>>, vector<1x1x128xi32>,
    %c128_i32 = arith.constant 128 : i32
    %32 = arith.muli %arg0, %c128_i32 : i32
    %33 = tpu.iota {dimensions = array<i32: 0>} : vector<128x1xi32>
    %34 = vector.broadcast %32 : i32 to vector<128x1xi32>
    %35 = arith.addi %34, %33 : vector<128x1xi32>
    %36 = arith.subf %22, %0 : vector<128x32xf32>
    %c180_i32 = arith.constant 180 : i32
    %37 = vector.broadcast %c180_i32 : i32 to vector<128x1xi32>
    %38 = arith.cmpi slt, %35, %37 : vector<128x1xi32>
    %39 = arith.mulf %36, %36 : vector<128x32xf32>
    %cst_19 = arith.constant 0.000000e+00 : f32
    %40 = vector.shape_cast %38 : vector<128x1xi1> to vector<128x1xi1>
    %41 = vector.broadcast %40 : vector<128x1xi1> to vector<128x32xi1>
    %42 = vector.broadcast %cst_19 : f32 to vector<128x32xf32>
    %43 = arith.select %41, %39, %42 : vector<128x32xi1>, vector<128x32xf32>
    %cst_20 = arith.constant dense<0.000000e+00> : vector<32xf32>
    %44 = vector.multi_reduction <add>, %43, %cst_20 [0] : vector<128x32xf32> to vector<32xf32>
    %45 = vector.shape_cast %44 : vector<32xf32> to vector<1x32xf32>
    %46 = vector.shape_cast %45 : vector<1x32xf32> to vector<1x1x32xf32>
    %c0_21 = arith.constant 0 : index
    %c0_22 = arith.constant 0 : index
    %c0_23 = arith.constant 0 : index
    %47 = vector.load %arg8[%c0_21, %c0_22, %c0_23] : memref<1x1x32xf32, #tpu.memory_space<vmem>>, vector<1x1x32xf32>
    tpu.vector_store %arg8[%c0_21, %c0_22, %c0_23], %46 {strides = array<i32>} : memref<1x1x32xf32, #tpu.memory_space<vmem>>, vector<1x1x32xf32>,
    return
  }
  func.func @transform_0(%arg0: i32) -> (i32, i32) {
    %c0_i32 = arith.constant 0 : i32
    %c0_i32_0 = arith.constant 0 : i32
    return %arg0, %c0_i32 : i32, i32
  }
  func.func @transform_1(%arg0: i32) -> (i32, i32) {
    %c0_i32 = arith.constant 0 : i32
    %c0_i32_0 = arith.constant 0 : i32
    %c0_i32_1 = arith.constant 0 : i32
    return %c0_i32, %c0_i32_0 : i32, i32
  }
  func.func @transform_2(%arg0: i32) -> (i32, i32) {
    %c0_i32 = arith.constant 0 : i32
    %c0_i32_0 = arith.constant 0 : i32
    %c0_i32_1 = arith.constant 0 : i32
    return %c0_i32, %c0_i32_0 : i32, i32
  }
  func.func @transform_3(%arg0: i32) -> (i32, i32) {
    %c0_i32 = arith.constant 0 : i32
    %c0_i32_0 = arith.constant 0 : i32
    %c0_i32_1 = arith.constant 0 : i32
    return %c0_i32, %c0_i32_0 : i32, i32
  }
  func.func @transform_4(%arg0: i32) -> (i32, i32) {
    %c0_i32 = arith.constant 0 : i32
    %c0_i32_0 = arith.constant 0 : i32
    %c0_i32_1 = arith.constant 0 : i32
    return %c0_i32, %c0_i32_0 : i32, i32
  }
  func.func @transform_5(%arg0: i32) -> (i32, i32) {
    %c0_i32 = arith.constant 0 : i32
    %c0_i32_0 = arith.constant 0 : i32
    return %arg0, %c0_i32 : i32, i32
  }
  func.func @transform_6(%arg0: i32) -> (i32, i32, i32) {
    %c0_i32 = arith.constant 0 : i32
    %c0_i32_0 = arith.constant 0 : i32
    %c0_i32_1 = arith.constant 0 : i32
    return %arg0, %c0_i32, %c0_i32_0 : i32, i32, i32
  }
  func.func @transform_7(%arg0: i32) -> (i32, i32, i32) {
    %c0_i32 = arith.constant 0 : i32
    %c0_i32_0 = arith.constant 0 : i32
    %c0_i32_1 = arith.constant 0 : i32
    return %arg0, %c0_i32, %c0_i32_0 : i32, i32, i32
  }
}

module attributes {stable_mosaic.version = 11 : i64} {
  func.func @kernel(%arg0: i32, %arg1: memref<128x32xf32, #tpu.memory_space<vmem>>, %arg2: memref<32x256xbf16, #tpu.memory_space<vmem>>, %arg3: memref<256x32xbf16, #tpu.memory_space<vmem>>, %arg4: memref<1x256xf32, #tpu.memory_space<vmem>>, %arg5: memref<2x256xbf16, #tpu.memory_space<vmem>>, %arg6: memref<128x32xbf16, #tpu.memory_space<vmem>>, %arg7: memref<1x1x128xi32, #tpu.memory_space<vmem>>, %arg8: memref<1x1x32xf32, #tpu.memory_space<vmem>>) attributes {dimension_semantics = [#tpu.dimension_semantics<parallel>], iteration_bounds = array<i64: 2>, scalar_prefetch = 0 : i64, scratch_operands = 0 : i64, tpu.core_type = #tpu.core_type<tc>, window_params = [{transform_indices = @transform_0, window_bounds = array<i64: 128, 32>}, {pipeline_mode = #tpu.pipeline_mode<synchronous>, transform_indices = @transform_1, window_bounds = array<i64: 32, 256>}, {pipeline_mode = #tpu.pipeline_mode<synchronous>, transform_indices = @transform_2, window_bounds = array<i64: 256, 32>}, {pipeline_mode = #tpu.pipeline_mode<synchronous>, transform_indices = @transform_3, window_bounds = array<i64: 1, 256>}, {pipeline_mode = #tpu.pipeline_mode<synchronous>, transform_indices = @transform_4, window_bounds = array<i64: 2, 256>}, {transform_indices = @transform_5, window_bounds = array<i64: 128, 32>}, {transform_indices = @transform_6, window_bounds = array<i64: 1, 1, 128>}, {transform_indices = @transform_7, window_bounds = array<i64: 1, 1, 32>}]} {
    %c0 = arith.constant 0 : index
    %c0_0 = arith.constant 0 : index
    %0 = vector.load %arg1[%c0, %c0_0] : memref<128x32xf32, #tpu.memory_space<vmem>>, vector<128x32xf32>
    %1 = arith.truncf %0 : vector<128x32xf32> to vector<128x32xbf16>
    %c0_1 = arith.constant 0 : index
    %c0_2 = arith.constant 0 : index
    %2 = vector.load %arg2[%c0_1, %c0_2] : memref<32x256xbf16, #tpu.memory_space<vmem>>, vector<32x256xbf16>
    %cst = arith.constant dense<0.000000e+00> : vector<128x256xf32>
    %3 = tpu.matmul %1, %2, %cst {dimension_numbers = #tpu.dot_dimension_numbers<[1], [0], [0], [1], [0, 0, 1, 1], [], []>} : vector<128x32xbf16>, vector<32x256xbf16>, vector<128x256xf32> -> vector<128x256xf32>
    %c0_3 = arith.constant 0 : index
    %c0_4 = arith.constant 0 : index
    %4 = vector.load %arg4[%c0_3, %c0_4] : memref<1x256xf32, #tpu.memory_space<vmem>>, vector<1x256xf32>
    %5 = vector.broadcast %4 : vector<1x256xf32> to vector<128x256xf32>
    %6 = arith.addf %3, %5 : vector<128x256xf32>
    %cst_5 = arith.constant dense<0xFF800000> : vector<128xf32>
    %7 = vector.multi_reduction <maximumf>, %6, %cst_5 [1] : vector<128x256xf32> to vector<128xf32>
    %8 = vector.shape_cast %7 : vector<128xf32> to vector<128x1xf32>
    %9 = tpu.iota {dimensions = array<i32: 1>} : vector<128x256xi32>
    %10 = vector.broadcast %8 : vector<128x1xf32> to vector<128x256xf32>
    %11 = arith.cmpf oeq, %6, %10 : vector<128x256xf32>
    %c256_i32 = arith.constant 256 : i32
    %12 = vector.broadcast %c256_i32 : i32 to vector<128x256xi32>
    %13 = arith.select %11, %9, %12 : vector<128x256xi1>, vector<128x256xi32>
    %cst_6 = arith.constant dense<2147483647> : vector<128xi32>
    %14 = vector.multi_reduction <minsi>, %13, %cst_6 [1] : vector<128x256xi32> to vector<128xi32>
    %15 = vector.shape_cast %14 : vector<128xi32> to vector<128x1xi32>
    %16 = vector.broadcast %15 : vector<128x1xi32> to vector<128x256xi32>
    %17 = arith.cmpi eq, %9, %16 : vector<128x256xi32>
    %18 = arith.extui %17 : vector<128x256xi1> to vector<128x256xi32>
    %19 = arith.sitofp %18 : vector<128x256xi32> to vector<128x256xf32>
    %20 = arith.truncf %19 : vector<128x256xf32> to vector<128x256xbf16>
    %c0_7 = arith.constant 0 : index
    %c0_8 = arith.constant 0 : index
    %21 = vector.load %arg3[%c0_7, %c0_8] : memref<256x32xbf16, #tpu.memory_space<vmem>>, vector<256x32xbf16>
    %cst_9 = arith.constant dense<0.000000e+00> : vector<128x32xf32>
    %22 = tpu.matmul %20, %21, %cst_9 {dimension_numbers = #tpu.dot_dimension_numbers<[1], [0], [0], [1], [0, 0, 1, 1], [], []>} : vector<128x256xbf16>, vector<256x32xbf16>, vector<128x32xf32> -> vector<128x32xf32>
    %23 = arith.truncf %22 : vector<128x32xf32> to vector<128x32xbf16>
    %c0_10 = arith.constant 0 : index
    %c0_11 = arith.constant 0 : index
    %24 = vector.load %arg6[%c0_10, %c0_11] : memref<128x32xbf16, #tpu.memory_space<vmem>>, vector<128x32xbf16>
    tpu.vector_store %arg6[%c0_10, %c0_11], %23 {strides = array<i32>} : memref<128x32xbf16, #tpu.memory_space<vmem>>, vector<128x32xbf16>,
    %c0_12 = arith.constant 0 : index
    %c0_13 = arith.constant 0 : index
    %25 = vector.load %arg5[%c0_12, %c0_13] : memref<2x256xbf16, #tpu.memory_space<vmem>>, vector<2x256xbf16>
    %cst_14 = arith.constant dense<0.000000e+00> : vector<2x128xf32>
    %26 = tpu.matmul %25, %20, %cst_14 {dimension_numbers = #tpu.dot_dimension_numbers<[1], [1], [0], [0], [0, 0, 1, 0], [], []>} : vector<2x256xbf16>, vector<128x256xbf16>, vector<2x128xf32> -> vector<2x128xf32>
    %cst_15 = arith.constant dense<0.000000e+00> : vector<128xf32>
    %27 = vector.multi_reduction <add>, %26, %cst_15 [0] : vector<2x128xf32> to vector<128xf32>
    %28 = vector.shape_cast %27 : vector<128xf32> to vector<1x128xf32>
    %29 = arith.fptosi %28 : vector<1x128xf32> to vector<1x128xi32>
    %30 = vector.shape_cast %29 : vector<1x128xi32> to vector<1x1x128xi32>
    %c0_16 = arith.constant 0 : index
    %c0_17 = arith.constant 0 : index
    %c0_18 = arith.constant 0 : index
    %31 = vector.load %arg7[%c0_16, %c0_17, %c0_18] : memref<1x1x128xi32, #tpu.memory_space<vmem>>, vector<1x1x128xi32>
    tpu.vector_store %arg7[%c0_16, %c0_17, %c0_18], %30 {strides = array<i32>} : memref<1x1x128xi32, #tpu.memory_space<vmem>>, vector<1x1x128xi32>,
    %c128_i32 = arith.constant 128 : i32
    %32 = arith.muli %arg0, %c128_i32 : i32
    %33 = tpu.iota {dimensions = array<i32: 0>} : vector<128x1xi32>
    %34 = vector.broadcast %32 : i32 to vector<128x1xi32>
    %35 = arith.addi %34, %33 : vector<128x1xi32>
    %36 = arith.subf %22, %0 : vector<128x32xf32>
    %c180_i32 = arith.constant 180 : i32
    %37 = vector.broadcast %c180_i32 : i32 to vector<128x1xi32>
    %38 = arith.cmpi slt, %35, %37 : vector<128x1xi32>
    %39 = arith.mulf %36, %36 : vector<128x32xf32>
    %cst_19 = arith.constant 0.000000e+00 : f32
    %40 = vector.shape_cast %38 : vector<128x1xi1> to vector<128x1xi1>
    %41 = vector.broadcast %40 : vector<128x1xi1> to vector<128x32xi1>
    %42 = vector.broadcast %cst_19 : f32 to vector<128x32xf32>
    %43 = arith.select %41, %39, %42 : vector<128x32xi1>, vector<128x32xf32>
    %cst_20 = arith.constant dense<0.000000e+00> : vector<32xf32>
    %44 = vector.multi_reduction <add>, %43, %cst_20 [0] : vector<128x32xf32> to vector<32xf32>
    %45 = vector.shape_cast %44 : vector<32xf32> to vector<1x32xf32>
    %46 = vector.shape_cast %45 : vector<1x32xf32> to vector<1x1x32xf32>
    %c0_21 = arith.constant 0 : index
    %c0_22 = arith.constant 0 : index
    %c0_23 = arith.constant 0 : index
    %47 = vector.load %arg8[%c0_21, %c0_22, %c0_23] : memref<1x1x32xf32, #tpu.memory_space<vmem>>, vector<1x1x32xf32>
    tpu.vector_store %arg8[%c0_21, %c0_22, %c0_23], %46 {strides = array<i32>} : memref<1x1x32xf32, #tpu.memory_space<vmem>>, vector<1x1x32xf32>,
    return
  }
  func.func @transform_0(%arg0: i32) -> (i32, i32) {
    %c0_i32 = arith.constant 0 : i32
    %c0_i32_0 = arith.constant 0 : i32
    return %arg0, %c0_i32 : i32, i32
  }
  func.func @transform_1(%arg0: i32) -> (i32, i32) {
    %c0_i32 = arith.constant 0 : i32
    %c0_i32_0 = arith.constant 0 : i32
    %c0_i32_1 = arith.constant 0 : i32
    return %c0_i32, %c0_i32_0 : i32, i32
  }
  func.func @transform_2(%arg0: i32) -> (i32, i32) {
    %c0_i32 = arith.constant 0 : i32
    %c0_i32_0 = arith.constant 0 : i32
    %c0_i32_1 = arith.constant 0 : i32
    return %c0_i32, %c0_i32_0 : i32, i32
  }
  func.func @transform_3(%arg0: i32) -> (i32, i32) {
    %c0_i32 = arith.constant 0 : i32
    %c0_i32_0 = arith.constant 0 : i32
    %c0_i32_1 = arith.constant 0 : i32
    return %c0_i32, %c0_i32_0 : i32, i32
  }
  func.func @transform_4(%arg0: i32) -> (i32, i32) {
    %c0_i32 = arith.constant 0 : i32
    %c0_i32_0 = arith.constant 0 : i32
    %c0_i32_1 = arith.constant 0 : i32
    return %c0_i32, %c0_i32_0 : i32, i32
  }
  func.func @transform_5(%arg0: i32) -> (i32, i32) {
    %c0_i32 = arith.constant 0 : i32
    %c0_i32_0 = arith.constant 0 : i32
    return %arg0, %c0_i32 : i32, i32
  }
  func.func @transform_6(%arg0: i32) -> (i32, i32, i32) {
    %c0_i32 = arith.constant 0 : i32
    %c0_i32_0 = arith.constant 0 : i32
    %c0_i32_1 = arith.constant 0 : i32
    return %arg0, %c0_i32, %c0_i32_0 : i32, i32, i32
  }
  func.func @transform_7(%arg0: i32) -> (i32, i32, i32) {
    %c0_i32 = arith.constant 0 : i32
    %c0_i32_0 = arith.constant 0 : i32
    %c0_i32_1 = arith.constant 0 : i32
    return %arg0, %c0_i32, %c0_i32_0 : i32, i32, i32
  }
}

</mosaic_0001>

<llo_original>
// kernel: tpu_custom_call.1
$region0: #{tpu_custom_call.1}
  #allocation0 [shape = 'u32[]', space=smem, size = 0x4, offset = 0x4, fixed_abs, tag = 'smem constant byte address 0x4 - core index']
  #allocation1 [shape = 'u32[144,128]{1,0:T(1,128)}', space=vmem, size = 0x12000, scoped, tag = 'internal scratch']
  %s0 = inlined_call_operand.vmem [shape: f32[256,32], index: 0, kind: input, shape index: {}]
  %s1 = inlined_call_operand.vmem [shape: bf16[32,256], index: 1, kind: input, shape index: {}]
  %s2 = inlined_call_operand.vmem [shape: bf16[256,32], index: 2, kind: input, shape index: {}]
  %s3 = inlined_call_operand.vmem [shape: f32[1,256], index: 3, kind: input, shape index: {}]
  %s4 = inlined_call_operand.vmem [shape: bf16[2,256], index: 4, kind: input, shape index: {}]
  %s5 = inlined_call_operand.vmem [shape: bf16[256,32], index: 5, kind: output, shape index: {0}]
  %s6 = inlined_call_operand.hbm [shape: s32[2,1,128], index: 6, kind: output, shape index: {1}]
  %s7 = inlined_call_operand.hbm [shape: f32[2,1,32], index: 7, kind: output, shape index: {2}]
  %8 = xla_tuple %s5, %s6, %s7
  %s9 = sld [smem:[#allocation0]]
  $region69: #{tpu_custom_call.1} parent=0
    _
  %s11 = ssub.s32 1, %s9
  %s12 = scalar_select 0, %s11, %s9
  $region1: #{tpu_custom_call.1} parent=0
    #allocation2 [shape = 'u8[1024]{0}', space=vmem, size = 0x400, scoped, tag = 'output window, operand 1']
    #allocation3 [shape = 's32[2]{0}', space=sflag, size = 0x8, scoped, tag = 'scoped memory for tpu_custom_call.1']
    #allocation4 [shape = 'u8[1024]{0}', space=vmem, size = 0x400, scoped, tag = 'output window, operand 2']
    #allocation5 [shape = 's32[2]{0}', space=sflag, size = 0x8, scoped, tag = 'scoped memory for tpu_custom_call.1']
    %13 = vsyncpa [#allocation3], 0
    %s14 = scalar_lea.sflag [#allocation3], 1
    %15 = vsyncpa %s14, 0
    %16 = vsyncpa [#allocation5], 0
    %s17 = scalar_lea.sflag [#allocation5], 1
    %18 = vsyncpa %s17, 0
    loop: start=0, step=1, limit=4
    $region2: #{tpu_custom_call.1} parent=1 // loop_pre_header
      _
    $region3: #{tpu_custom_call.1} parent=1 // loop_header
      %s20 = sphi 0, %s24
      %p21 = scmp.ge.s32.totalorder %s20, 4
      %s30 = sphi 0, %s32
      %s33 = sphi 0, %s30
      %s34 = sphi 0, %s33
      %s50 = sphi 0, %s34
      %s54 = sphi 0, %s54
      %s56 = sphi 0, %s54
      %s57 = sphi 0, %s56
      %s71 = sphi 0, %s57
      %s75 = sphi 0, %s75
      %s77 = sphi 0, %s75
      %s78 = sphi 0, %s77
      %s92 = sphi 0, %s78
      %s96 = sphi 0, %s96
      %s98 = sphi 0, %s96
      %s99 = sphi 0, %s98
      %s113 = sphi 0, %s99
      %s117 = sphi 0, %s117
      %s119 = sphi 0, %s117
      %s120 = sphi 0, %s119
      %s134 = sphi 0, %s120
      %s140 = sphi 0, %s142
      %s143 = sphi 0, %s140
      %s144 = sphi 0, %s143
      %s160 = sphi 0, %s144
      %s166 = sphi 0, %s168
      %s169 = sphi 0, %s166
      %s170 = sphi 0, %s169
      %s186 = sphi 0, %s170
      %s192 = sphi 0, %s194
      %s195 = sphi 0, %s192
      %s196 = sphi 0, %s195
      %s212 = sphi 0, %s196
    $region4: #{tpu_custom_call.1} parent=1 // loop_header_branch
      %23 = sbr.rel (%p21) target = $region8
    $region5: #{tpu_custom_call.1} parent=1 // loop_body
      %s25 = ssub.s32 %s20, 1
      %s26 = ssub.s32 %s20, 2
      %s27 = sadd.s32 %s20, 1
      %s28 = ssub.s32 %s20, %s27
      %p29 = scmp.eq.s32.totalorder %s28, 0
      %s31 = sadd.s32 %s30, 1
      %s32 = scalar_select %p29, %s30, %s31
      %p35 = pneg %p29
      %p36 = scmp.eq.s32.totalorder %s20, 1
      %p37 = por %p35, %p36
      %p38 = scmp.ne.s32.totalorder %s30, %s33
      %p39 = scmp.eq.s32.totalorder %s20, 0
      %p40 = por %p38, %p39
      %p41 = scmp.ne.s32.totalorder %s30, %s33
      %p42 = scmp.eq.s32.totalorder %s25, 1
      %p43 = por %p41, %p42
      %p44 = scmp.ne.s32.totalorder %s33, %s34
      %p45 = scmp.eq.s32.totalorder %s25, 0
      %p46 = por %p44, %p45
      %p47 = scmp.ne.s32.totalorder %s33, %s34
      %p48 = scmp.eq.s32.totalorder %s26, 1
      %p49 = por %p47, %p48
      %p51 = scmp.ne.s32.totalorder %s34, %s50
      %p52 = scmp.eq.s32.totalorder %s26, 0
      %p53 = por %p51, %p52
      %s55 = sadd.s32 %s54, 1
      %p58 = scmp.eq.s32.totalorder %s20, 1
      %p59 = scmp.ne.s32.totalorder %s54, %s56
      %p60 = scmp.eq.s32.totalorder %s20, 0
      %p61 = por %p59, %p60
      %p62 = scmp.ne.s32.totalorder %s54, %s56
      %p63 = scmp.eq.s32.totalorder %s25, 1
      %p64 = por %p62, %p63
      %p65 = scmp.ne.s32.totalorder %s56, %s57
      %p66 = scmp.eq.s32.totalorder %s25, 0
      %p67 = por %p65, %p66
      %p68 = scmp.ne.s32.totalorder %s56, %s57
      %p69 = scmp.eq.s32.totalorder %s26, 1
      %p70 = por %p68, %p69
      %p72 = scmp.ne.s32.totalorder %s57, %s71
      %p73 = scmp.eq.s32.totalorder %s26, 0
      %p74 = por %p72, %p73
      %s76 = sadd.s32 %s75, 1
      %p79 = scmp.eq.s32.totalorder %s20, 1
      %p80 = scmp.ne.s32.totalorder %s75, %s77
      %p81 = scmp.eq.s32.totalorder %s20, 0
      %p82 = por %p80, %p81
      %p83 = scmp.ne.s32.totalorder %s75, %s77
      %p84 = scmp.eq.s32.totalorder %s25, 1
      %p85 = por %p83, %p84
      %p86 = scmp.ne.s32.totalorder %s77, %s78
      %p87 = scmp.eq.s32.totalorder %s25, 0
      %p88 = por %p86, %p87
      %p89 = scmp.ne.s32.totalorder %s77, %s78
      %p90 = scmp.eq.s32.totalorder %s26, 1
      %p91 = por %p89, %p90
      %p93 = scmp.ne.s32.totalorder %s78, %s92
      %p94 = scmp.eq.s32.totalorder %s26, 0
      %p95 = por %p93, %p94
      %s97 = sadd.s32 %s96, 1
      %p100 = scmp.eq.s32.totalorder %s20, 1
      %p101 = scmp.ne.s32.totalorder %s96, %s98
      %p102 = scmp.eq.s32.totalorder %s20, 0
      %p103 = por %p101, %p102
      %p104 = scmp.ne.s32.totalorder %s96, %s98
      %p105 = scmp.eq.s32.totalorder %s25, 1
      %p106 = por %p104, %p105
      %p107 = scmp.ne.s32.totalorder %s98, %s99
      %p108 = scmp.eq.s32.totalorder %s25, 0
      %p109 = por %p107, %p108
      %p110 = scmp.ne.s32.totalorder %s98, %s99
      %p111 = scmp.eq.s32.totalorder %s26, 1
      %p112 = por %p110, %p111
      %p114 = scmp.ne.s32.totalorder %s99, %s113
      %p115 = scmp.eq.s32.totalorder %s26, 0
      %p116 = por %p114, %p115
      %s118 = sadd.s32 %s117, 1
      %p121 = scmp.eq.s32.totalorder %s20, 1
      %p122 = scmp.ne.s32.totalorder %s117, %s119
      %p123 = scmp.eq.s32.totalorder %s20, 0
      %p124 = por %p122, %p123
      %p125 = scmp.ne.s32.totalorder %s117, %s119
      %p126 = scmp.eq.s32.totalorder %s25, 1
      %p127 = por %p125, %p126
      %p128 = scmp.ne.s32.totalorder %s119, %s120
      %p129 = scmp.eq.s32.totalorder %s25, 0
      %p130 = por %p128, %p129
      %p131 = scmp.ne.s32.totalorder %s119, %s120
      %p132 = scmp.eq.s32.totalorder %s26, 1
      %p133 = por %p131, %p132
      %p135 = scmp.ne.s32.totalorder %s120, %s134
      %p136 = scmp.eq.s32.totalorder %s26, 0
      %p137 = por %p135, %p136
      %s138 = ssub.s32 %s20, %s27
      %p139 = scmp.eq.s32.totalorder %s138, 0
      %s141 = sadd.s32 %s140, 1
      %s142 = scalar_select %p139, %s140, %s141
      %p145 = pneg %p139
      %p146 = scmp.eq.s32.totalorder %s20, 1
      %p147 = por %p145, %p146
      %p148 = scmp.ne.s32.totalorder %s140, %s143
      %p149 = scmp.eq.s32.totalorder %s20, 0
      %p150 = por %p148, %p149
      %p151 = scmp.ne.s32.totalorder %s140, %s143
      %p152 = scmp.eq.s32.totalorder %s25, 1
      %p153 = por %p151, %p152
      %p154 = scmp.ne.s32.totalorder %s143, %s144
      %p155 = scmp.eq.s32.totalorder %s25, 0
      %p156 = por %p154, %p155
      %p157 = scmp.ne.s32.totalorder %s143, %s144
      %p158 = scmp.eq.s32.totalorder %s26, 1
      %p159 = por %p157, %p158
      %p161 = scmp.ne.s32.totalorder %s144, %s160
      %p162 = scmp.eq.s32.totalorder %s26, 0
      %p163 = por %p161, %p162
      %s164 = ssub.s32 %s20, %s27
      %p165 = scmp.eq.s32.totalorder %s164, 0
      %s167 = sadd.s32 %s166, 1
      %s168 = scalar_select %p165, %s166, %s167
      %p171 = pneg %p165
      %p172 = scmp.eq.s32.totalorder %s20, 1
      %p173 = por %p171, %p172
      %p174 = scmp.ne.s32.totalorder %s166, %s169
      %p175 = scmp.eq.s32.totalorder %s20, 0
      %p176 = por %p174, %p175
      %p177 = scmp.ne.s32.totalorder %s166, %s169
      %p178 = scmp.eq.s32.totalorder %s25, 1
      %p179 = por %p177, %p178
      %p180 = scmp.ne.s32.totalorder %s169, %s170
      %p181 = scmp.eq.s32.totalorder %s25, 0
      %p182 = por %p180, %p181
      %p183 = scmp.ne.s32.totalorder %s169, %s170
      %p184 = scmp.eq.s32.totalorder %s26, 1
      %p185 = por %p183, %p184
      %p187 = scmp.ne.s32.totalorder %s170, %s186
      %p188 = scmp.eq.s32.totalorder %s26, 0
      %p189 = por %p187, %p188
      %s190 = ssub.s32 %s20, %s27
      %p191 = scmp.eq.s32.totalorder %s190, 0
      %s193 = sadd.s32 %s192, 1
      %s194 = scalar_select %p191, %s192, %s193
      %p197 = pneg %p191
      %p198 = scmp.eq.s32.totalorder %s20, 1
      %p199 = por %p197, %p198
      %p200 = scmp.ne.s32.totalorder %s192, %s195
      %p201 = scmp.eq.s32.totalorder %s20, 0
      %p202 = por %p200, %p201
      %p203 = scmp.ne.s32.totalorder %s192, %s195
      %p204 = scmp.eq.s32.totalorder %s25, 1
      %p205 = por %p203, %p204
      %p206 = scmp.ne.s32.totalorder %s195, %s196
      %p207 = scmp.eq.s32.totalorder %s25, 0
      %p208 = por %p206, %p207
      %p209 = scmp.ne.s32.totalorder %s195, %s196
      %p210 = scmp.eq.s32.totalorder %s26, 1
      %p211 = por %p209, %p210
      %p213 = scmp.ne.s32.totalorder %s196, %s212
      %p214 = scmp.eq.s32.totalorder %s26, 0
      %p215 = por %p213, %p214
      %p216 = scmp.le.s32.totalorder 1, %s20
      %p217 = scmp.lt.s32.totalorder %s20, 3
      %p218 = pnand %p216, %p217
      %p219 = pneg %p218
      // Predicated region
      $region9: #{tpu_custom_call.1} parent=5 // pred_check
        _
      $region10: #{tpu_custom_call.1} parent=5 // pred_check_branch
        %221 = sbr.rel (%p218) target = $region12
      $region11: #{tpu_custom_call.1} parent=5 // pred_region
        %s222 = ssub.s32 %s20, 1
        // Predicated region
        $region13: #{tpu_custom_call.1} parent=11 // pred_check
          %p223 = pneg %p67
        $region14: #{tpu_custom_call.1} parent=11 // pred_check_branch
          %225 = sbr.rel (%p223) target = $region16
        $region15: #{tpu_custom_call.1} parent=11 // pred_region
          _
        $region16: #{tpu_custom_call.1} parent=11 // pred_fallthru
          _
        // Predicated region
        $region17: #{tpu_custom_call.1} parent=11 // pred_check
          %p226 = pneg %p88
        $region18: #{tpu_custom_call.1} parent=11 // pred_check_branch
          %228 = sbr.rel (%p226) target = $region20
        $region19: #{tpu_custom_call.1} parent=11 // pred_region
          _
        $region20: #{tpu_custom_call.1} parent=11 // pred_fallthru
          _
        // Predicated region
        $region21: #{tpu_custom_call.1} parent=11 // pred_check
          %p229 = pneg %p109
        $region22: #{tpu_custom_call.1} parent=11 // pred_check_branch
          %231 = sbr.rel (%p229) target = $region24
        $region23: #{tpu_custom_call.1} parent=11 // pred_region
          _
        $region24: #{tpu_custom_call.1} parent=11 // pred_fallthru
          _
        // Predicated region
        $region25: #{tpu_custom_call.1} parent=11 // pred_check
          %p232 = pneg %p130
        $region26: #{tpu_custom_call.1} parent=11 // pred_check_branch
          %234 = sbr.rel (%p232) target = $region28
        $region27: #{tpu_custom_call.1} parent=11 // pred_region
          _
        $region28: #{tpu_custom_call.1} parent=11 // pred_fallthru
          _
      $region12: #{tpu_custom_call.1} parent=5 // pred_fallthru
        _
      %p235 = scmp.lt.s32.totalorder %s20, 2
      // Predicated region
      $region29: #{tpu_custom_call.1} parent=5 // pred_check
        %p236 = pneg %p235
      $region30: #{tpu_custom_call.1} parent=5 // pred_check_branch
        %238 = sbr.rel (%p236) target = $region32
      $region31: #{tpu_custom_call.1} parent=5 // pred_region
        // Predicated region
        $region33: #{tpu_custom_call.1} parent=31 // pred_check
          %p239 = pneg %p40
        $region34: #{tpu_custom_call.1} parent=31 // pred_check_branch
          %241 = sbr.rel (%p239) target = $region36
        $region35: #{tpu_custom_call.1} parent=31 // pred_region
          %s242 = smul.u32 16, %s20
          %p243 = scmp.lt.s32.totalorder %s242, 31
          %s244 = scalar_select %p243, %s242, 31
          %s245 = smul.addr %s244, 8
          %s246 = scalar_lea.vmem %s0, %s245
          %s247 = smul.u32 16, %s20
        $region36: #{tpu_custom_call.1} parent=31 // pred_fallthru
          _
      $region32: #{tpu_custom_call.1} parent=5 // pred_fallthru
        _
      %p248 = scmp.le.s32.totalorder 1, %s20
      %p249 = scmp.lt.s32.totalorder %s20, 3
      %p250 = pnand %p248, %p249
      %p251 = pneg %p250
      // Predicated region
      $region37: #{tpu_custom_call.1} parent=5 // pred_check
        _
      $region38: #{tpu_custom_call.1} parent=5 // pred_check_branch
        %253 = sbr.rel (%p250) target = $region40
      $region39: #{tpu_custom_call.1} parent=5 // pred_region
        %s254 = ssub.s32 %s20, 1
        %s255 = smul.u32 16, %s25
        %p256 = scmp.lt.s32.totalorder %s255, 31
        %s257 = scalar_select %p256, %s255, 31
        %s258 = smul.addr %s257, 8
        %s259 = scalar_lea.vmem %s0, %s258
        %p260 = pneg %p46
        %p261 = pneg %p43
        %p262 = pneg %p67
        %p263 = pneg %p64
        %p264 = pneg %p88
        %p265 = pneg %p85
        %p266 = pneg %p109
        %p267 = pneg %p106
        %p268 = pneg %p130
        %p269 = pneg %p127
        %p270 = pneg %p156
        %p271 = pneg %p153
        %s272 = smul.u32 16, %s25
        %p273 = scmp.lt.s32.totalorder %s272, 31
        %s274 = scalar_select %p273, %s272, 31
        %s275 = smul.addr %s274, 4
        %s276 = scalar_lea.vmem %s5, %s275
        %p277 = pneg %p182
        %p278 = pneg %p179
        %s279 = sand.u32 %s169, 1
        %s280 = scalar_lea.sflag [#allocation3], %s279
        %s281 = sand.u32 %s169, 1
        %s282 = scalar_lea.vmem [#allocation2], %s281
        %p283 = pneg %p208
        %p284 = pneg %p205
        %s285 = sand.u32 %s195, 1
        %s286 = scalar_lea.sflag [#allocation5], %s285
        %s287 = sand.u32 %s195, 1
        %s288 = scalar_lea.vmem [#allocation4], %s287
        %s289 = smul.u32 16, %s25
        %p290 = scmp.lt.s32.totalorder %s289, 31
        %s291 = scalar_select %p290, %s289, 31
        %s292 = smul.addr %s291, 8
        %s293 = scalar_lea.vmem %s0, %s292
        %s294 = smul.u32 16, %s25
        %s295 = smul.u32 16, %s25
        %p296 = scmp.lt.s32.totalorder %s295, 31
        %s297 = scalar_select %p296, %s295, 31
        %s298 = smul.addr %s297, 4
        %s299 = scalar_lea.vmem %s5, %s298
        %s300 = smul.u32 16, %s25
        %v302 = vld [vmem:[%s293] sm:$0xff]
        %v303 = vld [vmem:[%s293 + $0x8] sm:$0xff]
        %v304 = vld [vmem:[%s293 + $0x10] sm:$0xff]
        %v305 = vld [vmem:[%s293 + $0x18] sm:$0xff]
        %v306 = vld [vmem:[%s293 + $0x20] sm:$0xff]
        %v307 = vld [vmem:[%s293 + $0x28] sm:$0xff]
        %v308 = vld [vmem:[%s293 + $0x30] sm:$0xff]
        %v309 = vld [vmem:[%s293 + $0x38] sm:$0xff]
        %v310 = vld [vmem:[%s293 + $0x40] sm:$0xff]
        %v311 = vld [vmem:[%s293 + $0x48] sm:$0xff]
        %v312 = vld [vmem:[%s293 + $0x50] sm:$0xff]
        %v313 = vld [vmem:[%s293 + $0x58] sm:$0xff]
        %v314 = vld [vmem:[%s293 + $0x60] sm:$0xff]
        %v315 = vld [vmem:[%s293 + $0x68] sm:$0xff]
        %v316 = vld [vmem:[%s293 + $0x70] sm:$0xff]
        %v317 = vld [vmem:[%s293 + $0x78] sm:$0xff]
        %v318 = vpack.c.bf16 %v303, %v302
        %v319 = vpack.c.bf16 %v305, %v304
        %v320 = vpack.c.bf16 %v307, %v306
        %v321 = vpack.c.bf16 %v309, %v308
        %v322 = vpack.c.bf16 %v311, %v310
        %v323 = vpack.c.bf16 %v313, %v312
        %v324 = vpack.c.bf16 %v315, %v314
        %v325 = vpack.c.bf16 %v317, %v316
        %v326 = vld [vmem:[%s1] sm:$0xff]
        %v327 = vld [vmem:[%s1 + $0x8] sm:$0xff]
        %v328 = vld [vmem:[%s1 + $0x10] sm:$0xff]
        %v329 = vld [vmem:[%s1 + $0x18] sm:$0xff]
        %v330 = vld [vmem:[%s3] sm:$0x3]
        %v332 = vlaneseq
        %v333 = vshrl.u32 %v332, 7
        %v334 = vsub.s32 0, %v333
        %v335 = vrot.slane %v330, %v334
        %v336 = vlaneseq
        %v337 = vshrl.u32 %v336, 7
        %v338 = vsub.s32 1, %v337
        %v339 = vrot.slane %v330, %v338
        %v346 = vunpack.c.l.b16 %v326
        %v347 = vunpack.c.h.b16 %v326
        %v348 = vunpack.c.l.b16 %v327
        %v349 = vunpack.c.h.b16 %v327
        %v350 = vunpack.c.l.b16 %v328
        %v351 = vunpack.c.h.b16 %v328
        %v352 = vunpack.c.l.b16 %v329
        %v353 = vunpack.c.h.b16 %v329
        %v354 = vpack.c.b16 %v348, %v346
        %v355 = vpack.c.b16 %v349, %v347
        %v356 = vpack.c.b16 %v352, %v350
        %v357 = vpack.c.b16 %v353, %v351
        %vm362 = vcmask 261120
        %v364 = vsel %vm362, %v318, 0
        %v367 = vsel %vm362, %v319, 0
        %v370 = vsel %vm362, %v320, 0
        %v373 = vsel %vm362, %v321, 0
        %v376 = vsel %vm362, %v322, 0
        %v379 = vsel %vm362, %v323, 0
        %v382 = vsel %vm362, %v324, 0
        %v385 = vsel %vm362, %v325, 0
        %387 = vmatprep.subr.bf16.mxu0 0
        %388 = vmatpush1.bf16.msra.mxu0 0
        %389 = vmatprep.subr.bf16.mxu0 0
        %390 = vmatpush1.bf16.msra.mxu0 0
        %391 = vmatprep.subr.bf16.mxu0 0
        %392 = vmatpush1.bf16.msra.mxu0 0
        %393 = vmatprep.subr.bf16.mxu0 0
        %394 = vmatpush1.bf16.msra.mxu0 0
        %395 = vmatprep.subr.bf16.mxu0 0
        %396 = vmatpush1.bf16.msra.mxu0 0
        %397 = vmatprep.subr.bf16.mxu0 0
        %398 = vmatpush1.bf16.msra.mxu0 0
        %399 = vmatprep.subr.bf16.mxu0 %v357
        %400 = vmatpush1.bf16.msra.mxu0 %v356
        %401 = vmatprep.subr.bf16.mxu0 %v355
        %402 = vmatpush1.bf16.msra.mxu0 %v354
        %403 = vmatprep.subr.bf16.mxu0 0
        %404 = vmatpush2.bf16.msra.mxu0 0
        %405 = vmatprep.subr.bf16.mxu0 0
        %406 = vmatpush2.bf16.msra.mxu0 0
        %407 = vmatprep.subr.bf16.mxu0 0
        %408 = vmatpush2.bf16.msra.mxu0 0
        %409 = vmatprep.subr.bf16.mxu0 0
        %410 = vmatpush2.bf16.msra.mxu0 0
        %411 = vmatprep.subr.bf16.mxu0 0
        %412 = vmatpush2.bf16.msra.mxu0 0
        %413 = vmatprep.subr.bf16.mxu0 0
        %414 = vmatpush2.bf16.msra.mxu0 0
        %415 = vmatprep.subr.bf16.mxu0 0
        %416 = vmatpush2.bf16.msra.mxu0 0
        %417 = vmatprep.subr.bf16.mxu0 0
        %418 = vmatpush2.bf16.msra.mxu0 0
        %419 = vmatprep.mubr.bf16.mxu0 0
        %420 = vmatmul.mubr.bf16.gmra.mxu0 %v364
        %v421 = vpop.f32.mrf.mxu0
        %v422 = vadd.f32 %v335, %v421
        %v423 = vpop.f32.mrf.mxu0
        %v424 = vadd.f32 %v339, %v423
        %v425 = vpop.f32.mrf.mxu0
        %v426 = vadd.f32 %v335, %v425
        %v427 = vpop.f32.mrf.mxu0
        %v428 = vadd.f32 %v339, %v427
        %429 = vmatprep.mubr.bf16.mxu0 0
        %430 = vmatmul.mubr.bf16.gmra.mxu0 %v367
        %v431 = vpop.f32.mrf.mxu0
        %v432 = vadd.f32 %v335, %v431
        %v433 = vpop.f32.mrf.mxu0
        %v434 = vadd.f32 %v339, %v433
        %v435 = vpop.f32.mrf.mxu0
        %v436 = vadd.f32 %v335, %v435
        %v437 = vpop.f32.mrf.mxu0
        %v438 = vadd.f32 %v339, %v437
        %439 = vmatprep.mubr.bf16.mxu0 0
        %440 = vmatmul.mubr.bf16.gmra.mxu0 %v370
        %v441 = vpop.f32.mrf.mxu0
        %v442 = vadd.f32 %v335, %v441
        %v443 = vpop.f32.mrf.mxu0
        %v444 = vadd.f32 %v339, %v443
        %v445 = vpop.f32.mrf.mxu0
        %v446 = vadd.f32 %v335, %v445
        %v447 = vpop.f32.mrf.mxu0
        %v448 = vadd.f32 %v339, %v447
        %449 = vmatprep.mubr.bf16.mxu0 0
        %450 = vmatmul.mubr.bf16.gmra.mxu0 %v373
        %v451 = vpop.f32.mrf.mxu0
        %v452 = vadd.f32 %v335, %v451
        %v453 = vpop.f32.mrf.mxu0
        %v454 = vadd.f32 %v339, %v453
        %v455 = vpop.f32.mrf.mxu0
        %v456 = vadd.f32 %v335, %v455
        %v457 = vpop.f32.mrf.mxu0
        %v458 = vadd.f32 %v339, %v457
        %459 = vmatprep.mubr.bf16.mxu0 0
        %460 = vmatmul.mubr.bf16.gmra.mxu0 %v376
        %v461 = vpop.f32.mrf.mxu0
        %v462 = vadd.f32 %v335, %v461
        %v463 = vpop.f32.mrf.mxu0
        %v464 = vadd.f32 %v339, %v463
        %v465 = vpop.f32.mrf.mxu0
        %v466 = vadd.f32 %v335, %v465
        %v467 = vpop.f32.mrf.mxu0
        %v468 = vadd.f32 %v339, %v467
        %469 = vmatprep.mubr.bf16.mxu0 0
        %470 = vmatmul.mubr.bf16.gmra.mxu0 %v379
        %v471 = vpop.f32.mrf.mxu0
        %v472 = vadd.f32 %v335, %v471
        %v473 = vpop.f32.mrf.mxu0
        %v474 = vadd.f32 %v339, %v473
        %v475 = vpop.f32.mrf.mxu0
        %v476 = vadd.f32 %v335, %v475
        %v477 = vpop.f32.mrf.mxu0
        %v478 = vadd.f32 %v339, %v477
        %479 = vmatprep.mubr.bf16.mxu0 0
        %480 = vmatmul.mubr.bf16.gmra.mxu0 %v382
        %v481 = vpop.f32.mrf.mxu0
        %v482 = vadd.f32 %v335, %v481
        %v483 = vpop.f32.mrf.mxu0
        %v484 = vadd.f32 %v339, %v483
        %v485 = vpop.f32.mrf.mxu0
        %v486 = vadd.f32 %v335, %v485
        %v487 = vpop.f32.mrf.mxu0
        %v488 = vadd.f32 %v339, %v487
        %489 = vmatprep.mubr.bf16.mxu0 0
        %490 = vmatmul.mubr.bf16.gmra.mxu0 %v385
        %v491 = vpop.f32.mrf.mxu0
        %v492 = vadd.f32 %v335, %v491
        %v493 = vpop.f32.mrf.mxu0
        %v494 = vadd.f32 %v339, %v493
        %v495 = vpop.f32.mrf.mxu0
        %v496 = vadd.f32 %v335, %v495
        %v497 = vpop.f32.mrf.mxu0
        %v498 = vadd.f32 %v339, %v497
        %499 = vdwg.mxu0
        %v500 = vmax.f32 %v422, %v424
        %501 = vmax.xlane.f32.xlu0 %v500
        %v502 = vpop.xlane.xlu0 %501
        %v503 = vmax.f32 %v426, %v428
        %504 = vmax.xlane.f32.xlu0 %v503
        %v505 = vpop.xlane.xlu0 %504
        %v506 = vmax.f32 %v432, %v434
        %507 = vmax.xlane.f32.xlu0 %v506
        %v508 = vpop.xlane.xlu0 %507
        %v509 = vmax.f32 %v436, %v438
        %510 = vmax.xlane.f32.xlu0 %v509
        %v511 = vpop.xlane.xlu0 %510
        %v512 = vmax.f32 %v442, %v444
        %513 = vmax.xlane.f32.xlu0 %v512
        %v514 = vpop.xlane.xlu0 %513
        %v515 = vmax.f32 %v446, %v448
        %516 = vmax.xlane.f32.xlu0 %v515
        %v517 = vpop.xlane.xlu0 %516
        %v518 = vmax.f32 %v452, %v454
        %519 = vmax.xlane.f32.xlu0 %v518
        %v520 = vpop.xlane.xlu0 %519
        %v521 = vmax.f32 %v456, %v458
        %522 = vmax.xlane.f32.xlu0 %v521
        %v523 = vpop.xlane.xlu0 %522
        %v524 = vmax.f32 %v462, %v464
        %525 = vmax.xlane.f32.xlu0 %v524
        %v526 = vpop.xlane.xlu0 %525
        %v527 = vmax.f32 %v466, %v468
        %528 = vmax.xlane.f32.xlu0 %v527
        %v529 = vpop.xlane.xlu0 %528
        %v530 = vmax.f32 %v472, %v474
        %531 = vmax.xlane.f32.xlu0 %v530
        %v532 = vpop.xlane.xlu0 %531
        %v533 = vmax.f32 %v476, %v478
        %534 = vmax.xlane.f32.xlu0 %v533
        %v535 = vpop.xlane.xlu0 %534
        %v536 = vmax.f32 %v482, %v484
        %537 = vmax.xlane.f32.xlu0 %v536
        %v538 = vpop.xlane.xlu0 %537
        %v539 = vmax.f32 %v486, %v488
        %540 = vmax.xlane.f32.xlu0 %v539
        %v541 = vpop.xlane.xlu0 %540
        %v542 = vmax.f32 %v492, %v494
        %543 = vmax.xlane.f32.xlu0 %v542
        %v544 = vpop.xlane.xlu0 %543
        %v545 = vmax.f32 %v496, %v498
        %546 = vmax.xlane.f32.xlu0 %v545
        %v547 = vpop.xlane.xlu0 %546
        %v548 = vlaneseq
        %v549 = vand.u32 %v548, 127
        %v550 = vadd.s32 %v549, 128
        %vm551 = vcmp.eq.f32.partialorder %v422, %v502
        %vm552 = vcmp.eq.f32.partialorder %v424, %v502
        %vm553 = vcmp.eq.f32.partialorder %v426, %v505
        %vm554 = vcmp.eq.f32.partialorder %v428, %v505
        %vm555 = vcmp.eq.f32.partialorder %v432, %v508
        %vm556 = vcmp.eq.f32.partialorder %v434, %v508
        %vm557 = vcmp.eq.f32.partialorder %v436, %v511
        %vm558 = vcmp.eq.f32.partialorder %v438, %v511
        %vm559 = vcmp.eq.f32.partialorder %v442, %v514
        %vm560 = vcmp.eq.f32.partialorder %v444, %v514
        %vm561 = vcmp.eq.f32.partialorder %v446, %v517
        %vm562 = vcmp.eq.f32.partialorder %v448, %v517
        %vm563 = vcmp.eq.f32.partialorder %v452, %v520
        %vm564 = vcmp.eq.f32.partialorder %v454, %v520
        %vm565 = vcmp.eq.f32.partialorder %v456, %v523
        %vm566 = vcmp.eq.f32.partialorder %v458, %v523
        %vm567 = vcmp.eq.f32.partialorder %v462, %v526
        %vm568 = vcmp.eq.f32.partialorder %v464, %v526
        %vm569 = vcmp.eq.f32.partialorder %v466, %v529
        %vm570 = vcmp.eq.f32.partialorder %v468, %v529
        %vm571 = vcmp.eq.f32.partialorder %v472, %v532
        %vm572 = vcmp.eq.f32.partialorder %v474, %v532
        %vm573 = vcmp.eq.f32.partialorder %v476, %v535
        %vm574 = vcmp.eq.f32.partialorder %v478, %v535
        %vm575 = vcmp.eq.f32.partialorder %v482, %v538
        %vm576 = vcmp.eq.f32.partialorder %v484, %v538
        %vm577 = vcmp.eq.f32.partialorder %v486, %v541
        %vm578 = vcmp.eq.f32.partialorder %v488, %v541
        %vm579 = vcmp.eq.f32.partialorder %v492, %v544
        %vm580 = vcmp.eq.f32.partialorder %v494, %v544
        %vm581 = vcmp.eq.f32.partialorder %v496, %v547
        %vm582 = vcmp.eq.f32.partialorder %v498, %v547
        %v583 = vsel %vm551, %v549, 256
        %v584 = vsel %vm552, %v550, 256
        %v585 = vsel %vm553, %v549, 256
        %v586 = vsel %vm554, %v550, 256
        %v587 = vsel %vm555, %v549, 256
        %v588 = vsel %vm556, %v550, 256
        %v589 = vsel %vm557, %v549, 256
        %v590 = vsel %vm558, %v550, 256
        %v591 = vsel %vm559, %v549, 256
        %v592 = vsel %vm560, %v550, 256
        %v593 = vsel %vm561, %v549, 256
        %v594 = vsel %vm562, %v550, 256
        %v595 = vsel %vm563, %v549, 256
        %v596 = vsel %vm564, %v550, 256
        %v597 = vsel %vm565, %v549, 256
        %v598 = vsel %vm566, %v550, 256
        %v599 = vsel %vm567, %v549, 256
        %v600 = vsel %vm568, %v550, 256
        %v601 = vsel %vm569, %v549, 256
        %v602 = vsel %vm570, %v550, 256
        %v603 = vsel %vm571, %v549, 256
        %v604 = vsel %vm572, %v550, 256
        %v605 = vsel %vm573, %v549, 256
        %v606 = vsel %vm574, %v550, 256
        %v607 = vsel %vm575, %v549, 256
        %v608 = vsel %vm576, %v550, 256
        %v609 = vsel %vm577, %v549, 256
        %v610 = vsel %vm578, %v550, 256
        %v611 = vsel %vm579, %v549, 256
        %v612 = vsel %vm580, %v550, 256
        %v613 = vsel %vm581, %v549, 256
        %v614 = vsel %vm582, %v550, 256
        %vm615 = vcmp.lt.s32.totalorder %v583, %v584
        %v616 = vsel %vm615, %v583, %v584
        %v617 = vand.u32 %v616, 65535
        %v618 = vshra.s32 %v616, 16
        %v619 = vcvt.s32.f32 %v617
        %v620 = vcvt.s32.f32 %v618
        %621 = vmin.xlane.f32.xlu0 %v620
        %v622 = vpop.xlane.xlu0 %621
        %vm623 = vcmp.eq.f32.partialorder %v620, %v622
        %v624 = vsel %vm623, %v619, inf
        %625 = vmin.xlane.f32.xlu0 %v624
        %v626 = vpop.xlane.xlu0 %625
        %v627 = vcvt.f32.s32 %v626
        %v628 = vcvt.f32.s32 %v622
        %v629 = vshll.u32 %v628, 16
        %v630 = vadd.s32 %v629, %v627
        %vm631 = vcmp.lt.s32.totalorder %v585, %v586
        %v632 = vsel %vm631, %v585, %v586
        %v633 = vand.u32 %v632, 65535
        %v634 = vshra.s32 %v632, 16
        %v635 = vcvt.s32.f32 %v633
        %v636 = vcvt.s32.f32 %v634
        %637 = vmin.xlane.f32.xlu0 %v636
        %v638 = vpop.xlane.xlu0 %637
        %vm639 = vcmp.eq.f32.partialorder %v636, %v638
        %v640 = vsel %vm639, %v635, inf
        %641 = vmin.xlane.f32.xlu0 %v640
        %v642 = vpop.xlane.xlu0 %641
        %v643 = vcvt.f32.s32 %v642
        %v644 = vcvt.f32.s32 %v638
        %v645 = vshll.u32 %v644, 16
        %v646 = vadd.s32 %v645, %v643
        %vm647 = vcmp.lt.s32.totalorder %v587, %v588
        %v648 = vsel %vm647, %v587, %v588
        %v649 = vand.u32 %v648, 65535
        %v650 = vshra.s32 %v648, 16
        %v651 = vcvt.s32.f32 %v649
        %v652 = vcvt.s32.f32 %v650
        %653 = vmin.xlane.f32.xlu0 %v652
        %v654 = vpop.xlane.xlu0 %653
        %vm655 = vcmp.eq.f32.partialorder %v652, %v654
        %v656 = vsel %vm655, %v651, inf
        %657 = vmin.xlane.f32.xlu0 %v656
        %v658 = vpop.xlane.xlu0 %657
        %v659 = vcvt.f32.s32 %v658
        %v660 = vcvt.f32.s32 %v654
        %v661 = vshll.u32 %v660, 16
        %v662 = vadd.s32 %v661, %v659
        %vm663 = vcmp.lt.s32.totalorder %v589, %v590
        %v664 = vsel %vm663, %v589, %v590
        %v665 = vand.u32 %v664, 65535
        %v666 = vshra.s32 %v664, 16
        %v667 = vcvt.s32.f32 %v665
        %v668 = vcvt.s32.f32 %v666
        %669 = vmin.xlane.f32.xlu0 %v668
        %v670 = vpop.xlane.xlu0 %669
        %vm671 = vcmp.eq.f32.partialorder %v668, %v670
        %v672 = vsel %vm671, %v667, inf
        %673 = vmin.xlane.f32.xlu0 %v672
        %v674 = vpop.xlane.xlu0 %673
        %v675 = vcvt.f32.s32 %v674
        %v676 = vcvt.f32.s32 %v670
        %v677 = vshll.u32 %v676, 16
        %v678 = vadd.s32 %v677, %v675
        %vm679 = vcmp.lt.s32.totalorder %v591, %v592
        %v680 = vsel %vm679, %v591, %v592
        %v681 = vand.u32 %v680, 65535
        %v682 = vshra.s32 %v680, 16
        %v683 = vcvt.s32.f32 %v681
        %v684 = vcvt.s32.f32 %v682
        %685 = vmin.xlane.f32.xlu0 %v684
        %v686 = vpop.xlane.xlu0 %685
        %vm687 = vcmp.eq.f32.partialorder %v684, %v686
        %v688 = vsel %vm687, %v683, inf
        %689 = vmin.xlane.f32.xlu0 %v688
        %v690 = vpop.xlane.xlu0 %689
        %v691 = vcvt.f32.s32 %v690
        %v692 = vcvt.f32.s32 %v686
        %v693 = vshll.u32 %v692, 16
        %v694 = vadd.s32 %v693, %v691
        %vm695 = vcmp.lt.s32.totalorder %v593, %v594
        %v696 = vsel %vm695, %v593, %v594
        %v697 = vand.u32 %v696, 65535
        %v698 = vshra.s32 %v696, 16
        %v699 = vcvt.s32.f32 %v697
        %v700 = vcvt.s32.f32 %v698
        %701 = vmin.xlane.f32.xlu0 %v700
        %v702 = vpop.xlane.xlu0 %701
        %vm703 = vcmp.eq.f32.partialorder %v700, %v702
        %v704 = vsel %vm703, %v699, inf
        %705 = vmin.xlane.f32.xlu0 %v704
        %v706 = vpop.xlane.xlu0 %705
        %v707 = vcvt.f32.s32 %v706
        %v708 = vcvt.f32.s32 %v702
        %v709 = vshll.u32 %v708, 16
        %v710 = vadd.s32 %v709, %v707
        %vm711 = vcmp.lt.s32.totalorder %v595, %v596
        %v712 = vsel %vm711, %v595, %v596
        %v713 = vand.u32 %v712, 65535
        %v714 = vshra.s32 %v712, 16
        %v715 = vcvt.s32.f32 %v713
        %v716 = vcvt.s32.f32 %v714
        %717 = vmin.xlane.f32.xlu0 %v716
        %v718 = vpop.xlane.xlu0 %717
        %vm719 = vcmp.eq.f32.partialorder %v716, %v718
        %v720 = vsel %vm719, %v715, inf
        %721 = vmin.xlane.f32.xlu0 %v720
        %v722 = vpop.xlane.xlu0 %721
        %v723 = vcvt.f32.s32 %v722
        %v724 = vcvt.f32.s32 %v718
        %v725 = vshll.u32 %v724, 16
        %v726 = vadd.s32 %v725, %v723
        %vm727 = vcmp.lt.s32.totalorder %v597, %v598
        %v728 = vsel %vm727, %v597, %v598
        %v729 = vand.u32 %v728, 65535
        %v730 = vshra.s32 %v728, 16
        %v731 = vcvt.s32.f32 %v729
        %v732 = vcvt.s32.f32 %v730
        %733 = vmin.xlane.f32.xlu0 %v732
        %v734 = vpop.xlane.xlu0 %733
        %vm735 = vcmp.eq.f32.partialorder %v732, %v734
        %v736 = vsel %vm735, %v731, inf
        %737 = vmin.xlane.f32.xlu0 %v736
        %v738 = vpop.xlane.xlu0 %737
        %v739 = vcvt.f32.s32 %v738
        %v740 = vcvt.f32.s32 %v734
        %v741 = vshll.u32 %v740, 16
        %v742 = vadd.s32 %v741, %v739
        %vm743 = vcmp.lt.s32.totalorder %v599, %v600
        %v744 = vsel %vm743, %v599, %v600
        %v745 = vand.u32 %v744, 65535
        %v746 = vshra.s32 %v744, 16
        %v747 = vcvt.s32.f32 %v745
        %v748 = vcvt.s32.f32 %v746
        %749 = vmin.xlane.f32.xlu0 %v748
        %v750 = vpop.xlane.xlu0 %749
        %vm751 = vcmp.eq.f32.partialorder %v748, %v750
        %v752 = vsel %vm751, %v747, inf
        %753 = vmin.xlane.f32.xlu0 %v752
        %v754 = vpop.xlane.xlu0 %753
        %v755 = vcvt.f32.s32 %v754
        %v756 = vcvt.f32.s32 %v750
        %v757 = vshll.u32 %v756, 16
        %v758 = vadd.s32 %v757, %v755
        %vm759 = vcmp.lt.s32.totalorder %v601, %v602
        %v760 = vsel %vm759, %v601, %v602
        %v761 = vand.u32 %v760, 65535
        %v762 = vshra.s32 %v760, 16
        %v763 = vcvt.s32.f32 %v761
        %v764 = vcvt.s32.f32 %v762
        %765 = vmin.xlane.f32.xlu0 %v764
        %v766 = vpop.xlane.xlu0 %765
        %vm767 = vcmp.eq.f32.partialorder %v764, %v766
        %v768 = vsel %vm767, %v763, inf
        %769 = vmin.xlane.f32.xlu0 %v768
        %v770 = vpop.xlane.xlu0 %769
        %v771 = vcvt.f32.s32 %v770
        %v772 = vcvt.f32.s32 %v766
        %v773 = vshll.u32 %v772, 16
        %v774 = vadd.s32 %v773, %v771
        %vm775 = vcmp.lt.s32.totalorder %v603, %v604
        %v776 = vsel %vm775, %v603, %v604
        %v777 = vand.u32 %v776, 65535
        %v778 = vshra.s32 %v776, 16
        %v779 = vcvt.s32.f32 %v777
        %v780 = vcvt.s32.f32 %v778
        %781 = vmin.xlane.f32.xlu0 %v780
        %v782 = vpop.xlane.xlu0 %781
        %vm783 = vcmp.eq.f32.partialorder %v780, %v782
        %v784 = vsel %vm783, %v779, inf
        %785 = vmin.xlane.f32.xlu0 %v784
        %v786 = vpop.xlane.xlu0 %785
        %v787 = vcvt.f32.s32 %v786
        %v788 = vcvt.f32.s32 %v782
        %v789 = vshll.u32 %v788, 16
        %v790 = vadd.s32 %v789, %v787
        %vm791 = vcmp.lt.s32.totalorder %v605, %v606
        %v792 = vsel %vm791, %v605, %v606
        %v793 = vand.u32 %v792, 65535
        %v794 = vshra.s32 %v792, 16
        %v795 = vcvt.s32.f32 %v793
        %v796 = vcvt.s32.f32 %v794
        %797 = vmin.xlane.f32.xlu0 %v796
        %v798 = vpop.xlane.xlu0 %797
        %vm799 = vcmp.eq.f32.partialorder %v796, %v798
        %v800 = vsel %vm799, %v795, inf
        %801 = vmin.xlane.f32.xlu0 %v800
        %v802 = vpop.xlane.xlu0 %801
        %v803 = vcvt.f32.s32 %v802
        %v804 = vcvt.f32.s32 %v798
        %v805 = vshll.u32 %v804, 16
        %v806 = vadd.s32 %v805, %v803
        %vm807 = vcmp.lt.s32.totalorder %v607, %v608
        %v808 = vsel %vm807, %v607, %v608
        %v809 = vand.u32 %v808, 65535
        %v810 = vshra.s32 %v808, 16
        %v811 = vcvt.s32.f32 %v809
        %v812 = vcvt.s32.f32 %v810
        %813 = vmin.xlane.f32.xlu0 %v812
        %v814 = vpop.xlane.xlu0 %813
        %vm815 = vcmp.eq.f32.partialorder %v812, %v814
        %v816 = vsel %vm815, %v811, inf
        %817 = vmin.xlane.f32.xlu0 %v816
        %v818 = vpop.xlane.xlu0 %817
        %v819 = vcvt.f32.s32 %v818
        %v820 = vcvt.f32.s32 %v814
        %v821 = vshll.u32 %v820, 16
        %v822 = vadd.s32 %v821, %v819
        %vm823 = vcmp.lt.s32.totalorder %v609, %v610
        %v824 = vsel %vm823, %v609, %v610
        %v825 = vand.u32 %v824, 65535
        %v826 = vshra.s32 %v824, 16
        %v827 = vcvt.s32.f32 %v825
        %v828 = vcvt.s32.f32 %v826
        %829 = vmin.xlane.f32.xlu0 %v828
        %v830 = vpop.xlane.xlu0 %829
        %vm831 = vcmp.eq.f32.partialorder %v828, %v830
        %v832 = vsel %vm831, %v827, inf
        %833 = vmin.xlane.f32.xlu0 %v832
        %v834 = vpop.xlane.xlu0 %833
        %v835 = vcvt.f32.s32 %v834
        %v836 = vcvt.f32.s32 %v830
        %v837 = vshll.u32 %v836, 16
        %v838 = vadd.s32 %v837, %v835
        %vm839 = vcmp.lt.s32.totalorder %v611, %v612
        %v840 = vsel %vm839, %v611, %v612
        %v841 = vand.u32 %v840, 65535
        %v842 = vshra.s32 %v840, 16
        %v843 = vcvt.s32.f32 %v841
        %v844 = vcvt.s32.f32 %v842
        %845 = vmin.xlane.f32.xlu0 %v844
        %v846 = vpop.xlane.xlu0 %845
        %vm847 = vcmp.eq.f32.partialorder %v844, %v846
        %v848 = vsel %vm847, %v843, inf
        %849 = vmin.xlane.f32.xlu0 %v848
        %v850 = vpop.xlane.xlu0 %849
        %v851 = vcvt.f32.s32 %v850
        %v852 = vcvt.f32.s32 %v846
        %v853 = vshll.u32 %v852, 16
        %v854 = vadd.s32 %v853, %v851
        %vm855 = vcmp.lt.s32.totalorder %v613, %v614
        %v856 = vsel %vm855, %v613, %v614
        %v857 = vand.u32 %v856, 65535
        %v858 = vshra.s32 %v856, 16
        %v859 = vcvt.s32.f32 %v857
        %v860 = vcvt.s32.f32 %v858
        %861 = vmin.xlane.f32.xlu0 %v860
        %v862 = vpop.xlane.xlu0 %861
        %vm863 = vcmp.eq.f32.partialorder %v860, %v862
        %v864 = vsel %vm863, %v859, inf
        %865 = vmin.xlane.f32.xlu0 %v864
        %v866 = vpop.xlane.xlu0 %865
        %v867 = vcvt.f32.s32 %v866
        %v868 = vcvt.f32.s32 %v862
        %v869 = vshll.u32 %v868, 16
        %v870 = vadd.s32 %v869, %v867
        %vm871 = vcmp.eq.s32.totalorder %v549, %v630
        %vm872 = vcmp.eq.s32.totalorder %v550, %v630
        %vm873 = vcmp.eq.s32.totalorder %v549, %v646
        %vm874 = vcmp.eq.s32.totalorder %v550, %v646
        %vm875 = vcmp.eq.s32.totalorder %v549, %v662
        %vm876 = vcmp.eq.s32.totalorder %v550, %v662
        %vm877 = vcmp.eq.s32.totalorder %v549, %v678
        %vm878 = vcmp.eq.s32.totalorder %v550, %v678
        %vm879 = vcmp.eq.s32.totalorder %v549, %v694
        %vm880 = vcmp.eq.s32.totalorder %v550, %v694
        %vm881 = vcmp.eq.s32.totalorder %v549, %v710
        %vm882 = vcmp.eq.s32.totalorder %v550, %v710
        %vm883 = vcmp.eq.s32.totalorder %v549, %v726
        %vm884 = vcmp.eq.s32.totalorder %v550, %v726
        %vm885 = vcmp.eq.s32.totalorder %v549, %v742
        %vm886 = vcmp.eq.s32.totalorder %v550, %v742
        %vm887 = vcmp.eq.s32.totalorder %v549, %v758
        %vm888 = vcmp.eq.s32.totalorder %v550, %v758
        %vm889 = vcmp.eq.s32.totalorder %v549, %v774
        %vm890 = vcmp.eq.s32.totalorder %v550, %v774
        %vm891 = vcmp.eq.s32.totalorder %v549, %v790
        %vm892 = vcmp.eq.s32.totalorder %v550, %v790
        %vm893 = vcmp.eq.s32.totalorder %v549, %v806
        %vm894 = vcmp.eq.s32.totalorder %v550, %v806
        %vm895 = vcmp.eq.s32.totalorder %v549, %v822
        %vm896 = vcmp.eq.s32.totalorder %v550, %v822
        %vm897 = vcmp.eq.s32.totalorder %v549, %v838
        %vm898 = vcmp.eq.s32.totalorder %v550, %v838
        %vm899 = vcmp.eq.s32.totalorder %v549, %v854
        %vm900 = vcmp.eq.s32.totalorder %v550, %v854
        %vm901 = vcmp.eq.s32.totalorder %v549, %v870
        %vm902 = vcmp.eq.s32.totalorder %v550, %v870
        %v903 = vsel %vm871, 1, 0
        %v904 = vsel %vm872, 1, 0
        %v905 = vsel %vm873, 1, 0
        %v906 = vsel %vm874, 1, 0
        %v907 = vsel %vm875, 1, 0
        %v908 = vsel %vm876, 1, 0
        %v909 = vsel %vm877, 1, 0
        %v910 = vsel %vm878, 1, 0
        %v911 = vsel %vm879, 1, 0
        %v912 = vsel %vm880, 1, 0
        %v913 = vsel %vm881, 1, 0
        %v914 = vsel %vm882, 1, 0
        %v915 = vsel %vm883, 1, 0
        %v916 = vsel %vm884, 1, 0
        %v917 = vsel %vm885, 1, 0
        %v918 = vsel %vm886, 1, 0
        %v919 = vsel %vm887, 1, 0
        %v920 = vsel %vm888, 1, 0
        %v921 = vsel %vm889, 1, 0
        %v922 = vsel %vm890, 1, 0
        %v923 = vsel %vm891, 1, 0
        %v924 = vsel %vm892, 1, 0
        %v925 = vsel %vm893, 1, 0
        %v926 = vsel %vm894, 1, 0
        %v927 = vsel %vm895, 1, 0
        %v928 = vsel %vm896, 1, 0
        %v929 = vsel %vm897, 1, 0
        %v930 = vsel %vm898, 1, 0
        %v931 = vsel %vm899, 1, 0
        %v932 = vsel %vm900, 1, 0
        %v933 = vsel %vm901, 1, 0
        %v934 = vsel %vm902, 1, 0
        %v935 = vcvt.s32.f32 %v903
        %v936 = vcvt.s32.f32 %v904
        %v937 = vcvt.s32.f32 %v905
        %v938 = vcvt.s32.f32 %v906
        %v939 = vcvt.s32.f32 %v907
        %v940 = vcvt.s32.f32 %v908
        %v941 = vcvt.s32.f32 %v909
        %v942 = vcvt.s32.f32 %v910
        %v943 = vcvt.s32.f32 %v911
        %v944 = vcvt.s32.f32 %v912
        %v945 = vcvt.s32.f32 %v913
        %v946 = vcvt.s32.f32 %v914
        %v947 = vcvt.s32.f32 %v915
        %v948 = vcvt.s32.f32 %v916
        %v949 = vcvt.s32.f32 %v917
        %v950 = vcvt.s32.f32 %v918
        %v951 = vcvt.s32.f32 %v919
        %v952 = vcvt.s32.f32 %v920
        %v953 = vcvt.s32.f32 %v921
        %v954 = vcvt.s32.f32 %v922
        %v955 = vcvt.s32.f32 %v923
        %v956 = vcvt.s32.f32 %v924
        %v957 = vcvt.s32.f32 %v925
        %v958 = vcvt.s32.f32 %v926
        %v959 = vcvt.s32.f32 %v927
        %v960 = vcvt.s32.f32 %v928
        %v961 = vcvt.s32.f32 %v929
        %v962 = vcvt.s32.f32 %v930
        %v963 = vcvt.s32.f32 %v931
        %v964 = vcvt.s32.f32 %v932
        %v965 = vcvt.s32.f32 %v933
        %v966 = vcvt.s32.f32 %v934
        %v967 = vpack.c.bf16 %v937, %v935
        %v968 = vpack.c.bf16 %v938, %v936
        %v969 = vpack.c.bf16 %v941, %v939
        %v970 = vpack.c.bf16 %v942, %v940
        %v971 = vpack.c.bf16 %v945, %v943
        %v972 = vpack.c.bf16 %v946, %v944
        %v973 = vpack.c.bf16 %v949, %v947
        %v974 = vpack.c.bf16 %v950, %v948
        %v975 = vpack.c.bf16 %v953, %v951
        %v976 = vpack.c.bf16 %v954, %v952
        %v977 = vpack.c.bf16 %v957, %v955
        %v978 = vpack.c.bf16 %v958, %v956
        %v979 = vpack.c.bf16 %v961, %v959
        %v980 = vpack.c.bf16 %v962, %v960
        %v981 = vpack.c.bf16 %v965, %v963
        %v982 = vpack.c.bf16 %v966, %v964
        %v983 = vld [vmem:[%s2] sm:$0xf]
        %v984 = vld [vmem:[%s2 + $0x4] sm:$0xf]
        %v985 = vld [vmem:[%s2 + $0x8] sm:$0xf]
        %v986 = vld [vmem:[%s2 + $0xc] sm:$0xf]
        %v987 = vld [vmem:[%s2 + $0x10] sm:$0xf]
        %v988 = vld [vmem:[%s2 + $0x14] sm:$0xf]
        %v989 = vld [vmem:[%s2 + $0x18] sm:$0xf]
        %v990 = vld [vmem:[%s2 + $0x1c] sm:$0xf]
        %v991 = vld [vmem:[%s2 + $0x20] sm:$0xf]
        %v992 = vld [vmem:[%s2 + $0x24] sm:$0xf]
        %v993 = vld [vmem:[%s2 + $0x28] sm:$0xf]
        %v994 = vld [vmem:[%s2 + $0x2c] sm:$0xf]
        %v995 = vld [vmem:[%s2 + $0x30] sm:$0xf]
        %v996 = vld [vmem:[%s2 + $0x34] sm:$0xf]
        %v997 = vld [vmem:[%s2 + $0x38] sm:$0xf]
        %v998 = vld [vmem:[%s2 + $0x3c] sm:$0xf]
        %v999 = vld [vmem:[%s2 + $0x40] sm:$0xf]
        %v1000 = vld [vmem:[%s2 + $0x44] sm:$0xf]
        %v1001 = vld [vmem:[%s2 + $0x48] sm:$0xf]
        %v1002 = vld [vmem:[%s2 + $0x4c] sm:$0xf]
        %v1003 = vld [vmem:[%s2 + $0x50] sm:$0xf]
        %v1004 = vld [vmem:[%s2 + $0x54] sm:$0xf]
        %v1005 = vld [vmem:[%s2 + $0x58] sm:$0xf]
        %v1006 = vld [vmem:[%s2 + $0x5c] sm:$0xf]
        %v1007 = vld [vmem:[%s2 + $0x60] sm:$0xf]
        %v1008 = vld [vmem:[%s2 + $0x64] sm:$0xf]
        %v1009 = vld [vmem:[%s2 + $0x68] sm:$0xf]
        %v1010 = vld [vmem:[%s2 + $0x6c] sm:$0xf]
        %v1011 = vld [vmem:[%s2 + $0x70] sm:$0xf]
        %v1012 = vld [vmem:[%s2 + $0x74] sm:$0xf]
        %v1013 = vld [vmem:[%s2 + $0x78] sm:$0xf]
        %v1014 = vld [vmem:[%s2 + $0x7c] sm:$0xf]
        %v1047 = vunpack.c.l.b16 %v983
        %v1048 = vunpack.c.l.b16 %v984
        %v1049 = vunpack.c.l.b16 %v985
        %v1050 = vunpack.c.l.b16 %v986
        %v1051 = vunpack.c.l.b16 %v987
        %v1052 = vunpack.c.l.b16 %v988
        %v1053 = vunpack.c.l.b16 %v989
        %v1054 = vunpack.c.l.b16 %v990
        %v1055 = vunpack.c.l.b16 %v991
        %v1056 = vunpack.c.l.b16 %v992
        %v1057 = vunpack.c.l.b16 %v993
        %v1058 = vunpack.c.l.b16 %v994
        %v1059 = vunpack.c.l.b16 %v995
        %v1060 = vunpack.c.l.b16 %v996
        %v1061 = vunpack.c.l.b16 %v997
        %v1062 = vunpack.c.l.b16 %v998
        %v1063 = vunpack.c.l.b16 %v999
        %v1064 = vunpack.c.l.b16 %v1000
        %v1065 = vunpack.c.l.b16 %v1001
        %v1066 = vunpack.c.l.b16 %v1002
        %v1067 = vunpack.c.l.b16 %v1003
        %v1068 = vunpack.c.l.b16 %v1004
        %v1069 = vunpack.c.l.b16 %v1005
        %v1070 = vunpack.c.l.b16 %v1006
        %v1071 = vunpack.c.l.b16 %v1007
        %v1072 = vunpack.c.l.b16 %v1008
        %v1073 = vunpack.c.l.b16 %v1009
        %v1074 = vunpack.c.l.b16 %v1010
        %v1075 = vunpack.c.l.b16 %v1011
        %v1076 = vunpack.c.l.b16 %v1012
        %v1077 = vunpack.c.l.b16 %v1013
        %v1078 = vunpack.c.l.b16 %v1014
        %v1079 = vpack.c.b16 %v1048, %v1047
        %v1080 = vpack.c.b16 %v1050, %v1049
        %v1081 = vpack.c.b16 %v1052, %v1051
        %v1082 = vpack.c.b16 %v1054, %v1053
        %v1083 = vpack.c.b16 %v1056, %v1055
        %v1084 = vpack.c.b16 %v1058, %v1057
        %v1085 = vpack.c.b16 %v1060, %v1059
        %v1086 = vpack.c.b16 %v1062, %v1061
        %v1087 = vpack.c.b16 %v1064, %v1063
        %v1088 = vpack.c.b16 %v1066, %v1065
        %v1089 = vpack.c.b16 %v1068, %v1067
        %v1090 = vpack.c.b16 %v1070, %v1069
        %v1091 = vpack.c.b16 %v1072, %v1071
        %v1092 = vpack.c.b16 %v1074, %v1073
        %v1093 = vpack.c.b16 %v1076, %v1075
        %v1094 = vpack.c.b16 %v1078, %v1077
        %1111 = vmatprep.subr.bf16.mxu0 0
        %1112 = vmatpush1.bf16.msra.mxu0 %v1086
        %1113 = vmatprep.subr.bf16.mxu0 0
        %1114 = vmatpush1.bf16.msra.mxu0 %v1085
        %1115 = vmatprep.subr.bf16.mxu0 0
        %1116 = vmatpush1.bf16.msra.mxu0 %v1084
        %1117 = vmatprep.subr.bf16.mxu0 0
        %1118 = vmatpush1.bf16.msra.mxu0 %v1083
        %1119 = vmatprep.subr.bf16.mxu0 0
        %1120 = vmatpush1.bf16.msra.mxu0 %v1082
        %1121 = vmatprep.subr.bf16.mxu0 0
        %1122 = vmatpush1.bf16.msra.mxu0 %v1081
        %1123 = vmatprep.subr.bf16.mxu0 0
        %1124 = vmatpush1.bf16.msra.mxu0 %v1080
        %1125 = vmatprep.subr.bf16.mxu0 0
        %1126 = vmatpush1.bf16.msra.mxu0 %v1079
        %1127 = vmatprep.subr.bf16.mxu0 0
        %1128 = vmatpush2.bf16.msra.mxu0 %v1094
        %1129 = vmatprep.subr.bf16.mxu0 0
        %1130 = vmatpush2.bf16.msra.mxu0 %v1093
        %1131 = vmatprep.subr.bf16.mxu0 0
        %1132 = vmatpush2.bf16.msra.mxu0 %v1092
        %1133 = vmatprep.subr.bf16.mxu0 0
        %1134 = vmatpush2.bf16.msra.mxu0 %v1091
        %1135 = vmatprep.subr.bf16.mxu0 0
        %1136 = vmatpush2.bf16.msra.mxu0 %v1090
        %1137 = vmatprep.subr.bf16.mxu0 0
        %1138 = vmatpush2.bf16.msra.mxu0 %v1089
        %1139 = vmatprep.subr.bf16.mxu0 0
        %1140 = vmatpush2.bf16.msra.mxu0 %v1088
        %1141 = vmatprep.subr.bf16.mxu0 0
        %1142 = vmatpush2.bf16.msra.mxu0 %v1087
        %1143 = vmatprep.mubr.bf16.mxu0 %v968
        %1144 = vmatmul.mubr.bf16.gmra.mxu0 %v967
        %v1145 = vpop.f32.mrf.mxu0
        %v1146 = vadd.f32 0.0, %v1145
        %v1147 = vpop.f32.mrf.mxu0
        %v1148 = vpop.f32.mrf.mxu0
        %v1149 = vadd.f32 0.0, %v1148
        %v1150 = vpop.f32.mrf.mxu0
        %1151 = vmatprep.mubr.bf16.mxu0 %v970
        %1152 = vmatmul.mubr.bf16.gmra.mxu0 %v969
        %v1153 = vpop.f32.mrf.mxu0
        %v1154 = vadd.f32 0.0, %v1153
        %v1155 = vpop.f32.mrf.mxu0
        %v1156 = vpop.f32.mrf.mxu0
        %v1157 = vadd.f32 0.0, %v1156
        %v1158 = vpop.f32.mrf.mxu0
        %1159 = vmatprep.mubr.bf16.mxu0 %v972
        %1160 = vmatmul.mubr.bf16.gmra.mxu0 %v971
        %v1161 = vpop.f32.mrf.mxu0
        %v1162 = vadd.f32 0.0, %v1161
        %v1163 = vpop.f32.mrf.mxu0
        %v1164 = vpop.f32.mrf.mxu0
        %v1165 = vadd.f32 0.0, %v1164
        %v1166 = vpop.f32.mrf.mxu0
        %1167 = vmatprep.mubr.bf16.mxu0 %v974
        %1168 = vmatmul.mubr.bf16.gmra.mxu0 %v973
        %v1169 = vpop.f32.mrf.mxu0
        %v1170 = vadd.f32 0.0, %v1169
        %v1171 = vpop.f32.mrf.mxu0
        %v1172 = vpop.f32.mrf.mxu0
        %v1173 = vadd.f32 0.0, %v1172
        %v1174 = vpop.f32.mrf.mxu0
        %1175 = vmatprep.mubr.bf16.mxu0 %v976
        %1176 = vmatmul.mubr.bf16.gmra.mxu0 %v975
        %v1177 = vpop.f32.mrf.mxu0
        %v1178 = vadd.f32 0.0, %v1177
        %v1179 = vpop.f32.mrf.mxu0
        %v1180 = vpop.f32.mrf.mxu0
        %v1181 = vadd.f32 0.0, %v1180
        %v1182 = vpop.f32.mrf.mxu0
        %1183 = vmatprep.mubr.bf16.mxu0 %v978
        %1184 = vmatmul.mubr.bf16.gmra.mxu0 %v977
        %v1185 = vpop.f32.mrf.mxu0
        %v1186 = vadd.f32 0.0, %v1185
        %v1187 = vpop.f32.mrf.mxu0
        %v1188 = vpop.f32.mrf.mxu0
        %v1189 = vadd.f32 0.0, %v1188
        %v1190 = vpop.f32.mrf.mxu0
        %1191 = vmatprep.mubr.bf16.mxu0 %v980
        %1192 = vmatmul.mubr.bf16.gmra.mxu0 %v979
        %v1193 = vpop.f32.mrf.mxu0
        %v1194 = vadd.f32 0.0, %v1193
        %v1195 = vpop.f32.mrf.mxu0
        %v1196 = vpop.f32.mrf.mxu0
        %v1197 = vadd.f32 0.0, %v1196
        %v1198 = vpop.f32.mrf.mxu0
        %1199 = vmatprep.mubr.bf16.mxu0 %v982
        %1200 = vmatmul.mubr.bf16.gmra.mxu0 %v981
        %v1201 = vpop.f32.mrf.mxu0
        %v1202 = vadd.f32 0.0, %v1201
        %v1203 = vpop.f32.mrf.mxu0
        %v1204 = vpop.f32.mrf.mxu0
        %v1205 = vadd.f32 0.0, %v1204
        %v1206 = vpop.f32.mrf.mxu0
        %1207 = vdwg.mxu0
        %v1208 = vpack.c.bf16 %v1149, %v1146
        %v1209 = vpack.c.bf16 %v1157, %v1154
        %v1210 = vpack.c.bf16 %v1165, %v1162
        %v1211 = vpack.c.bf16 %v1173, %v1170
        %v1212 = vpack.c.bf16 %v1181, %v1178
        %v1213 = vpack.c.bf16 %v1189, %v1186
        %v1214 = vpack.c.bf16 %v1197, %v1194
        %v1215 = vpack.c.bf16 %v1205, %v1202
        %v1224 = vunpack.c.l.b16 %v1208
        %v1225 = vunpack.c.h.b16 %v1208
        %v1226 = vunpack.c.l.b16 %v1209
        %v1227 = vunpack.c.h.b16 %v1209
        %v1228 = vunpack.c.l.b16 %v1210
        %v1229 = vunpack.c.h.b16 %v1210
        %v1230 = vunpack.c.l.b16 %v1211
        %v1231 = vunpack.c.h.b16 %v1211
        %v1232 = vunpack.c.l.b16 %v1212
        %v1233 = vunpack.c.h.b16 %v1212
        %v1234 = vunpack.c.l.b16 %v1213
        %v1235 = vunpack.c.h.b16 %v1213
        %v1236 = vunpack.c.l.b16 %v1214
        %v1237 = vunpack.c.h.b16 %v1214
        %v1238 = vunpack.c.l.b16 %v1215
        %v1239 = vunpack.c.h.b16 %v1215
        %v1240 = vpack.c.b16 %v1224, %v1224
        %v1241 = vpack.c.b16 %v1225, %v1225
        %v1242 = vpack.c.b16 %v1226, %v1226
        %v1243 = vpack.c.b16 %v1227, %v1227
        %v1244 = vpack.c.b16 %v1228, %v1228
        %v1245 = vpack.c.b16 %v1229, %v1229
        %v1246 = vpack.c.b16 %v1230, %v1230
        %v1247 = vpack.c.b16 %v1231, %v1231
        %v1248 = vpack.c.b16 %v1232, %v1232
        %v1249 = vpack.c.b16 %v1233, %v1233
        %v1250 = vpack.c.b16 %v1234, %v1234
        %v1251 = vpack.c.b16 %v1235, %v1235
        %v1252 = vpack.c.b16 %v1236, %v1236
        %v1253 = vpack.c.b16 %v1237, %v1237
        %v1254 = vpack.c.b16 %v1238, %v1238
        %v1255 = vpack.c.b16 %v1239, %v1239
        %vm1272 = vcmask 257024
        %1273 = vst.msk [vmem:[%s299] sm:$0xf] %vm1272, %v1240
        %1274 = vst.msk [vmem:[%s299 + $0x4] sm:$0xf] %vm1272, %v1241
        %1275 = vst.msk [vmem:[%s299 + $0x8] sm:$0xf] %vm1272, %v1242
        %1276 = vst.msk [vmem:[%s299 + $0xc] sm:$0xf] %vm1272, %v1243
        %1277 = vst.msk [vmem:[%s299 + $0x10] sm:$0xf] %vm1272, %v1244
        %1278 = vst.msk [vmem:[%s299 + $0x14] sm:$0xf] %vm1272, %v1245
        %1279 = vst.msk [vmem:[%s299 + $0x18] sm:$0xf] %vm1272, %v1246
        %1280 = vst.msk [vmem:[%s299 + $0x1c] sm:$0xf] %vm1272, %v1247
        %1281 = vst.msk [vmem:[%s299 + $0x20] sm:$0xf] %vm1272, %v1248
        %1282 = vst.msk [vmem:[%s299 + $0x24] sm:$0xf] %vm1272, %v1249
        %1283 = vst.msk [vmem:[%s299 + $0x28] sm:$0xf] %vm1272, %v1250
        %1284 = vst.msk [vmem:[%s299 + $0x2c] sm:$0xf] %vm1272, %v1251
        %1285 = vst.msk [vmem:[%s299 + $0x30] sm:$0xf] %vm1272, %v1252
        %1286 = vst.msk [vmem:[%s299 + $0x34] sm:$0xf] %vm1272, %v1253
        %1287 = vst.msk [vmem:[%s299 + $0x38] sm:$0xf] %vm1272, %v1254
        %1288 = vst.msk [vmem:[%s299 + $0x3c] sm:$0xf] %vm1272, %v1255
        %v1289 = vld [vmem:[%s4] sm:$0x3]
        %v1292 = vunpack.c.l.s4 1966171168
        %v1293 = vunpack.c.0.s8 %v1292
        %v1294 = vlaneseq
        %v1295 = vshrl.u32 %v1294, 7
        %v1296 = vsub.s32 %v1293, %v1295
        %v1297 = vrot.slane %v1289, %v1296
        %v1298 = vcombine.high %v1297, %v1297
        %v1300 = vunpack.c.l.s4 1966171168
        %v1301 = vunpack.c.0.s8 %v1300
        %v1302 = vlaneseq
        %v1303 = vshrl.u32 %v1302, 7
        %v1304 = vsub.s32 %v1301, %v1303
        %v1305 = vrot.slane %v1297, %v1304
        %v1307 = vunpack.c.l.s4 1966171168
        %v1308 = vunpack.c.0.s8 %v1307
        %v1309 = vlaneseq
        %v1310 = vshrl.u32 %v1309, 7
        %v1311 = vsub.s32 %v1308, %v1310
        %v1312 = vrot.slane %v1298, %v1311
        %1315 = vmatprep.subr.bf16.mxu0 %v982
        %1316 = vmatpush1.bf16.xpose.msra.mxu0 %v981
        %1317 = vmatprep.subr.bf16.mxu0 %v980
        %1318 = vmatpush1.bf16.xpose.msra.mxu0 %v979
        %1319 = vmatprep.subr.bf16.mxu0 %v978
        %1320 = vmatpush1.bf16.xpose.msra.mxu0 %v977
        %1321 = vmatprep.subr.bf16.mxu0 %v976
        %1322 = vmatpush1.bf16.xpose.msra.mxu0 %v975
        %1323 = vmatprep.subr.bf16.mxu0 %v974
        %1324 = vmatpush1.bf16.xpose.msra.mxu0 %v973
        %1325 = vmatprep.subr.bf16.mxu0 %v972
        %1326 = vmatpush1.bf16.xpose.msra.mxu0 %v971
        %1327 = vmatprep.subr.bf16.mxu0 %v970
        %1328 = vmatpush1.bf16.xpose.msra.mxu0 %v969
        %1329 = vmatprep.subr.bf16.mxu0 %v968
        %1330 = vmatpush1.bf16.xpose.msra.mxu0 %v967
        %1331 = vmatprep.subr.bf16.mxu0 0
        %1332 = vmatpush2.bf16.xpose.msra.mxu0 0
        %1333 = vmatprep.subr.bf16.mxu0 0
        %1334 = vmatpush2.bf16.xpose.msra.mxu0 0
        %1335 = vmatprep.subr.bf16.mxu0 0
        %1336 = vmatpush2.bf16.xpose.msra.mxu0 0
        %1337 = vmatprep.subr.bf16.mxu0 0
        %1338 = vmatpush2.bf16.xpose.msra.mxu0 0
        %1339 = vmatprep.subr.bf16.mxu0 0
        %1340 = vmatpush2.bf16.xpose.msra.mxu0 0
        %1341 = vmatprep.subr.bf16.mxu0 0
        %1342 = vmatpush2.bf16.xpose.msra.mxu0 0
        %1343 = vmatprep.subr.bf16.mxu0 0
        %1344 = vmatpush2.bf16.xpose.msra.mxu0 0
        %1345 = vmatprep.subr.bf16.mxu0 0
        %1346 = vmatpush2.bf16.xpose.msra.mxu0 0
        %1347 = vmatprep.mubr.bf16.mxu0 %v1312
        %1348 = vmatmul.mubr.bf16.gmra.mxu0 %v1305
        %v1349 = vpop.f32.mrf.mxu0
        %v1350 = vadd.f32 0.0, %v1349
        %v1351 = vpop.f32.mrf.mxu0
        %v1352 = vpop.f32.mrf.mxu0
        %v1353 = vpop.f32.mrf.mxu0
        %1354 = vdwg.mxu0
        %vm1355 = vcmask 1041408
        %v1356 = vsel %vm1355, %v1350, 0.0
        %v1357 = vrot.slane %v1356, 4
        %v1358 = vadd.f32 %v1356, %v1357
        %v1359 = vrot.slane %v1358, 2
        %v1360 = vadd.f32 %v1358, %v1359
        %v1361 = vrot.slane %v1360, 1
        %v1362 = vadd.f32 %v1360, %v1361
        %v1363 = vcvt.f32.s32.to.zero.pseudo %v1362
        %1364 = vst [vmem:[%s282] sm:$0x1] %v1363
        %s1365 = smul.u32 %s25, 128
        %v1366 = vlaneseq
        %v1367 = vshrl.u32 %v1366, 7
        %v1368 = vadd.s32 %v1367, 8
        %v1369 = vadd.s32 %v1367, 16
        %v1370 = vadd.s32 %v1367, 24
        %v1371 = vadd.s32 %v1367, 32
        %v1372 = vadd.s32 %v1367, 40
        %v1373 = vadd.s32 %v1367, 48
        %v1374 = vadd.s32 %v1367, 56
        %v1375 = vadd.s32 %v1367, 64
        %v1376 = vadd.s32 %v1367, 72
        %v1377 = vadd.s32 %v1367, 80
        %v1378 = vadd.s32 %v1367, 88
        %v1379 = vadd.s32 %v1367, 96
        %v1380 = vadd.s32 %v1367, 104
        %v1381 = vadd.s32 %v1367, 112
        %v1382 = vadd.s32 %v1367, 120
        %v1383 = vstv %s1365
        %v1384 = vadd.s32 %v1383, %v1367
        %v1385 = vadd.s32 %v1383, %v1368
        %v1386 = vadd.s32 %v1383, %v1369
        %v1387 = vadd.s32 %v1383, %v1370
        %v1388 = vadd.s32 %v1383, %v1371
        %v1389 = vadd.s32 %v1383, %v1372
        %v1390 = vadd.s32 %v1383, %v1373
        %v1391 = vadd.s32 %v1383, %v1374
        %v1392 = vadd.s32 %v1383, %v1375
        %v1393 = vadd.s32 %v1383, %v1376
        %v1394 = vadd.s32 %v1383, %v1377
        %v1395 = vadd.s32 %v1383, %v1378
        %v1396 = vadd.s32 %v1383, %v1379
        %v1397 = vadd.s32 %v1383, %v1380
        %v1398 = vadd.s32 %v1383, %v1381
        %v1399 = vadd.s32 %v1383, %v1382
        %v1400 = vsub.f32 %v1146, %v302
        %v1401 = vsub.f32 %v1149, %v303
        %v1402 = vsub.f32 %v1154, %v304
        %v1403 = vsub.f32 %v1157, %v305
        %v1404 = vsub.f32 %v1162, %v306
        %v1405 = vsub.f32 %v1165, %v307
        %v1406 = vsub.f32 %v1170, %v308
        %v1407 = vsub.f32 %v1173, %v309
        %v1408 = vsub.f32 %v1178, %v310
        %v1409 = vsub.f32 %v1181, %v311
        %v1410 = vsub.f32 %v1186, %v312
        %v1411 = vsub.f32 %v1189, %v313
        %v1412 = vsub.f32 %v1194, %v314
        %v1413 = vsub.f32 %v1197, %v315
        %v1414 = vsub.f32 %v1202, %v316
        %v1415 = vsub.f32 %v1205, %v317
        %vm1416 = vcmp.lt.s32.totalorder %v1384, 180
        %vm1417 = vcmp.lt.s32.totalorder %v1385, 180
        %vm1418 = vcmp.lt.s32.totalorder %v1386, 180
        %vm1419 = vcmp.lt.s32.totalorder %v1387, 180
        %vm1420 = vcmp.lt.s32.totalorder %v1388, 180
        %vm1421 = vcmp.lt.s32.totalorder %v1389, 180
        %vm1422 = vcmp.lt.s32.totalorder %v1390, 180
        %vm1423 = vcmp.lt.s32.totalorder %v1391, 180
        %vm1424 = vcmp.lt.s32.totalorder %v1392, 180
        %vm1425 = vcmp.lt.s32.totalorder %v1393, 180
        %vm1426 = vcmp.lt.s32.totalorder %v1394, 180
        %vm1427 = vcmp.lt.s32.totalorder %v1395, 180
        %vm1428 = vcmp.lt.s32.totalorder %v1396, 180
        %vm1429 = vcmp.lt.s32.totalorder %v1397, 180
        %vm1430 = vcmp.lt.s32.totalorder %v1398, 180
        %vm1431 = vcmp.lt.s32.totalorder %v1399, 180
        %v1432 = vmul.f32 %v1400, %v1400
        %v1433 = vmul.f32 %v1401, %v1401
        %v1434 = vmul.f32 %v1402, %v1402
        %v1435 = vmul.f32 %v1403, %v1403
        %v1436 = vmul.f32 %v1404, %v1404
        %v1437 = vmul.f32 %v1405, %v1405
        %v1438 = vmul.f32 %v1406, %v1406
        %v1439 = vmul.f32 %v1407, %v1407
        %v1440 = vmul.f32 %v1408, %v1408
        %v1441 = vmul.f32 %v1409, %v1409
        %v1442 = vmul.f32 %v1410, %v1410
        %v1443 = vmul.f32 %v1411, %v1411
        %v1444 = vmul.f32 %v1412, %v1412
        %v1445 = vmul.f32 %v1413, %v1413
        %v1446 = vmul.f32 %v1414, %v1414
        %v1447 = vmul.f32 %v1415, %v1415
        %v1448 = vsel %vm1416, 1, 0
        %v1449 = vsel %vm1417, 1, 0
        %v1450 = vsel %vm1418, 1, 0
        %v1451 = vsel %vm1419, 1, 0
        %v1452 = vsel %vm1420, 1, 0
        %v1453 = vsel %vm1421, 1, 0
        %v1454 = vsel %vm1422, 1, 0
        %v1455 = vsel %vm1423, 1, 0
        %v1456 = vsel %vm1424, 1, 0
        %v1457 = vsel %vm1425, 1, 0
        %v1458 = vsel %vm1426, 1, 0
        %v1459 = vsel %vm1427, 1, 0
        %v1460 = vsel %vm1428, 1, 0
        %v1461 = vsel %vm1429, 1, 0
        %v1462 = vsel %vm1430, 1, 0
        %v1463 = vsel %vm1431, 1, 0
        %vm1464 = vcmp.eq.s32.totalorder %v1448, 1
        %vm1465 = vcmp.eq.s32.totalorder %v1449, 1
        %vm1466 = vcmp.eq.s32.totalorder %v1450, 1
        %vm1467 = vcmp.eq.s32.totalorder %v1451, 1
        %vm1468 = vcmp.eq.s32.totalorder %v1452, 1
        %vm1469 = vcmp.eq.s32.totalorder %v1453, 1
        %vm1470 = vcmp.eq.s32.totalorder %v1454, 1
        %vm1471 = vcmp.eq.s32.totalorder %v1455, 1
        %vm1472 = vcmp.eq.s32.totalorder %v1456, 1
        %vm1473 = vcmp.eq.s32.totalorder %v1457, 1
        %vm1474 = vcmp.eq.s32.totalorder %v1458, 1
        %vm1475 = vcmp.eq.s32.totalorder %v1459, 1
        %vm1476 = vcmp.eq.s32.totalorder %v1460, 1
        %vm1477 = vcmp.eq.s32.totalorder %v1461, 1
        %vm1478 = vcmp.eq.s32.totalorder %v1462, 1
        %vm1479 = vcmp.eq.s32.totalorder %v1463, 1
        %v1480 = vsel %vm1464, %v1432, 0.0
        %v1481 = vsel %vm1465, %v1433, 0.0
        %v1482 = vsel %vm1466, %v1434, 0.0
        %v1483 = vsel %vm1467, %v1435, 0.0
        %v1484 = vsel %vm1468, %v1436, 0.0
        %v1485 = vsel %vm1469, %v1437, 0.0
        %v1486 = vsel %vm1470, %v1438, 0.0
        %v1487 = vsel %vm1471, %v1439, 0.0
        %v1488 = vsel %vm1472, %v1440, 0.0
        %v1489 = vsel %vm1473, %v1441, 0.0
        %v1490 = vsel %vm1474, %v1442, 0.0
        %v1491 = vsel %vm1475, %v1443, 0.0
        %v1492 = vsel %vm1476, %v1444, 0.0
        %v1493 = vsel %vm1477, %v1445, 0.0
        %v1494 = vsel %vm1478, %v1446, 0.0
        %v1495 = vsel %vm1479, %v1447, 0.0
        %v1496 = vsel %vm362, %v1480, 0.0
        %v1497 = vsel %vm362, %v1481, 0.0
        %v1498 = vadd.f32 %v1496, %v1497
        %v1499 = vsel %vm362, %v1482, 0.0
        %v1500 = vadd.f32 %v1498, %v1499
        %v1501 = vsel %vm362, %v1483, 0.0
        %v1502 = vadd.f32 %v1500, %v1501
        %v1503 = vsel %vm362, %v1484, 0.0
        %v1504 = vadd.f32 %v1502, %v1503
        %v1505 = vsel %vm362, %v1485, 0.0
        %v1506 = vadd.f32 %v1504, %v1505
        %v1507 = vsel %vm362, %v1486, 0.0
        %v1508 = vadd.f32 %v1506, %v1507
        %v1509 = vsel %vm362, %v1487, 0.0
        %v1510 = vadd.f32 %v1508, %v1509
        %v1511 = vsel %vm362, %v1488, 0.0
        %v1512 = vadd.f32 %v1510, %v1511
        %v1513 = vsel %vm362, %v1489, 0.0
        %v1514 = vadd.f32 %v1512, %v1513
        %v1515 = vsel %vm362, %v1490, 0.0
        %v1516 = vadd.f32 %v1514, %v1515
        %v1517 = vsel %vm362, %v1491, 0.0
        %v1518 = vadd.f32 %v1516, %v1517
        %v1519 = vsel %vm362, %v1492, 0.0
        %v1520 = vadd.f32 %v1518, %v1519
        %v1521 = vsel %vm362, %v1493, 0.0
        %v1522 = vadd.f32 %v1520, %v1521
        %v1523 = vsel %vm362, %v1494, 0.0
        %v1524 = vadd.f32 %v1522, %v1523
        %v1525 = vsel %vm362, %v1495, 0.0
        %v1526 = vadd.f32 %v1524, %v1525
        %v1527 = vrot.slane %v1526, 4
        %v1528 = vadd.f32 %v1526, %v1527
        %v1529 = vrot.slane %v1528, 2
        %v1530 = vadd.f32 %v1528, %v1529
        %v1531 = vrot.slane %v1530, 1
        %v1532 = vadd.f32 %v1530, %v1531
        %vm1533 = vcmask 253952
        %1534 = vst.msk [vmem:[%s288] sm:$0x1] %vm1533, %v1532
        %s1535 = smul.u32 16, %s25
        %p1536 = scmp.lt.s32.totalorder %s1535, 31
        %s1537 = scalar_select %p1536, %s1535, 31
        %s1538 = smul.addr %s1537, 4
        %s1539 = scalar_lea.vmem %s5, %s1538
        %s1540 = sand.u32 %s169, 1
        %s1541 = scalar_lea.sflag [#allocation3], %s1540
        %s1542 = sand.u32 %s169, 1
        %s1543 = scalar_lea.vmem [#allocation2], %s1542
        %s1544 = sand.u32 %s195, 1
        %s1545 = scalar_lea.sflag [#allocation5], %s1544
        %s1546 = sand.u32 %s195, 1
        %s1547 = scalar_lea.vmem [#allocation4], %s1546
        // Predicated region
        $region41: #{tpu_custom_call.1} parent=39 // pred_check
          %p1548 = pneg %p153
        $region42: #{tpu_custom_call.1} parent=39 // pred_check_branch
          %1550 = sbr.rel (%p1548) target = $region44
        $region43: #{tpu_custom_call.1} parent=39 // pred_region
          %s1551 = smul.u32 16, %s25
        $region44: #{tpu_custom_call.1} parent=39 // pred_fallthru
          _
        // Predicated region
        $region45: #{tpu_custom_call.1} parent=39 // pred_check
          %p1552 = pneg %p179
        $region46: #{tpu_custom_call.1} parent=39 // pred_check_branch
          %1554 = sbr.rel (%p1552) target = $region48
        $region47: #{tpu_custom_call.1} parent=39 // pred_region
          %s1556 = ssub.s32 16, 16
          %1557 = vsyncadd %s1541, %s1556
          %s1558 = smul.addr %s25, 16
          %s1559 = scalar_lea.hbm %s6, %s1558
          %s1561 = sshll.u32 %s1543, 4
          %s1562 = int_to_ptr.vmem [resolvable:$true] %s1561
          %1564 = dma.vmem_to_hbm [thread:$0]  %s1562, 16, %s1559, %s1541
        $region48: #{tpu_custom_call.1} parent=39 // pred_fallthru
          _
        // Predicated region
        $region49: #{tpu_custom_call.1} parent=39 // pred_check
          %p1565 = pneg %p205
        $region50: #{tpu_custom_call.1} parent=39 // pred_check_branch
          %1567 = sbr.rel (%p1565) target = $region52
        $region51: #{tpu_custom_call.1} parent=39 // pred_region
          %s1569 = ssub.s32 16, 16
          %1570 = vsyncadd %s1545, %s1569
          %s1571 = smul.addr %s25, 16
          %s1572 = scalar_lea.hbm %s7, %s1571
          %s1574 = sshll.u32 %s1547, 4
          %s1575 = int_to_ptr.vmem [resolvable:$true] %s1574
          %1577 = dma.vmem_to_hbm [thread:$0]  %s1575, 16, %s1572, %s1545
        $region52: #{tpu_custom_call.1} parent=39 // pred_fallthru
          _
      $region40: #{tpu_custom_call.1} parent=5 // pred_fallthru
        _
      %p1578 = scmp.le.s32.totalorder 2, %s20
      // Predicated region
      $region53: #{tpu_custom_call.1} parent=5 // pred_check
        %p1579 = pneg %p1578
      $region54: #{tpu_custom_call.1} parent=5 // pred_check_branch
        %1581 = sbr.rel (%p1579) target = $region56
      $region55: #{tpu_custom_call.1} parent=5 // pred_region
        %s1582 = ssub.s32 %s20, 2
        // Predicated region
        $region57: #{tpu_custom_call.1} parent=55 // pred_check
          %p1583 = pneg %p159
        $region58: #{tpu_custom_call.1} parent=55 // pred_check_branch
          %1585 = sbr.rel (%p1583) target = $region60
        $region59: #{tpu_custom_call.1} parent=55 // pred_region
          %s1586 = smul.u32 16, %s26
          %p1587 = scmp.lt.s32.totalorder %s1586, 31
          %s1588 = scalar_select %p1587, %s1586, 31
          %s1589 = smul.addr %s1588, 4
          %s1590 = scalar_lea.vmem %s5, %s1589
        $region60: #{tpu_custom_call.1} parent=55 // pred_fallthru
          _
        // Predicated region
        $region61: #{tpu_custom_call.1} parent=55 // pred_check
          %p1591 = pneg %p185
        $region62: #{tpu_custom_call.1} parent=55 // pred_check_branch
          %1593 = sbr.rel (%p1591) target = $region64
        $region63: #{tpu_custom_call.1} parent=55 // pred_region
          %s1594 = sand.u32 %s170, 1
          %s1595 = scalar_lea.sflag [#allocation3], %s1594
          %s1596 = sand.u32 %s170, 1
          %s1597 = scalar_lea.vmem [#allocation2], %s1596
          %1598 = dma.done %s1595, 16
        $region64: #{tpu_custom_call.1} parent=55 // pred_fallthru
          _
        // Predicated region
        $region65: #{tpu_custom_call.1} parent=55 // pred_check
          %p1599 = pneg %p211
        $region66: #{tpu_custom_call.1} parent=55 // pred_check_branch
          %1601 = sbr.rel (%p1599) target = $region68
        $region67: #{tpu_custom_call.1} parent=55 // pred_region
          %s1602 = sand.u32 %s196, 1
          %s1603 = scalar_lea.sflag [#allocation5], %s1602
          %s1604 = sand.u32 %s196, 1
          %s1605 = scalar_lea.vmem [#allocation4], %s1604
          %1606 = dma.done %s1603, 16
        $region68: #{tpu_custom_call.1} parent=55 // pred_fallthru
          _
      $region56: #{tpu_custom_call.1} parent=5 // pred_fallthru
        _
    $region6: #{tpu_custom_call.1} parent=1 // loop_footer
      %s24 = sadd.s32 1, %s20
    $region7: #{tpu_custom_call.1} parent=1 // loop_footer_branch
      %19 = sbr.rel target = $region3
    $region8: #{tpu_custom_call.1} parent=1 // loop_exit
      _
    %1607 = vsyncpa [#allocation3], 1
    %s1608 = scalar_lea.sflag [#allocation3], 1
    %1609 = vsyncpa %s1608, 1
    %1610 = vsyncpa [#allocation5], 1
    %s1611 = scalar_lea.sflag [#allocation5], 1
    %1612 = vsyncpa %s1611, 1

// kernel: tpu_custom_call.1
$region0: #{tpu_custom_call.1}
  #allocation0 [shape = 'u32[]', space=smem, size = 0x4, offset = 0x4, fixed_abs, tag = 'smem constant byte address 0x4 - core index']
  #allocation1 [shape = 'u32[144,128]{1,0:T(1,128)}', space=vmem, size = 0x12000, scoped, tag = 'internal scratch']
  %s0 = inlined_call_operand.vmem [shape: f32[256,32], index: 0, kind: input, shape index: {}]
  %s1 = inlined_call_operand.vmem [shape: bf16[32,256], index: 1, kind: input, shape index: {}]
  %s2 = inlined_call_operand.vmem [shape: bf16[256,32], index: 2, kind: input, shape index: {}]
  %s3 = inlined_call_operand.vmem [shape: f32[1,256], index: 3, kind: input, shape index: {}]
  %s4 = inlined_call_operand.vmem [shape: bf16[2,256], index: 4, kind: input, shape index: {}]
  %s5 = inlined_call_operand.vmem [shape: bf16[256,32], index: 5, kind: output, shape index: {0}]
  %s6 = inlined_call_operand.hbm [shape: s32[2,1,128], index: 6, kind: output, shape index: {1}]
  %s7 = inlined_call_operand.hbm [shape: f32[2,1,32], index: 7, kind: output, shape index: {2}]
  %8 = xla_tuple %s5, %s6, %s7
  %s9 = sld [smem:[#allocation0]]
  $region69: #{tpu_custom_call.1} parent=0
    _
  %s11 = ssub.s32 1, %s9
  %s12 = scalar_select 0, %s11, %s9
  $region1: #{tpu_custom_call.1} parent=0
    #allocation2 [shape = 'u8[1024]{0}', space=vmem, size = 0x400, scoped, tag = 'output window, operand 1']
    #allocation3 [shape = 's32[2]{0}', space=sflag, size = 0x8, scoped, tag = 'scoped memory for tpu_custom_call.1']
    #allocation4 [shape = 'u8[1024]{0}', space=vmem, size = 0x400, scoped, tag = 'output window, operand 2']
    #allocation5 [shape = 's32[2]{0}', space=sflag, size = 0x8, scoped, tag = 'scoped memory for tpu_custom_call.1']
    %13 = vsyncpa [#allocation3], 0
    %s14 = scalar_lea.sflag [#allocation3], 1
    %15 = vsyncpa %s14, 0
    %16 = vsyncpa [#allocation5], 0
    %s17 = scalar_lea.sflag [#allocation5], 1
    %18 = vsyncpa %s17, 0
    loop: start=0, step=1, limit=4
    $region2: #{tpu_custom_call.1} parent=1 // loop_pre_header
      _
    $region3: #{tpu_custom_call.1} parent=1 // loop_header
      %s20 = sphi 0, %s24
      %p21 = scmp.ge.s32.totalorder %s20, 4
      %s30 = sphi 0, %s32
      %s33 = sphi 0, %s30
      %s34 = sphi 0, %s33
      %s50 = sphi 0, %s34
      %s54 = sphi 0, %s54
      %s56 = sphi 0, %s54
      %s57 = sphi 0, %s56
      %s71 = sphi 0, %s57
      %s75 = sphi 0, %s75
      %s77 = sphi 0, %s75
      %s78 = sphi 0, %s77
      %s92 = sphi 0, %s78
      %s96 = sphi 0, %s96
      %s98 = sphi 0, %s96
      %s99 = sphi 0, %s98
      %s113 = sphi 0, %s99
      %s117 = sphi 0, %s117
      %s119 = sphi 0, %s117
      %s120 = sphi 0, %s119
      %s134 = sphi 0, %s120
      %s140 = sphi 0, %s142
      %s143 = sphi 0, %s140
      %s144 = sphi 0, %s143
      %s160 = sphi 0, %s144
      %s166 = sphi 0, %s168
      %s169 = sphi 0, %s166
      %s170 = sphi 0, %s169
      %s186 = sphi 0, %s170
      %s192 = sphi 0, %s194
      %s195 = sphi 0, %s192
      %s196 = sphi 0, %s195
      %s212 = sphi 0, %s196
    $region4: #{tpu_custom_call.1} parent=1 // loop_header_branch
      %23 = sbr.rel (%p21) target = $region8
    $region5: #{tpu_custom_call.1} parent=1 // loop_body
      %s25 = ssub.s32 %s20, 1
      %s26 = ssub.s32 %s20, 2
      %s27 = sadd.s32 %s20, 1
      %s28 = ssub.s32 %s20, %s27
      %p29 = scmp.eq.s32.totalorder %s28, 0
      %s31 = sadd.s32 %s30, 1
      %s32 = scalar_select %p29, %s30, %s31
      %p35 = pneg %p29
      %p36 = scmp.eq.s32.totalorder %s20, 1
      %p37 = por %p35, %p36
      %p38 = scmp.ne.s32.totalorder %s30, %s33
      %p39 = scmp.eq.s32.totalorder %s20, 0
      %p40 = por %p38, %p39
      %p41 = scmp.ne.s32.totalorder %s30, %s33
      %p42 = scmp.eq.s32.totalorder %s25, 1
      %p43 = por %p41, %p42
      %p44 = scmp.ne.s32.totalorder %s33, %s34
      %p45 = scmp.eq.s32.totalorder %s25, 0
      %p46 = por %p44, %p45
      %p47 = scmp.ne.s32.totalorder %s33, %s34
      %p48 = scmp.eq.s32.totalorder %s26, 1
      %p49 = por %p47, %p48
      %p51 = scmp.ne.s32.totalorder %s34, %s50
      %p52 = scmp.eq.s32.totalorder %s26, 0
      %p53 = por %p51, %p52
      %s55 = sadd.s32 %s54, 1
      %p58 = scmp.eq.s32.totalorder %s20, 1
      %p59 = scmp.ne.s32.totalorder %s54, %s56
      %p60 = scmp.eq.s32.totalorder %s20, 0
      %p61 = por %p59, %p60
      %p62 = scmp.ne.s32.totalorder %s54, %s56
      %p63 = scmp.eq.s32.totalorder %s25, 1
      %p64 = por %p62, %p63
      %p65 = scmp.ne.s32.totalorder %s56, %s57
      %p66 = scmp.eq.s32.totalorder %s25, 0
      %p67 = por %p65, %p66
      %p68 = scmp.ne.s32.totalorder %s56, %s57
      %p69 = scmp.eq.s32.totalorder %s26, 1
      %p70 = por %p68, %p69
      %p72 = scmp.ne.s32.totalorder %s57, %s71
      %p73 = scmp.eq.s32.totalorder %s26, 0
      %p74 = por %p72, %p73
      %s76 = sadd.s32 %s75, 1
      %p79 = scmp.eq.s32.totalorder %s20, 1
      %p80 = scmp.ne.s32.totalorder %s75, %s77
      %p81 = scmp.eq.s32.totalorder %s20, 0
      %p82 = por %p80, %p81
      %p83 = scmp.ne.s32.totalorder %s75, %s77
      %p84 = scmp.eq.s32.totalorder %s25, 1
      %p85 = por %p83, %p84
      %p86 = scmp.ne.s32.totalorder %s77, %s78
      %p87 = scmp.eq.s32.totalorder %s25, 0
      %p88 = por %p86, %p87
      %p89 = scmp.ne.s32.totalorder %s77, %s78
      %p90 = scmp.eq.s32.totalorder %s26, 1
      %p91 = por %p89, %p90
      %p93 = scmp.ne.s32.totalorder %s78, %s92
      %p94 = scmp.eq.s32.totalorder %s26, 0
      %p95 = por %p93, %p94
      %s97 = sadd.s32 %s96, 1
      %p100 = scmp.eq.s32.totalorder %s20, 1
      %p101 = scmp.ne.s32.totalorder %s96, %s98
      %p102 = scmp.eq.s32.totalorder %s20, 0
      %p103 = por %p101, %p102
      %p104 = scmp.ne.s32.totalorder %s96, %s98
      %p105 = scmp.eq.s32.totalorder %s25, 1
      %p106 = por %p104, %p105
      %p107 = scmp.ne.s32.totalorder %s98, %s99
      %p108 = scmp.eq.s32.totalorder %s25, 0
      %p109 = por %p107, %p108
      %p110 = scmp.ne.s32.totalorder %s98, %s99
      %p111 = scmp.eq.s32.totalorder %s26, 1
      %p112 = por %p110, %p111
      %p114 = scmp.ne.s32.totalorder %s99, %s113
      %p115 = scmp.eq.s32.totalorder %s26, 0
      %p116 = por %p114, %p115
      %s118 = sadd.s32 %s117, 1
      %p121 = scmp.eq.s32.totalorder %s20, 1
      %p122 = scmp.ne.s32.totalorder %s117, %s119
      %p123 = scmp.eq.s32.totalorder %s20, 0
      %p124 = por %p122, %p123
      %p125 = scmp.ne.s32.totalorder %s117, %s119
      %p126 = scmp.eq.s32.totalorder %s25, 1
      %p127 = por %p125, %p126
      %p128 = scmp.ne.s32.totalorder %s119, %s120
      %p129 = scmp.eq.s32.totalorder %s25, 0
      %p130 = por %p128, %p129
      %p131 = scmp.ne.s32.totalorder %s119, %s120
      %p132 = scmp.eq.s32.totalorder %s26, 1
      %p133 = por %p131, %p132
      %p135 = scmp.ne.s32.totalorder %s120, %s134
      %p136 = scmp.eq.s32.totalorder %s26, 0
      %p137 = por %p135, %p136
      %s138 = ssub.s32 %s20, %s27
      %p139 = scmp.eq.s32.totalorder %s138, 0
      %s141 = sadd.s32 %s140, 1
      %s142 = scalar_select %p139, %s140, %s141
      %p145 = pneg %p139
      %p146 = scmp.eq.s32.totalorder %s20, 1
      %p147 = por %p145, %p146
      %p148 = scmp.ne.s32.totalorder %s140, %s143
      %p149 = scmp.eq.s32.totalorder %s20, 0
      %p150 = por %p148, %p149
      %p151 = scmp.ne.s32.totalorder %s140, %s143
      %p152 = scmp.eq.s32.totalorder %s25, 1
      %p153 = por %p151, %p152
      %p154 = scmp.ne.s32.totalorder %s143, %s144
      %p155 = scmp.eq.s32.totalorder %s25, 0
      %p156 = por %p154, %p155
      %p157 = scmp.ne.s32.totalorder %s143, %s144
      %p158 = scmp.eq.s32.totalorder %s26, 1
      %p159 = por %p157, %p158
      %p161 = scmp.ne.s32.totalorder %s144, %s160
      %p162 = scmp.eq.s32.totalorder %s26, 0
      %p163 = por %p161, %p162
      %s164 = ssub.s32 %s20, %s27
      %p165 = scmp.eq.s32.totalorder %s164, 0
      %s167 = sadd.s32 %s166, 1
      %s168 = scalar_select %p165, %s166, %s167
      %p171 = pneg %p165
      %p172 = scmp.eq.s32.totalorder %s20, 1
      %p173 = por %p171, %p172
      %p174 = scmp.ne.s32.totalorder %s166, %s169
      %p175 = scmp.eq.s32.totalorder %s20, 0
      %p176 = por %p174, %p175
      %p177 = scmp.ne.s32.totalorder %s166, %s169
      %p178 = scmp.eq.s32.totalorder %s25, 1
      %p179 = por %p177, %p178
      %p180 = scmp.ne.s32.totalorder %s169, %s170
      %p181 = scmp.eq.s32.totalorder %s25, 0
      %p182 = por %p180, %p181
      %p183 = scmp.ne.s32.totalorder %s169, %s170
      %p184 = scmp.eq.s32.totalorder %s26, 1
      %p185 = por %p183, %p184
      %p187 = scmp.ne.s32.totalorder %s170, %s186
      %p188 = scmp.eq.s32.totalorder %s26, 0
      %p189 = por %p187, %p188
      %s190 = ssub.s32 %s20, %s27
      %p191 = scmp.eq.s32.totalorder %s190, 0
      %s193 = sadd.s32 %s192, 1
      %s194 = scalar_select %p191, %s192, %s193
      %p197 = pneg %p191
      %p198 = scmp.eq.s32.totalorder %s20, 1
      %p199 = por %p197, %p198
      %p200 = scmp.ne.s32.totalorder %s192, %s195
      %p201 = scmp.eq.s32.totalorder %s20, 0
      %p202 = por %p200, %p201
      %p203 = scmp.ne.s32.totalorder %s192, %s195
      %p204 = scmp.eq.s32.totalorder %s25, 1
      %p205 = por %p203, %p204
      %p206 = scmp.ne.s32.totalorder %s195, %s196
      %p207 = scmp.eq.s32.totalorder %s25, 0
      %p208 = por %p206, %p207
      %p209 = scmp.ne.s32.totalorder %s195, %s196
      %p210 = scmp.eq.s32.totalorder %s26, 1
      %p211 = por %p209, %p210
      %p213 = scmp.ne.s32.totalorder %s196, %s212
      %p214 = scmp.eq.s32.totalorder %s26, 0
      %p215 = por %p213, %p214
      %p216 = scmp.le.s32.totalorder 1, %s20
      %p217 = scmp.lt.s32.totalorder %s20, 3
      %p218 = pnand %p216, %p217
      %p219 = pneg %p218
      // Predicated region
      $region9: #{tpu_custom_call.1} parent=5 // pred_check
        _
      $region10: #{tpu_custom_call.1} parent=5 // pred_check_branch
        %221 = sbr.rel (%p218) target = $region12
      $region11: #{tpu_custom_call.1} parent=5 // pred_region
        %s222 = ssub.s32 %s20, 1
        // Predicated region
        $region13: #{tpu_custom_call.1} parent=11 // pred_check
          %p223 = pneg %p67
        $region14: #{tpu_custom_call.1} parent=11 // pred_check_branch
          %225 = sbr.rel (%p223) target = $region16
        $region15: #{tpu_custom_call.1} parent=11 // pred_region
          _
        $region16: #{tpu_custom_call.1} parent=11 // pred_fallthru
          _
        // Predicated region
        $region17: #{tpu_custom_call.1} parent=11 // pred_check
          %p226 = pneg %p88
        $region18: #{tpu_custom_call.1} parent=11 // pred_check_branch
          %228 = sbr.rel (%p226) target = $region20
        $region19: #{tpu_custom_call.1} parent=11 // pred_region
          _
        $region20: #{tpu_custom_call.1} parent=11 // pred_fallthru
          _
        // Predicated region
        $region21: #{tpu_custom_call.1} parent=11 // pred_check
          %p229 = pneg %p109
        $region22: #{tpu_custom_call.1} parent=11 // pred_check_branch
          %231 = sbr.rel (%p229) target = $region24
        $region23: #{tpu_custom_call.1} parent=11 // pred_region
          _
        $region24: #{tpu_custom_call.1} parent=11 // pred_fallthru
          _
        // Predicated region
        $region25: #{tpu_custom_call.1} parent=11 // pred_check
          %p232 = pneg %p130
        $region26: #{tpu_custom_call.1} parent=11 // pred_check_branch
          %234 = sbr.rel (%p232) target = $region28
        $region27: #{tpu_custom_call.1} parent=11 // pred_region
          _
        $region28: #{tpu_custom_call.1} parent=11 // pred_fallthru
          _
      $region12: #{tpu_custom_call.1} parent=5 // pred_fallthru
        _
      %p235 = scmp.lt.s32.totalorder %s20, 2
      // Predicated region
      $region29: #{tpu_custom_call.1} parent=5 // pred_check
        %p236 = pneg %p235
      $region30: #{tpu_custom_call.1} parent=5 // pred_check_branch
        %238 = sbr.rel (%p236) target = $region32
      $region31: #{tpu_custom_call.1} parent=5 // pred_region
        // Predicated region
        $region33: #{tpu_custom_call.1} parent=31 // pred_check
          %p239 = pneg %p40
        $region34: #{tpu_custom_call.1} parent=31 // pred_check_branch
          %241 = sbr.rel (%p239) target = $region36
        $region35: #{tpu_custom_call.1} parent=31 // pred_region
          %s242 = smul.u32 16, %s20
          %p243 = scmp.lt.s32.totalorder %s242, 31
          %s244 = scalar_select %p243, %s242, 31
          %s245 = smul.addr %s244, 8
          %s246 = scalar_lea.vmem %s0, %s245
          %s247 = smul.u32 16, %s20
        $region36: #{tpu_custom_call.1} parent=31 // pred_fallthru
          _
      $region32: #{tpu_custom_call.1} parent=5 // pred_fallthru
        _
      %p248 = scmp.le.s32.totalorder 1, %s20
      %p249 = scmp.lt.s32.totalorder %s20, 3
      %p250 = pnand %p248, %p249
      %p251 = pneg %p250
      // Predicated region
      $region37: #{tpu_custom_call.1} parent=5 // pred_check
        _
      $region38: #{tpu_custom_call.1} parent=5 // pred_check_branch
        %253 = sbr.rel (%p250) target = $region40
      $region39: #{tpu_custom_call.1} parent=5 // pred_region
        %s254 = ssub.s32 %s20, 1
        %s255 = smul.u32 16, %s25
        %p256 = scmp.lt.s32.totalorder %s255, 31
        %s257 = scalar_select %p256, %s255, 31
        %s258 = smul.addr %s257, 8
        %s259 = scalar_lea.vmem %s0, %s258
        %p260 = pneg %p46
        %p261 = pneg %p43
        %p262 = pneg %p67
        %p263 = pneg %p64
        %p264 = pneg %p88
        %p265 = pneg %p85
        %p266 = pneg %p109
        %p267 = pneg %p106
        %p268 = pneg %p130
        %p269 = pneg %p127
        %p270 = pneg %p156
        %p271 = pneg %p153
        %s272 = smul.u32 16, %s25
        %p273 = scmp.lt.s32.totalorder %s272, 31
        %s274 = scalar_select %p273, %s272, 31
        %s275 = smul.addr %s274, 4
        %s276 = scalar_lea.vmem %s5, %s275
        %p277 = pneg %p182
        %p278 = pneg %p179
        %s279 = sand.u32 %s169, 1
        %s280 = scalar_lea.sflag [#allocation3], %s279
        %s281 = sand.u32 %s169, 1
        %s282 = scalar_lea.vmem [#allocation2], %s281
        %p283 = pneg %p208
        %p284 = pneg %p205
        %s285 = sand.u32 %s195, 1
        %s286 = scalar_lea.sflag [#allocation5], %s285
        %s287 = sand.u32 %s195, 1
        %s288 = scalar_lea.vmem [#allocation4], %s287
        %s289 = smul.u32 16, %s25
        %p290 = scmp.lt.s32.totalorder %s289, 31
        %s291 = scalar_select %p290, %s289, 31
        %s292 = smul.addr %s291, 8
        %s293 = scalar_lea.vmem %s0, %s292
        %s294 = smul.u32 16, %s25
        %s295 = smul.u32 16, %s25
        %p296 = scmp.lt.s32.totalorder %s295, 31
        %s297 = scalar_select %p296, %s295, 31
        %s298 = smul.addr %s297, 4
        %s299 = scalar_lea.vmem %s5, %s298
        %s300 = smul.u32 16, %s25
        %v302 = vld [vmem:[%s293] sm:$0xff]
        %v303 = vld [vmem:[%s293 + $0x8] sm:$0xff]
        %v304 = vld [vmem:[%s293 + $0x10] sm:$0xff]
        %v305 = vld [vmem:[%s293 + $0x18] sm:$0xff]
        %v306 = vld [vmem:[%s293 + $0x20] sm:$0xff]
        %v307 = vld [vmem:[%s293 + $0x28] sm:$0xff]
        %v308 = vld [vmem:[%s293 + $0x30] sm:$0xff]
        %v309 = vld [vmem:[%s293 + $0x38] sm:$0xff]
        %v310 = vld [vmem:[%s293 + $0x40] sm:$0xff]
        %v311 = vld [vmem:[%s293 + $0x48] sm:$0xff]
        %v312 = vld [vmem:[%s293 + $0x50] sm:$0xff]
        %v313 = vld [vmem:[%s293 + $0x58] sm:$0xff]
        %v314 = vld [vmem:[%s293 + $0x60] sm:$0xff]
        %v315 = vld [vmem:[%s293 + $0x68] sm:$0xff]
        %v316 = vld [vmem:[%s293 + $0x70] sm:$0xff]
        %v317 = vld [vmem:[%s293 + $0x78] sm:$0xff]
        %v318 = vpack.c.bf16 %v303, %v302
        %v319 = vpack.c.bf16 %v305, %v304
        %v320 = vpack.c.bf16 %v307, %v306
        %v321 = vpack.c.bf16 %v309, %v308
        %v322 = vpack.c.bf16 %v311, %v310
        %v323 = vpack.c.bf16 %v313, %v312
        %v324 = vpack.c.bf16 %v315, %v314
        %v325 = vpack.c.bf16 %v317, %v316
        %v326 = vld [vmem:[%s1] sm:$0xff]
        %v327 = vld [vmem:[%s1 + $0x8] sm:$0xff]
        %v328 = vld [vmem:[%s1 + $0x10] sm:$0xff]
        %v329 = vld [vmem:[%s1 + $0x18] sm:$0xff]
        %v330 = vld [vmem:[%s3] sm:$0x3]
        %v332 = vlaneseq
        %v333 = vshrl.u32 %v332, 7
        %v334 = vsub.s32 0, %v333
        %v335 = vrot.slane %v330, %v334
        %v336 = vlaneseq
        %v337 = vshrl.u32 %v336, 7
        %v338 = vsub.s32 1, %v337
        %v339 = vrot.slane %v330, %v338
        %v346 = vunpack.c.l.b16 %v326
        %v347 = vunpack.c.h.b16 %v326
        %v348 = vunpack.c.l.b16 %v327
        %v349 = vunpack.c.h.b16 %v327
        %v350 = vunpack.c.l.b16 %v328
        %v351 = vunpack.c.h.b16 %v328
        %v352 = vunpack.c.l.b16 %v329
        %v353 = vunpack.c.h.b16 %v329
        %v354 = vpack.c.b16 %v348, %v346
        %v355 = vpack.c.b16 %v349, %v347
        %v356 = vpack.c.b16 %v352, %v350
        %v357 = vpack.c.b16 %v353, %v351
        %vm362 = vcmask 261120
        %v364 = vsel %vm362, %v318, 0
        %v367 = vsel %vm362, %v319, 0
        %v370 = vsel %vm362, %v320, 0
        %v373 = vsel %vm362, %v321, 0
        %v376 = vsel %vm362, %v322, 0
        %v379 = vsel %vm362, %v323, 0
        %v382 = vsel %vm362, %v324, 0
        %v385 = vsel %vm362, %v325, 0
        %387 = vmatprep.subr.bf16.mxu0 0
        %388 = vmatpush1.bf16.msra.mxu0 0
        %389 = vmatprep.subr.bf16.mxu0 0
        %390 = vmatpush1.bf16.msra.mxu0 0
        %391 = vmatprep.subr.bf16.mxu0 0
        %392 = vmatpush1.bf16.msra.mxu0 0
        %393 = vmatprep.subr.bf16.mxu0 0
        %394 = vmatpush1.bf16.msra.mxu0 0
        %395 = vmatprep.subr.bf16.mxu0 0
        %396 = vmatpush1.bf16.msra.mxu0 0
        %397 = vmatprep.subr.bf16.mxu0 0
        %398 = vmatpush1.bf16.msra.mxu0 0
        %399 = vmatprep.subr.bf16.mxu0 %v357
        %400 = vmatpush1.bf16.msra.mxu0 %v356
        %401 = vmatprep.subr.bf16.mxu0 %v355
        %402 = vmatpush1.bf16.msra.mxu0 %v354
        %403 = vmatprep.subr.bf16.mxu0 0
        %404 = vmatpush2.bf16.msra.mxu0 0
        %405 = vmatprep.subr.bf16.mxu0 0
        %406 = vmatpush2.bf16.msra.mxu0 0
        %407 = vmatprep.subr.bf16.mxu0 0
        %408 = vmatpush2.bf16.msra.mxu0 0
        %409 = vmatprep.subr.bf16.mxu0 0
        %410 = vmatpush2.bf16.msra.mxu0 0
        %411 = vmatprep.subr.bf16.mxu0 0
        %412 = vmatpush2.bf16.msra.mxu0 0
        %413 = vmatprep.subr.bf16.mxu0 0
        %414 = vmatpush2.bf16.msra.mxu0 0
        %415 = vmatprep.subr.bf16.mxu0 0
        %416 = vmatpush2.bf16.msra.mxu0 0
        %417 = vmatprep.subr.bf16.mxu0 0
        %418 = vmatpush2.bf16.msra.mxu0 0
        %419 = vmatprep.mubr.bf16.mxu0 0
        %420 = vmatmul.mubr.bf16.gmra.mxu0 %v364
        %v421 = vpop.f32.mrf.mxu0
        %v422 = vadd.f32 %v335, %v421
        %v423 = vpop.f32.mrf.mxu0
        %v424 = vadd.f32 %v339, %v423
        %v425 = vpop.f32.mrf.mxu0
        %v426 = vadd.f32 %v335, %v425
        %v427 = vpop.f32.mrf.mxu0
        %v428 = vadd.f32 %v339, %v427
        %429 = vmatprep.mubr.bf16.mxu0 0
        %430 = vmatmul.mubr.bf16.gmra.mxu0 %v367
        %v431 = vpop.f32.mrf.mxu0
        %v432 = vadd.f32 %v335, %v431
        %v433 = vpop.f32.mrf.mxu0
        %v434 = vadd.f32 %v339, %v433
        %v435 = vpop.f32.mrf.mxu0
        %v436 = vadd.f32 %v335, %v435
        %v437 = vpop.f32.mrf.mxu0
        %v438 = vadd.f32 %v339, %v437
        %439 = vmatprep.mubr.bf16.mxu0 0
        %440 = vmatmul.mubr.bf16.gmra.mxu0 %v370
        %v441 = vpop.f32.mrf.mxu0
        %v442 = vadd.f32 %v335, %v441
        %v443 = vpop.f32.mrf.mxu0
        %v444 = vadd.f32 %v339, %v443
        %v445 = vpop.f32.mrf.mxu0
        %v446 = vadd.f32 %v335, %v445
        %v447 = vpop.f32.mrf.mxu0
        %v448 = vadd.f32 %v339, %v447
        %449 = vmatprep.mubr.bf16.mxu0 0
        %450 = vmatmul.mubr.bf16.gmra.mxu0 %v373
        %v451 = vpop.f32.mrf.mxu0
        %v452 = vadd.f32 %v335, %v451
        %v453 = vpop.f32.mrf.mxu0
        %v454 = vadd.f32 %v339, %v453
        %v455 = vpop.f32.mrf.mxu0
        %v456 = vadd.f32 %v335, %v455
        %v457 = vpop.f32.mrf.mxu0
        %v458 = vadd.f32 %v339, %v457
        %459 = vmatprep.mubr.bf16.mxu0 0
        %460 = vmatmul.mubr.bf16.gmra.mxu0 %v376
        %v461 = vpop.f32.mrf.mxu0
        %v462 = vadd.f32 %v335, %v461
        %v463 = vpop.f32.mrf.mxu0
        %v464 = vadd.f32 %v339, %v463
        %v465 = vpop.f32.mrf.mxu0
        %v466 = vadd.f32 %v335, %v465
        %v467 = vpop.f32.mrf.mxu0
        %v468 = vadd.f32 %v339, %v467
        %469 = vmatprep.mubr.bf16.mxu0 0
        %470 = vmatmul.mubr.bf16.gmra.mxu0 %v379
        %v471 = vpop.f32.mrf.mxu0
        %v472 = vadd.f32 %v335, %v471
        %v473 = vpop.f32.mrf.mxu0
        %v474 = vadd.f32 %v339, %v473
        %v475 = vpop.f32.mrf.mxu0
        %v476 = vadd.f32 %v335, %v475
        %v477 = vpop.f32.mrf.mxu0
        %v478 = vadd.f32 %v339, %v477
        %479 = vmatprep.mubr.bf16.mxu0 0
        %480 = vmatmul.mubr.bf16.gmra.mxu0 %v382
        %v481 = vpop.f32.mrf.mxu0
        %v482 = vadd.f32 %v335, %v481
        %v483 = vpop.f32.mrf.mxu0
        %v484 = vadd.f32 %v339, %v483
        %v485 = vpop.f32.mrf.mxu0
        %v486 = vadd.f32 %v335, %v485
        %v487 = vpop.f32.mrf.mxu0
        %v488 = vadd.f32 %v339, %v487
        %489 = vmatprep.mubr.bf16.mxu0 0
        %490 = vmatmul.mubr.bf16.gmra.mxu0 %v385
        %v491 = vpop.f32.mrf.mxu0
        %v492 = vadd.f32 %v335, %v491
        %v493 = vpop.f32.mrf.mxu0
        %v494 = vadd.f32 %v339, %v493
        %v495 = vpop.f32.mrf.mxu0
        %v496 = vadd.f32 %v335, %v495
        %v497 = vpop.f32.mrf.mxu0
        %v498 = vadd.f32 %v339, %v497
        %499 = vdwg.mxu0
        %v500 = vmax.f32 %v422, %v424
        %501 = vmax.xlane.f32.xlu0 %v500
        %v502 = vpop.xlane.xlu0 %501
        %v503 = vmax.f32 %v426, %v428
        %504 = vmax.xlane.f32.xlu0 %v503
        %v505 = vpop.xlane.xlu0 %504
        %v506 = vmax.f32 %v432, %v434
        %507 = vmax.xlane.f32.xlu0 %v506
        %v508 = vpop.xlane.xlu0 %507
        %v509 = vmax.f32 %v436, %v438
        %510 = vmax.xlane.f32.xlu0 %v509
        %v511 = vpop.xlane.xlu0 %510
        %v512 = vmax.f32 %v442, %v444
        %513 = vmax.xlane.f32.xlu0 %v512
        %v514 = vpop.xlane.xlu0 %513
        %v515 = vmax.f32 %v446, %v448
        %516 = vmax.xlane.f32.xlu0 %v515
        %v517 = vpop.xlane.xlu0 %516
        %v518 = vmax.f32 %v452, %v454
        %519 = vmax.xlane.f32.xlu0 %v518
        %v520 = vpop.xlane.xlu0 %519
        %v521 = vmax.f32 %v456, %v458
        %522 = vmax.xlane.f32.xlu0 %v521
        %v523 = vpop.xlane.xlu0 %522
        %v524 = vmax.f32 %v462, %v464
        %525 = vmax.xlane.f32.xlu0 %v524
        %v526 = vpop.xlane.xlu0 %525
        %v527 = vmax.f32 %v466, %v468
        %528 = vmax.xlane.f32.xlu0 %v527
        %v529 = vpop.xlane.xlu0 %528
        %v530 = vmax.f32 %v472, %v474
        %531 = vmax.xlane.f32.xlu0 %v530
        %v532 = vpop.xlane.xlu0 %531
        %v533 = vmax.f32 %v476, %v478
        %534 = vmax.xlane.f32.xlu0 %v533
        %v535 = vpop.xlane.xlu0 %534
        %v536 = vmax.f32 %v482, %v484
        %537 = vmax.xlane.f32.xlu0 %v536
        %v538 = vpop.xlane.xlu0 %537
        %v539 = vmax.f32 %v486, %v488
        %540 = vmax.xlane.f32.xlu0 %v539
        %v541 = vpop.xlane.xlu0 %540
        %v542 = vmax.f32 %v492, %v494
        %543 = vmax.xlane.f32.xlu0 %v542
        %v544 = vpop.xlane.xlu0 %543
        %v545 = vmax.f32 %v496, %v498
        %546 = vmax.xlane.f32.xlu0 %v545
        %v547 = vpop.xlane.xlu0 %546
        %v548 = vlaneseq
        %v549 = vand.u32 %v548, 127
        %v550 = vadd.s32 %v549, 128
        %vm551 = vcmp.eq.f32.partialorder %v422, %v502
        %vm552 = vcmp.eq.f32.partialorder %v424, %v502
        %vm553 = vcmp.eq.f32.partialorder %v426, %v505
        %vm554 = vcmp.eq.f32.partialorder %v428, %v505
        %vm555 = vcmp.eq.f32.partialorder %v432, %v508
        %vm556 = vcmp.eq.f32.partialorder %v434, %v508
        %vm557 = vcmp.eq.f32.partialorder %v436, %v511
        %vm558 = vcmp.eq.f32.partialorder %v438, %v511
        %vm559 = vcmp.eq.f32.partialorder %v442, %v514
        %vm560 = vcmp.eq.f32.partialorder %v444, %v514
        %vm561 = vcmp.eq.f32.partialorder %v446, %v517
        %vm562 = vcmp.eq.f32.partialorder %v448, %v517
        %vm563 = vcmp.eq.f32.partialorder %v452, %v520
        %vm564 = vcmp.eq.f32.partialorder %v454, %v520
        %vm565 = vcmp.eq.f32.partialorder %v456, %v523
        %vm566 = vcmp.eq.f32.partialorder %v458, %v523
        %vm567 = vcmp.eq.f32.partialorder %v462, %v526
        %vm568 = vcmp.eq.f32.partialorder %v464, %v526
        %vm569 = vcmp.eq.f32.partialorder %v466, %v529
        %vm570 = vcmp.eq.f32.partialorder %v468, %v529
        %vm571 = vcmp.eq.f32.partialorder %v472, %v532
        %vm572 = vcmp.eq.f32.partialorder %v474, %v532
        %vm573 = vcmp.eq.f32.partialorder %v476, %v535
        %vm574 = vcmp.eq.f32.partialorder %v478, %v535
        %vm575 = vcmp.eq.f32.partialorder %v482, %v538
        %vm576 = vcmp.eq.f32.partialorder %v484, %v538
        %vm577 = vcmp.eq.f32.partialorder %v486, %v541
        %vm578 = vcmp.eq.f32.partialorder %v488, %v541
        %vm579 = vcmp.eq.f32.partialorder %v492, %v544
        %vm580 = vcmp.eq.f32.partialorder %v494, %v544
        %vm581 = vcmp.eq.f32.partialorder %v496, %v547
        %vm582 = vcmp.eq.f32.partialorder %v498, %v547
        %v583 = vsel %vm551, %v549, 256
        %v584 = vsel %vm552, %v550, 256
        %v585 = vsel %vm553, %v549, 256
        %v586 = vsel %vm554, %v550, 256
        %v587 = vsel %vm555, %v549, 256
        %v588 = vsel %vm556, %v550, 256
        %v589 = vsel %vm557, %v549, 256
        %v590 = vsel %vm558, %v550, 256
        %v591 = vsel %vm559, %v549, 256
        %v592 = vsel %vm560, %v550, 256
        %v593 = vsel %vm561, %v549, 256
        %v594 = vsel %vm562, %v550, 256
        %v595 = vsel %vm563, %v549, 256
        %v596 = vsel %vm564, %v550, 256
        %v597 = vsel %vm565, %v549, 256
        %v598 = vsel %vm566, %v550, 256
        %v599 = vsel %vm567, %v549, 256
        %v600 = vsel %vm568, %v550, 256
        %v601 = vsel %vm569, %v549, 256
        %v602 = vsel %vm570, %v550, 256
        %v603 = vsel %vm571, %v549, 256
        %v604 = vsel %vm572, %v550, 256
        %v605 = vsel %vm573, %v549, 256
        %v606 = vsel %vm574, %v550, 256
        %v607 = vsel %vm575, %v549, 256
        %v608 = vsel %vm576, %v550, 256
        %v609 = vsel %vm577, %v549, 256
        %v610 = vsel %vm578, %v550, 256
        %v611 = vsel %vm579, %v549, 256
        %v612 = vsel %vm580, %v550, 256
        %v613 = vsel %vm581, %v549, 256
        %v614 = vsel %vm582, %v550, 256
        %vm615 = vcmp.lt.s32.totalorder %v583, %v584
        %v616 = vsel %vm615, %v583, %v584
        %v617 = vand.u32 %v616, 65535
        %v618 = vshra.s32 %v616, 16
        %v619 = vcvt.s32.f32 %v617
        %v620 = vcvt.s32.f32 %v618
        %621 = vmin.xlane.f32.xlu0 %v620
        %v622 = vpop.xlane.xlu0 %621
        %vm623 = vcmp.eq.f32.partialorder %v620, %v622
        %v624 = vsel %vm623, %v619, inf
        %625 = vmin.xlane.f32.xlu0 %v624
        %v626 = vpop.xlane.xlu0 %625
        %v627 = vcvt.f32.s32 %v626
        %v628 = vcvt.f32.s32 %v622
        %v629 = vshll.u32 %v628, 16
        %v630 = vadd.s32 %v629, %v627
        %vm631 = vcmp.lt.s32.totalorder %v585, %v586
        %v632 = vsel %vm631, %v585, %v586
        %v633 = vand.u32 %v632, 65535
        %v634 = vshra.s32 %v632, 16
        %v635 = vcvt.s32.f32 %v633
        %v636 = vcvt.s32.f32 %v634
        %637 = vmin.xlane.f32.xlu0 %v636
        %v638 = vpop.xlane.xlu0 %637
        %vm639 = vcmp.eq.f32.partialorder %v636, %v638
        %v640 = vsel %vm639, %v635, inf
        %641 = vmin.xlane.f32.xlu0 %v640
        %v642 = vpop.xlane.xlu0 %641
        %v643 = vcvt.f32.s32 %v642
        %v644 = vcvt.f32.s32 %v638
        %v645 = vshll.u32 %v644, 16
        %v646 = vadd.s32 %v645, %v643
        %vm647 = vcmp.lt.s32.totalorder %v587, %v588
        %v648 = vsel %vm647, %v587, %v588
        %v649 = vand.u32 %v648, 65535
        %v650 = vshra.s32 %v648, 16
        %v651 = vcvt.s32.f32 %v649
        %v652 = vcvt.s32.f32 %v650
        %653 = vmin.xlane.f32.xlu0 %v652
        %v654 = vpop.xlane.xlu0 %653
        %vm655 = vcmp.eq.f32.partialorder %v652, %v654
        %v656 = vsel %vm655, %v651, inf
        %657 = vmin.xlane.f32.xlu0 %v656
        %v658 = vpop.xlane.xlu0 %657
        %v659 = vcvt.f32.s32 %v658
        %v660 = vcvt.f32.s32 %v654
        %v661 = vshll.u32 %v660, 16
        %v662 = vadd.s32 %v661, %v659
        %vm663 = vcmp.lt.s32.totalorder %v589, %v590
        %v664 = vsel %vm663, %v589, %v590
        %v665 = vand.u32 %v664, 65535
        %v666 = vshra.s32 %v664, 16
        %v667 = vcvt.s32.f32 %v665
        %v668 = vcvt.s32.f32 %v666
        %669 = vmin.xlane.f32.xlu0 %v668
        %v670 = vpop.xlane.xlu0 %669
        %vm671 = vcmp.eq.f32.partialorder %v668, %v670
        %v672 = vsel %vm671, %v667, inf
        %673 = vmin.xlane.f32.xlu0 %v672
        %v674 = vpop.xlane.xlu0 %673
        %v675 = vcvt.f32.s32 %v674
        %v676 = vcvt.f32.s32 %v670
        %v677 = vshll.u32 %v676, 16
        %v678 = vadd.s32 %v677, %v675
        %vm679 = vcmp.lt.s32.totalorder %v591, %v592
        %v680 = vsel %vm679, %v591, %v592
        %v681 = vand.u32 %v680, 65535
        %v682 = vshra.s32 %v680, 16
        %v683 = vcvt.s32.f32 %v681
        %v684 = vcvt.s32.f32 %v682
        %685 = vmin.xlane.f32.xlu0 %v684
        %v686 = vpop.xlane.xlu0 %685
        %vm687 = vcmp.eq.f32.partialorder %v684, %v686
        %v688 = vsel %vm687, %v683, inf
        %689 = vmin.xlane.f32.xlu0 %v688
        %v690 = vpop.xlane.xlu0 %689
        %v691 = vcvt.f32.s32 %v690
        %v692 = vcvt.f32.s32 %v686
        %v693 = vshll.u32 %v692, 16
        %v694 = vadd.s32 %v693, %v691
        %vm695 = vcmp.lt.s32.totalorder %v593, %v594
        %v696 = vsel %vm695, %v593, %v594
        %v697 = vand.u32 %v696, 65535
        %v698 = vshra.s32 %v696, 16
        %v699 = vcvt.s32.f32 %v697
        %v700 = vcvt.s32.f32 %v698
        %701 = vmin.xlane.f32.xlu0 %v700
        %v702 = vpop.xlane.xlu0 %701
        %vm703 = vcmp.eq.f32.partialorder %v700, %v702
        %v704 = vsel %vm703, %v699, inf
        %705 = vmin.xlane.f32.xlu0 %v704
        %v706 = vpop.xlane.xlu0 %705
        %v707 = vcvt.f32.s32 %v706
        %v708 = vcvt.f32.s32 %v702
        %v709 = vshll.u32 %v708, 16
        %v710 = vadd.s32 %v709, %v707
        %vm711 = vcmp.lt.s32.totalorder %v595, %v596
        %v712 = vsel %vm711, %v595, %v596
        %v713 = vand.u32 %v712, 65535
        %v714 = vshra.s32 %v712, 16
        %v715 = vcvt.s32.f32 %v713
        %v716 = vcvt.s32.f32 %v714
        %717 = vmin.xlane.f32.xlu0 %v716
        %v718 = vpop.xlane.xlu0 %717
        %vm719 = vcmp.eq.f32.partialorder %v716, %v718
        %v720 = vsel %vm719, %v715, inf
        %721 = vmin.xlane.f32.xlu0 %v720
        %v722 = vpop.xlane.xlu0 %721
        %v723 = vcvt.f32.s32 %v722
        %v724 = vcvt.f32.s32 %v718
        %v725 = vshll.u32 %v724, 16
        %v726 = vadd.s32 %v725, %v723
        %vm727 = vcmp.lt.s32.totalorder %v597, %v598
        %v728 = vsel %vm727, %v597, %v598
        %v729 = vand.u32 %v728, 65535
        %v730 = vshra.s32 %v728, 16
        %v731 = vcvt.s32.f32 %v729
        %v732 = vcvt.s32.f32 %v730
        %733 = vmin.xlane.f32.xlu0 %v732
        %v734 = vpop.xlane.xlu0 %733
        %vm735 = vcmp.eq.f32.partialorder %v732, %v734
        %v736 = vsel %vm735, %v731, inf
        %737 = vmin.xlane.f32.xlu0 %v736
        %v738 = vpop.xlane.xlu0 %737
        %v739 = vcvt.f32.s32 %v738
        %v740 = vcvt.f32.s32 %v734
        %v741 = vshll.u32 %v740, 16
        %v742 = vadd.s32 %v741, %v739
        %vm743 = vcmp.lt.s32.totalorder %v599, %v600
        %v744 = vsel %vm743, %v599, %v600
        %v745 = vand.u32 %v744, 65535
        %v746 = vshra.s32 %v744, 16
        %v747 = vcvt.s32.f32 %v745
        %v748 = vcvt.s32.f32 %v746
        %749 = vmin.xlane.f32.xlu0 %v748
        %v750 = vpop.xlane.xlu0 %749
        %vm751 = vcmp.eq.f32.partialorder %v748, %v750
        %v752 = vsel %vm751, %v747, inf
        %753 = vmin.xlane.f32.xlu0 %v752
        %v754 = vpop.xlane.xlu0 %753
        %v755 = vcvt.f32.s32 %v754
        %v756 = vcvt.f32.s32 %v750
        %v757 = vshll.u32 %v756, 16
        %v758 = vadd.s32 %v757, %v755
        %vm759 = vcmp.lt.s32.totalorder %v601, %v602
        %v760 = vsel %vm759, %v601, %v602
        %v761 = vand.u32 %v760, 65535
        %v762 = vshra.s32 %v760, 16
        %v763 = vcvt.s32.f32 %v761
        %v764 = vcvt.s32.f32 %v762
        %765 = vmin.xlane.f32.xlu0 %v764
        %v766 = vpop.xlane.xlu0 %765
        %vm767 = vcmp.eq.f32.partialorder %v764, %v766
        %v768 = vsel %vm767, %v763, inf
        %769 = vmin.xlane.f32.xlu0 %v768
        %v770 = vpop.xlane.xlu0 %769
        %v771 = vcvt.f32.s32 %v770
        %v772 = vcvt.f32.s32 %v766
        %v773 = vshll.u32 %v772, 16
        %v774 = vadd.s32 %v773, %v771
        %vm775 = vcmp.lt.s32.totalorder %v603, %v604
        %v776 = vsel %vm775, %v603, %v604
        %v777 = vand.u32 %v776, 65535
        %v778 = vshra.s32 %v776, 16
        %v779 = vcvt.s32.f32 %v777
        %v780 = vcvt.s32.f32 %v778
        %781 = vmin.xlane.f32.xlu0 %v780
        %v782 = vpop.xlane.xlu0 %781
        %vm783 = vcmp.eq.f32.partialorder %v780, %v782
        %v784 = vsel %vm783, %v779, inf
        %785 = vmin.xlane.f32.xlu0 %v784
        %v786 = vpop.xlane.xlu0 %785
        %v787 = vcvt.f32.s32 %v786
        %v788 = vcvt.f32.s32 %v782
        %v789 = vshll.u32 %v788, 16
        %v790 = vadd.s32 %v789, %v787
        %vm791 = vcmp.lt.s32.totalorder %v605, %v606
        %v792 = vsel %vm791, %v605, %v606
        %v793 = vand.u32 %v792, 65535
        %v794 = vshra.s32 %v792, 16
        %v795 = vcvt.s32.f32 %v793
        %v796 = vcvt.s32.f32 %v794
        %797 = vmin.xlane.f32.xlu0 %v796
        %v798 = vpop.xlane.xlu0 %797
        %vm799 = vcmp.eq.f32.partialorder %v796, %v798
        %v800 = vsel %vm799, %v795, inf
        %801 = vmin.xlane.f32.xlu0 %v800
        %v802 = vpop.xlane.xlu0 %801
        %v803 = vcvt.f32.s32 %v802
        %v804 = vcvt.f32.s32 %v798
        %v805 = vshll.u32 %v804, 16
        %v806 = vadd.s32 %v805, %v803
        %vm807 = vcmp.lt.s32.totalorder %v607, %v608
        %v808 = vsel %vm807, %v607, %v608
        %v809 = vand.u32 %v808, 65535
        %v810 = vshra.s32 %v808, 16
        %v811 = vcvt.s32.f32 %v809
        %v812 = vcvt.s32.f32 %v810
        %813 = vmin.xlane.f32.xlu0 %v812
        %v814 = vpop.xlane.xlu0 %813
        %vm815 = vcmp.eq.f32.partialorder %v812, %v814
        %v816 = vsel %vm815, %v811, inf
        %817 = vmin.xlane.f32.xlu0 %v816
        %v818 = vpop.xlane.xlu0 %817
        %v819 = vcvt.f32.s32 %v818
        %v820 = vcvt.f32.s32 %v814
        %v821 = vshll.u32 %v820, 16
        %v822 = vadd.s32 %v821, %v819
        %vm823 = vcmp.lt.s32.totalorder %v609, %v610
        %v824 = vsel %vm823, %v609, %v610
        %v825 = vand.u32 %v824, 65535
        %v826 = vshra.s32 %v824, 16
        %v827 = vcvt.s32.f32 %v825
        %v828 = vcvt.s32.f32 %v826
        %829 = vmin.xlane.f32.xlu0 %v828
        %v830 = vpop.xlane.xlu0 %829
        %vm831 = vcmp.eq.f32.partialorder %v828, %v830
        %v832 = vsel %vm831, %v827, inf
        %833 = vmin.xlane.f32.xlu0 %v832
        %v834 = vpop.xlane.xlu0 %833
        %v835 = vcvt.f32.s32 %v834
        %v836 = vcvt.f32.s32 %v830
        %v837 = vshll.u32 %v836, 16
        %v838 = vadd.s32 %v837, %v835
        %vm839 = vcmp.lt.s32.totalorder %v611, %v612
        %v840 = vsel %vm839, %v611, %v612
        %v841 = vand.u32 %v840, 65535
        %v842 = vshra.s32 %v840, 16
        %v843 = vcvt.s32.f32 %v841
        %v844 = vcvt.s32.f32 %v842
        %845 = vmin.xlane.f32.xlu0 %v844
        %v846 = vpop.xlane.xlu0 %845
        %vm847 = vcmp.eq.f32.partialorder %v844, %v846
        %v848 = vsel %vm847, %v843, inf
        %849 = vmin.xlane.f32.xlu0 %v848
        %v850 = vpop.xlane.xlu0 %849
        %v851 = vcvt.f32.s32 %v850
        %v852 = vcvt.f32.s32 %v846
        %v853 = vshll.u32 %v852, 16
        %v854 = vadd.s32 %v853, %v851
        %vm855 = vcmp.lt.s32.totalorder %v613, %v614
        %v856 = vsel %vm855, %v613, %v614
        %v857 = vand.u32 %v856, 65535
        %v858 = vshra.s32 %v856, 16
        %v859 = vcvt.s32.f32 %v857
        %v860 = vcvt.s32.f32 %v858
        %861 = vmin.xlane.f32.xlu0 %v860
        %v862 = vpop.xlane.xlu0 %861
        %vm863 = vcmp.eq.f32.partialorder %v860, %v862
        %v864 = vsel %vm863, %v859, inf
        %865 = vmin.xlane.f32.xlu0 %v864
        %v866 = vpop.xlane.xlu0 %865
        %v867 = vcvt.f32.s32 %v866
        %v868 = vcvt.f32.s32 %v862
        %v869 = vshll.u32 %v868, 16
        %v870 = vadd.s32 %v869, %v867
        %vm871 = vcmp.eq.s32.totalorder %v549, %v630
        %vm872 = vcmp.eq.s32.totalorder %v550, %v630
        %vm873 = vcmp.eq.s32.totalorder %v549, %v646
        %vm874 = vcmp.eq.s32.totalorder %v550, %v646
        %vm875 = vcmp.eq.s32.totalorder %v549, %v662
        %vm876 = vcmp.eq.s32.totalorder %v550, %v662
        %vm877 = vcmp.eq.s32.totalorder %v549, %v678
        %vm878 = vcmp.eq.s32.totalorder %v550, %v678
        %vm879 = vcmp.eq.s32.totalorder %v549, %v694
        %vm880 = vcmp.eq.s32.totalorder %v550, %v694
        %vm881 = vcmp.eq.s32.totalorder %v549, %v710
        %vm882 = vcmp.eq.s32.totalorder %v550, %v710
        %vm883 = vcmp.eq.s32.totalorder %v549, %v726
        %vm884 = vcmp.eq.s32.totalorder %v550, %v726
        %vm885 = vcmp.eq.s32.totalorder %v549, %v742
        %vm886 = vcmp.eq.s32.totalorder %v550, %v742
        %vm887 = vcmp.eq.s32.totalorder %v549, %v758
        %vm888 = vcmp.eq.s32.totalorder %v550, %v758
        %vm889 = vcmp.eq.s32.totalorder %v549, %v774
        %vm890 = vcmp.eq.s32.totalorder %v550, %v774
        %vm891 = vcmp.eq.s32.totalorder %v549, %v790
        %vm892 = vcmp.eq.s32.totalorder %v550, %v790
        %vm893 = vcmp.eq.s32.totalorder %v549, %v806
        %vm894 = vcmp.eq.s32.totalorder %v550, %v806
        %vm895 = vcmp.eq.s32.totalorder %v549, %v822
        %vm896 = vcmp.eq.s32.totalorder %v550, %v822
        %vm897 = vcmp.eq.s32.totalorder %v549, %v838
        %vm898 = vcmp.eq.s32.totalorder %v550, %v838
        %vm899 = vcmp.eq.s32.totalorder %v549, %v854
        %vm900 = vcmp.eq.s32.totalorder %v550, %v854
        %vm901 = vcmp.eq.s32.totalorder %v549, %v870
        %vm902 = vcmp.eq.s32.totalorder %v550, %v870
        %v903 = vsel %vm871, 1, 0
        %v904 = vsel %vm872, 1, 0
        %v905 = vsel %vm873, 1, 0
        %v906 = vsel %vm874, 1, 0
        %v907 = vsel %vm875, 1, 0
        %v908 = vsel %vm876, 1, 0
        %v909 = vsel %vm877, 1, 0
        %v910 = vsel %vm878, 1, 0
        %v911 = vsel %vm879, 1, 0
        %v912 = vsel %vm880, 1, 0
        %v913 = vsel %vm881, 1, 0
        %v914 = vsel %vm882, 1, 0
        %v915 = vsel %vm883, 1, 0
        %v916 = vsel %vm884, 1, 0
        %v917 = vsel %vm885, 1, 0
        %v918 = vsel %vm886, 1, 0
        %v919 = vsel %vm887, 1, 0
        %v920 = vsel %vm888, 1, 0
        %v921 = vsel %vm889, 1, 0
        %v922 = vsel %vm890, 1, 0
        %v923 = vsel %vm891, 1, 0
        %v924 = vsel %vm892, 1, 0
        %v925 = vsel %vm893, 1, 0
        %v926 = vsel %vm894, 1, 0
        %v927 = vsel %vm895, 1, 0
        %v928 = vsel %vm896, 1, 0
        %v929 = vsel %vm897, 1, 0
        %v930 = vsel %vm898, 1, 0
        %v931 = vsel %vm899, 1, 0
        %v932 = vsel %vm900, 1, 0
        %v933 = vsel %vm901, 1, 0
        %v934 = vsel %vm902, 1, 0
        %v935 = vcvt.s32.f32 %v903
        %v936 = vcvt.s32.f32 %v904
        %v937 = vcvt.s32.f32 %v905
        %v938 = vcvt.s32.f32 %v906
        %v939 = vcvt.s32.f32 %v907
        %v940 = vcvt.s32.f32 %v908
        %v941 = vcvt.s32.f32 %v909
        %v942 = vcvt.s32.f32 %v910
        %v943 = vcvt.s32.f32 %v911
        %v944 = vcvt.s32.f32 %v912
        %v945 = vcvt.s32.f32 %v913
        %v946 = vcvt.s32.f32 %v914
        %v947 = vcvt.s32.f32 %v915
        %v948 = vcvt.s32.f32 %v916
        %v949 = vcvt.s32.f32 %v917
        %v950 = vcvt.s32.f32 %v918
        %v951 = vcvt.s32.f32 %v919
        %v952 = vcvt.s32.f32 %v920
        %v953 = vcvt.s32.f32 %v921
        %v954 = vcvt.s32.f32 %v922
        %v955 = vcvt.s32.f32 %v923
        %v956 = vcvt.s32.f32 %v924
        %v957 = vcvt.s32.f32 %v925
        %v958 = vcvt.s32.f32 %v926
        %v959 = vcvt.s32.f32 %v927
        %v960 = vcvt.s32.f32 %v928
        %v961 = vcvt.s32.f32 %v929
        %v962 = vcvt.s32.f32 %v930
        %v963 = vcvt.s32.f32 %v931
        %v964 = vcvt.s32.f32 %v932
        %v965 = vcvt.s32.f32 %v933
        %v966 = vcvt.s32.f32 %v934
        %v967 = vpack.c.bf16 %v937, %v935
        %v968 = vpack.c.bf16 %v938, %v936
        %v969 = vpack.c.bf16 %v941, %v939
        %v970 = vpack.c.bf16 %v942, %v940
        %v971 = vpack.c.bf16 %v945, %v943
        %v972 = vpack.c.bf16 %v946, %v944
        %v973 = vpack.c.bf16 %v949, %v947
        %v974 = vpack.c.bf16 %v950, %v948
        %v975 = vpack.c.bf16 %v953, %v951
        %v976 = vpack.c.bf16 %v954, %v952
        %v977 = vpack.c.bf16 %v957, %v955
        %v978 = vpack.c.bf16 %v958, %v956
        %v979 = vpack.c.bf16 %v961, %v959
        %v980 = vpack.c.bf16 %v962, %v960
        %v981 = vpack.c.bf16 %v965, %v963
        %v982 = vpack.c.bf16 %v966, %v964
        %v983 = vld [vmem:[%s2] sm:$0xf]
        %v984 = vld [vmem:[%s2 + $0x4] sm:$0xf]
        %v985 = vld [vmem:[%s2 + $0x8] sm:$0xf]
        %v986 = vld [vmem:[%s2 + $0xc] sm:$0xf]
        %v987 = vld [vmem:[%s2 + $0x10] sm:$0xf]
        %v988 = vld [vmem:[%s2 + $0x14] sm:$0xf]
        %v989 = vld [vmem:[%s2 + $0x18] sm:$0xf]
        %v990 = vld [vmem:[%s2 + $0x1c] sm:$0xf]
        %v991 = vld [vmem:[%s2 + $0x20] sm:$0xf]
        %v992 = vld [vmem:[%s2 + $0x24] sm:$0xf]
        %v993 = vld [vmem:[%s2 + $0x28] sm:$0xf]
        %v994 = vld [vmem:[%s2 + $0x2c] sm:$0xf]
        %v995 = vld [vmem:[%s2 + $0x30] sm:$0xf]
        %v996 = vld [vmem:[%s2 + $0x34] sm:$0xf]
        %v997 = vld [vmem:[%s2 + $0x38] sm:$0xf]
        %v998 = vld [vmem:[%s2 + $0x3c] sm:$0xf]
        %v999 = vld [vmem:[%s2 + $0x40] sm:$0xf]
        %v1000 = vld [vmem:[%s2 + $0x44] sm:$0xf]
        %v1001 = vld [vmem:[%s2 + $0x48] sm:$0xf]
        %v1002 = vld [vmem:[%s2 + $0x4c] sm:$0xf]
        %v1003 = vld [vmem:[%s2 + $0x50] sm:$0xf]
        %v1004 = vld [vmem:[%s2 + $0x54] sm:$0xf]
        %v1005 = vld [vmem:[%s2 + $0x58] sm:$0xf]
        %v1006 = vld [vmem:[%s2 + $0x5c] sm:$0xf]
        %v1007 = vld [vmem:[%s2 + $0x60] sm:$0xf]
        %v1008 = vld [vmem:[%s2 + $0x64] sm:$0xf]
        %v1009 = vld [vmem:[%s2 + $0x68] sm:$0xf]
        %v1010 = vld [vmem:[%s2 + $0x6c] sm:$0xf]
        %v1011 = vld [vmem:[%s2 + $0x70] sm:$0xf]
        %v1012 = vld [vmem:[%s2 + $0x74] sm:$0xf]
        %v1013 = vld [vmem:[%s2 + $0x78] sm:$0xf]
        %v1014 = vld [vmem:[%s2 + $0x7c] sm:$0xf]
        %v1047 = vunpack.c.l.b16 %v983
        %v1048 = vunpack.c.l.b16 %v984
        %v1049 = vunpack.c.l.b16 %v985
        %v1050 = vunpack.c.l.b16 %v986
        %v1051 = vunpack.c.l.b16 %v987
        %v1052 = vunpack.c.l.b16 %v988
        %v1053 = vunpack.c.l.b16 %v989
        %v1054 = vunpack.c.l.b16 %v990
        %v1055 = vunpack.c.l.b16 %v991
        %v1056 = vunpack.c.l.b16 %v992
        %v1057 = vunpack.c.l.b16 %v993
        %v1058 = vunpack.c.l.b16 %v994
        %v1059 = vunpack.c.l.b16 %v995
        %v1060 = vunpack.c.l.b16 %v996
        %v1061 = vunpack.c.l.b16 %v997
        %v1062 = vunpack.c.l.b16 %v998
        %v1063 = vunpack.c.l.b16 %v999
        %v1064 = vunpack.c.l.b16 %v1000
        %v1065 = vunpack.c.l.b16 %v1001
        %v1066 = vunpack.c.l.b16 %v1002
        %v1067 = vunpack.c.l.b16 %v1003
        %v1068 = vunpack.c.l.b16 %v1004
        %v1069 = vunpack.c.l.b16 %v1005
        %v1070 = vunpack.c.l.b16 %v1006
        %v1071 = vunpack.c.l.b16 %v1007
        %v1072 = vunpack.c.l.b16 %v1008
        %v1073 = vunpack.c.l.b16 %v1009
        %v1074 = vunpack.c.l.b16 %v1010
        %v1075 = vunpack.c.l.b16 %v1011
        %v1076 = vunpack.c.l.b16 %v1012
        %v1077 = vunpack.c.l.b16 %v1013
        %v1078 = vunpack.c.l.b16 %v1014
        %v1079 = vpack.c.b16 %v1048, %v1047
        %v1080 = vpack.c.b16 %v1050, %v1049
        %v1081 = vpack.c.b16 %v1052, %v1051
        %v1082 = vpack.c.b16 %v1054, %v1053
        %v1083 = vpack.c.b16 %v1056, %v1055
        %v1084 = vpack.c.b16 %v1058, %v1057
        %v1085 = vpack.c.b16 %v1060, %v1059
        %v1086 = vpack.c.b16 %v1062, %v1061
        %v1087 = vpack.c.b16 %v1064, %v1063
        %v1088 = vpack.c.b16 %v1066, %v1065
        %v1089 = vpack.c.b16 %v1068, %v1067
        %v1090 = vpack.c.b16 %v1070, %v1069
        %v1091 = vpack.c.b16 %v1072, %v1071
        %v1092 = vpack.c.b16 %v1074, %v1073
        %v1093 = vpack.c.b16 %v1076, %v1075
        %v1094 = vpack.c.b16 %v1078, %v1077
        %1111 = vmatprep.subr.bf16.mxu0 0
        %1112 = vmatpush1.bf16.msra.mxu0 %v1086
        %1113 = vmatprep.subr.bf16.mxu0 0
        %1114 = vmatpush1.bf16.msra.mxu0 %v1085
        %1115 = vmatprep.subr.bf16.mxu0 0
        %1116 = vmatpush1.bf16.msra.mxu0 %v1084
        %1117 = vmatprep.subr.bf16.mxu0 0
        %1118 = vmatpush1.bf16.msra.mxu0 %v1083
        %1119 = vmatprep.subr.bf16.mxu0 0
        %1120 = vmatpush1.bf16.msra.mxu0 %v1082
        %1121 = vmatprep.subr.bf16.mxu0 0
        %1122 = vmatpush1.bf16.msra.mxu0 %v1081
        %1123 = vmatprep.subr.bf16.mxu0 0
        %1124 = vmatpush1.bf16.msra.mxu0 %v1080
        %1125 = vmatprep.subr.bf16.mxu0 0
        %1126 = vmatpush1.bf16.msra.mxu0 %v1079
        %1127 = vmatprep.subr.bf16.mxu0 0
        %1128 = vmatpush2.bf16.msra.mxu0 %v1094
        %1129 = vmatprep.subr.bf16.mxu0 0
        %1130 = vmatpush2.bf16.msra.mxu0 %v1093
        %1131 = vmatprep.subr.bf16.mxu0 0
        %1132 = vmatpush2.bf16.msra.mxu0 %v1092
        %1133 = vmatprep.subr.bf16.mxu0 0
        %1134 = vmatpush2.bf16.msra.mxu0 %v1091
        %1135 = vmatprep.subr.bf16.mxu0 0
        %1136 = vmatpush2.bf16.msra.mxu0 %v1090
        %1137 = vmatprep.subr.bf16.mxu0 0
        %1138 = vmatpush2.bf16.msra.mxu0 %v1089
        %1139 = vmatprep.subr.bf16.mxu0 0
        %1140 = vmatpush2.bf16.msra.mxu0 %v1088
        %1141 = vmatprep.subr.bf16.mxu0 0
        %1142 = vmatpush2.bf16.msra.mxu0 %v1087
        %1143 = vmatprep.mubr.bf16.mxu0 %v968
        %1144 = vmatmul.mubr.bf16.gmra.mxu0 %v967
        %v1145 = vpop.f32.mrf.mxu0
        %v1146 = vadd.f32 0.0, %v1145
        %v1147 = vpop.f32.mrf.mxu0
        %v1148 = vpop.f32.mrf.mxu0
        %v1149 = vadd.f32 0.0, %v1148
        %v1150 = vpop.f32.mrf.mxu0
        %1151 = vmatprep.mubr.bf16.mxu0 %v970
        %1152 = vmatmul.mubr.bf16.gmra.mxu0 %v969
        %v1153 = vpop.f32.mrf.mxu0
        %v1154 = vadd.f32 0.0, %v1153
        %v1155 = vpop.f32.mrf.mxu0
        %v1156 = vpop.f32.mrf.mxu0
        %v1157 = vadd.f32 0.0, %v1156
        %v1158 = vpop.f32.mrf.mxu0
        %1159 = vmatprep.mubr.bf16.mxu0 %v972
        %1160 = vmatmul.mubr.bf16.gmra.mxu0 %v971
        %v1161 = vpop.f32.mrf.mxu0
        %v1162 = vadd.f32 0.0, %v1161
        %v1163 = vpop.f32.mrf.mxu0
        %v1164 = vpop.f32.mrf.mxu0
        %v1165 = vadd.f32 0.0, %v1164
        %v1166 = vpop.f32.mrf.mxu0
        %1167 = vmatprep.mubr.bf16.mxu0 %v974
        %1168 = vmatmul.mubr.bf16.gmra.mxu0 %v973
        %v1169 = vpop.f32.mrf.mxu0
        %v1170 = vadd.f32 0.0, %v1169
        %v1171 = vpop.f32.mrf.mxu0
        %v1172 = vpop.f32.mrf.mxu0
        %v1173 = vadd.f32 0.0, %v1172
        %v1174 = vpop.f32.mrf.mxu0
        %1175 = vmatprep.mubr.bf16.mxu0 %v976
        %1176 = vmatmul.mubr.bf16.gmra.mxu0 %v975
        %v1177 = vpop.f32.mrf.mxu0
        %v1178 = vadd.f32 0.0, %v1177
        %v1179 = vpop.f32.mrf.mxu0
        %v1180 = vpop.f32.mrf.mxu0
        %v1181 = vadd.f32 0.0, %v1180
        %v1182 = vpop.f32.mrf.mxu0
        %1183 = vmatprep.mubr.bf16.mxu0 %v978
        %1184 = vmatmul.mubr.bf16.gmra.mxu0 %v977
        %v1185 = vpop.f32.mrf.mxu0
        %v1186 = vadd.f32 0.0, %v1185
        %v1187 = vpop.f32.mrf.mxu0
        %v1188 = vpop.f32.mrf.mxu0
        %v1189 = vadd.f32 0.0, %v1188
        %v1190 = vpop.f32.mrf.mxu0
        %1191 = vmatprep.mubr.bf16.mxu0 %v980
        %1192 = vmatmul.mubr.bf16.gmra.mxu0 %v979
        %v1193 = vpop.f32.mrf.mxu0
        %v1194 = vadd.f32 0.0, %v1193
        %v1195 = vpop.f32.mrf.mxu0
        %v1196 = vpop.f32.mrf.mxu0
        %v1197 = vadd.f32 0.0, %v1196
        %v1198 = vpop.f32.mrf.mxu0
        %1199 = vmatprep.mubr.bf16.mxu0 %v982
        %1200 = vmatmul.mubr.bf16.gmra.mxu0 %v981
        %v1201 = vpop.f32.mrf.mxu0
        %v1202 = vadd.f32 0.0, %v1201
        %v1203 = vpop.f32.mrf.mxu0
        %v1204 = vpop.f32.mrf.mxu0
        %v1205 = vadd.f32 0.0, %v1204
        %v1206 = vpop.f32.mrf.mxu0
        %1207 = vdwg.mxu0
        %v1208 = vpack.c.bf16 %v1149, %v1146
        %v1209 = vpack.c.bf16 %v1157, %v1154
        %v1210 = vpack.c.bf16 %v1165, %v1162
        %v1211 = vpack.c.bf16 %v1173, %v1170
        %v1212 = vpack.c.bf16 %v1181, %v1178
        %v1213 = vpack.c.bf16 %v1189, %v1186
        %v1214 = vpack.c.bf16 %v1197, %v1194
        %v1215 = vpack.c.bf16 %v1205, %v1202
        %v1224 = vunpack.c.l.b16 %v1208
        %v1225 = vunpack.c.h.b16 %v1208
        %v1226 = vunpack.c.l.b16 %v1209
        %v1227 = vunpack.c.h.b16 %v1209
        %v1228 = vunpack.c.l.b16 %v1210
        %v1229 = vunpack.c.h.b16 %v1210
        %v1230 = vunpack.c.l.b16 %v1211
        %v1231 = vunpack.c.h.b16 %v1211
        %v1232 = vunpack.c.l.b16 %v1212
        %v1233 = vunpack.c.h.b16 %v1212
        %v1234 = vunpack.c.l.b16 %v1213
        %v1235 = vunpack.c.h.b16 %v1213
        %v1236 = vunpack.c.l.b16 %v1214
        %v1237 = vunpack.c.h.b16 %v1214
        %v1238 = vunpack.c.l.b16 %v1215
        %v1239 = vunpack.c.h.b16 %v1215
        %v1240 = vpack.c.b16 %v1224, %v1224
        %v1241 = vpack.c.b16 %v1225, %v1225
        %v1242 = vpack.c.b16 %v1226, %v1226
        %v1243 = vpack.c.b16 %v1227, %v1227
        %v1244 = vpack.c.b16 %v1228, %v1228
        %v1245 = vpack.c.b16 %v1229, %v1229
        %v1246 = vpack.c.b16 %v1230, %v1230
        %v1247 = vpack.c.b16 %v1231, %v1231
        %v1248 = vpack.c.b16 %v1232, %v1232
        %v1249 = vpack.c.b16 %v1233, %v1233
        %v1250 = vpack.c.b16 %v1234, %v1234
        %v1251 = vpack.c.b16 %v1235, %v1235
        %v1252 = vpack.c.b16 %v1236, %v1236
        %v1253 = vpack.c.b16 %v1237, %v1237
        %v1254 = vpack.c.b16 %v1238, %v1238
        %v1255 = vpack.c.b16 %v1239, %v1239
        %vm1272 = vcmask 257024
        %1273 = vst.msk [vmem:[%s299] sm:$0xf] %vm1272, %v1240
        %1274 = vst.msk [vmem:[%s299 + $0x4] sm:$0xf] %vm1272, %v1241
        %1275 = vst.msk [vmem:[%s299 + $0x8] sm:$0xf] %vm1272, %v1242
        %1276 = vst.msk [vmem:[%s299 + $0xc] sm:$0xf] %vm1272, %v1243
        %1277 = vst.msk [vmem:[%s299 + $0x10] sm:$0xf] %vm1272, %v1244
        %1278 = vst.msk [vmem:[%s299 + $0x14] sm:$0xf] %vm1272, %v1245
        %1279 = vst.msk [vmem:[%s299 + $0x18] sm:$0xf] %vm1272, %v1246
        %1280 = vst.msk [vmem:[%s299 + $0x1c] sm:$0xf] %vm1272, %v1247
        %1281 = vst.msk [vmem:[%s299 + $0x20] sm:$0xf] %vm1272, %v1248
        %1282 = vst.msk [vmem:[%s299 + $0x24] sm:$0xf] %vm1272, %v1249
        %1283 = vst.msk [vmem:[%s299 + $0x28] sm:$0xf] %vm1272, %v1250
        %1284 = vst.msk [vmem:[%s299 + $0x2c] sm:$0xf] %vm1272, %v1251
        %1285 = vst.msk [vmem:[%s299 + $0x30] sm:$0xf] %vm1272, %v1252
        %1286 = vst.msk [vmem:[%s299 + $0x34] sm:$0xf] %vm1272, %v1253
        %1287 = vst.msk [vmem:[%s299 + $0x38] sm:$0xf] %vm1272, %v1254
        %1288 = vst.msk [vmem:[%s299 + $0x3c] sm:$0xf] %vm1272, %v1255
        %v1289 = vld [vmem:[%s4] sm:$0x3]
        %v1292 = vunpack.c.l.s4 1966171168
        %v1293 = vunpack.c.0.s8 %v1292
        %v1294 = vlaneseq
        %v1295 = vshrl.u32 %v1294, 7
        %v1296 = vsub.s32 %v1293, %v1295
        %v1297 = vrot.slane %v1289, %v1296
        %v1298 = vcombine.high %v1297, %v1297
        %v1300 = vunpack.c.l.s4 1966171168
        %v1301 = vunpack.c.0.s8 %v1300
        %v1302 = vlaneseq
        %v1303 = vshrl.u32 %v1302, 7
        %v1304 = vsub.s32 %v1301, %v1303
        %v1305 = vrot.slane %v1297, %v1304
        %v1307 = vunpack.c.l.s4 1966171168
        %v1308 = vunpack.c.0.s8 %v1307
        %v1309 = vlaneseq
        %v1310 = vshrl.u32 %v1309, 7
        %v1311 = vsub.s32 %v1308, %v1310
        %v1312 = vrot.slane %v1298, %v1311
        %1315 = vmatprep.subr.bf16.mxu0 %v982
        %1316 = vmatpush1.bf16.xpose.msra.mxu0 %v981
        %1317 = vmatprep.subr.bf16.mxu0 %v980
        %1318 = vmatpush1.bf16.xpose.msra.mxu0 %v979
        %1319 = vmatprep.subr.bf16.mxu0 %v978
        %1320 = vmatpush1.bf16.xpose.msra.mxu0 %v977
        %1321 = vmatprep.subr.bf16.mxu0 %v976
        %1322 = vmatpush1.bf16.xpose.msra.mxu0 %v975
        %1323 = vmatprep.subr.bf16.mxu0 %v974
        %1324 = vmatpush1.bf16.xpose.msra.mxu0 %v973
        %1325 = vmatprep.subr.bf16.mxu0 %v972
        %1326 = vmatpush1.bf16.xpose.msra.mxu0 %v971
        %1327 = vmatprep.subr.bf16.mxu0 %v970
        %1328 = vmatpush1.bf16.xpose.msra.mxu0 %v969
        %1329 = vmatprep.subr.bf16.mxu0 %v968
        %1330 = vmatpush1.bf16.xpose.msra.mxu0 %v967
        %1331 = vmatprep.subr.bf16.mxu0 0
        %1332 = vmatpush2.bf16.xpose.msra.mxu0 0
        %1333 = vmatprep.subr.bf16.mxu0 0
        %1334 = vmatpush2.bf16.xpose.msra.mxu0 0
        %1335 = vmatprep.subr.bf16.mxu0 0
        %1336 = vmatpush2.bf16.xpose.msra.mxu0 0
        %1337 = vmatprep.subr.bf16.mxu0 0
        %1338 = vmatpush2.bf16.xpose.msra.mxu0 0
        %1339 = vmatprep.subr.bf16.mxu0 0
        %1340 = vmatpush2.bf16.xpose.msra.mxu0 0
        %1341 = vmatprep.subr.bf16.mxu0 0
        %1342 = vmatpush2.bf16.xpose.msra.mxu0 0
        %1343 = vmatprep.subr.bf16.mxu0 0
        %1344 = vmatpush2.bf16.xpose.msra.mxu0 0
        %1345 = vmatprep.subr.bf16.mxu0 0
        %1346 = vmatpush2.bf16.xpose.msra.mxu0 0
        %1347 = vmatprep.mubr.bf16.mxu0 %v1312
        %1348 = vmatmul.mubr.bf16.gmra.mxu0 %v1305
        %v1349 = vpop.f32.mrf.mxu0
        %v1350 = vadd.f32 0.0, %v1349
        %v1351 = vpop.f32.mrf.mxu0
        %v1352 = vpop.f32.mrf.mxu0
        %v1353 = vpop.f32.mrf.mxu0
        %1354 = vdwg.mxu0
        %vm1355 = vcmask 1041408
        %v1356 = vsel %vm1355, %v1350, 0.0
        %v1357 = vrot.slane %v1356, 4
        %v1358 = vadd.f32 %v1356, %v1357
        %v1359 = vrot.slane %v1358, 2
        %v1360 = vadd.f32 %v1358, %v1359
        %v1361 = vrot.slane %v1360, 1
        %v1362 = vadd.f32 %v1360, %v1361
        %v1363 = vcvt.f32.s32.to.zero.pseudo %v1362
        %1364 = vst [vmem:[%s282] sm:$0x1] %v1363
        %s1365 = smul.u32 %s25, 128
        %v1366 = vlaneseq
        %v1367 = vshrl.u32 %v1366, 7
        %v1368 = vadd.s32 %v1367, 8
        %v1369 = vadd.s32 %v1367, 16
        %v1370 = vadd.s32 %v1367, 24
        %v1371 = vadd.s32 %v1367, 32
        %v1372 = vadd.s32 %v1367, 40
        %v1373 = vadd.s32 %v1367, 48
        %v1374 = vadd.s32 %v1367, 56
        %v1375 = vadd.s32 %v1367, 64
        %v1376 = vadd.s32 %v1367, 72
        %v1377 = vadd.s32 %v1367, 80
        %v1378 = vadd.s32 %v1367, 88
        %v1379 = vadd.s32 %v1367, 96
        %v1380 = vadd.s32 %v1367, 104
        %v1381 = vadd.s32 %v1367, 112
        %v1382 = vadd.s32 %v1367, 120
        %v1383 = vstv %s1365
        %v1384 = vadd.s32 %v1383, %v1367
        %v1385 = vadd.s32 %v1383, %v1368
        %v1386 = vadd.s32 %v1383, %v1369
        %v1387 = vadd.s32 %v1383, %v1370
        %v1388 = vadd.s32 %v1383, %v1371
        %v1389 = vadd.s32 %v1383, %v1372
        %v1390 = vadd.s32 %v1383, %v1373
        %v1391 = vadd.s32 %v1383, %v1374
        %v1392 = vadd.s32 %v1383, %v1375
        %v1393 = vadd.s32 %v1383, %v1376
        %v1394 = vadd.s32 %v1383, %v1377
        %v1395 = vadd.s32 %v1383, %v1378
        %v1396 = vadd.s32 %v1383, %v1379
        %v1397 = vadd.s32 %v1383, %v1380
        %v1398 = vadd.s32 %v1383, %v1381
        %v1399 = vadd.s32 %v1383, %v1382
        %v1400 = vsub.f32 %v1146, %v302
        %v1401 = vsub.f32 %v1149, %v303
        %v1402 = vsub.f32 %v1154, %v304
        %v1403 = vsub.f32 %v1157, %v305
        %v1404 = vsub.f32 %v1162, %v306
        %v1405 = vsub.f32 %v1165, %v307
        %v1406 = vsub.f32 %v1170, %v308
        %v1407 = vsub.f32 %v1173, %v309
        %v1408 = vsub.f32 %v1178, %v310
        %v1409 = vsub.f32 %v1181, %v311
        %v1410 = vsub.f32 %v1186, %v312
        %v1411 = vsub.f32 %v1189, %v313
        %v1412 = vsub.f32 %v1194, %v314
        %v1413 = vsub.f32 %v1197, %v315
        %v1414 = vsub.f32 %v1202, %v316
        %v1415 = vsub.f32 %v1205, %v317
        %vm1416 = vcmp.lt.s32.totalorder %v1384, 180
        %vm1417 = vcmp.lt.s32.totalorder %v1385, 180
        %vm1418 = vcmp.lt.s32.totalorder %v1386, 180
        %vm1419 = vcmp.lt.s32.totalorder %v1387, 180
        %vm1420 = vcmp.lt.s32.totalorder %v1388, 180
        %vm1421 = vcmp.lt.s32.totalorder %v1389, 180
        %vm1422 = vcmp.lt.s32.totalorder %v1390, 180
        %vm1423 = vcmp.lt.s32.totalorder %v1391, 180
        %vm1424 = vcmp.lt.s32.totalorder %v1392, 180
        %vm1425 = vcmp.lt.s32.totalorder %v1393, 180
        %vm1426 = vcmp.lt.s32.totalorder %v1394, 180
        %vm1427 = vcmp.lt.s32.totalorder %v1395, 180
        %vm1428 = vcmp.lt.s32.totalorder %v1396, 180
        %vm1429 = vcmp.lt.s32.totalorder %v1397, 180
        %vm1430 = vcmp.lt.s32.totalorder %v1398, 180
        %vm1431 = vcmp.lt.s32.totalorder %v1399, 180
        %v1432 = vmul.f32 %v1400, %v1400
        %v1433 = vmul.f32 %v1401, %v1401
        %v1434 = vmul.f32 %v1402, %v1402
        %v1435 = vmul.f32 %v1403, %v1403
        %v1436 = vmul.f32 %v1404, %v1404
        %v1437 = vmul.f32 %v1405, %v1405
        %v1438 = vmul.f32 %v1406, %v1406
        %v1439 = vmul.f32 %v1407, %v1407
        %v1440 = vmul.f32 %v1408, %v1408
        %v1441 = vmul.f32 %v1409, %v1409
        %v1442 = vmul.f32 %v1410, %v1410
        %v1443 = vmul.f32 %v1411, %v1411
        %v1444 = vmul.f32 %v1412, %v1412
        %v1445 = vmul.f32 %v1413, %v1413
        %v1446 = vmul.f32 %v1414, %v1414
        %v1447 = vmul.f32 %v1415, %v1415
        %v1448 = vsel %vm1416, 1, 0
        %v1449 = vsel %vm1417, 1, 0
        %v1450 = vsel %vm1418, 1, 0
        %v1451 = vsel %vm1419, 1, 0
        %v1452 = vsel %vm1420, 1, 0
        %v1453 = vsel %vm1421, 1, 0
        %v1454 = vsel %vm1422, 1, 0
        %v1455 = vsel %vm1423, 1, 0
        %v1456 = vsel %vm1424, 1, 0
        %v1457 = vsel %vm1425, 1, 0
        %v1458 = vsel %vm1426, 1, 0
        %v1459 = vsel %vm1427, 1, 0
        %v1460 = vsel %vm1428, 1, 0
        %v1461 = vsel %vm1429, 1, 0
        %v1462 = vsel %vm1430, 1, 0
        %v1463 = vsel %vm1431, 1, 0
        %vm1464 = vcmp.eq.s32.totalorder %v1448, 1
        %vm1465 = vcmp.eq.s32.totalorder %v1449, 1
        %vm1466 = vcmp.eq.s32.totalorder %v1450, 1
        %vm1467 = vcmp.eq.s32.totalorder %v1451, 1
        %vm1468 = vcmp.eq.s32.totalorder %v1452, 1
        %vm1469 = vcmp.eq.s32.totalorder %v1453, 1
        %vm1470 = vcmp.eq.s32.totalorder %v1454, 1
        %vm1471 = vcmp.eq.s32.totalorder %v1455, 1
        %vm1472 = vcmp.eq.s32.totalorder %v1456, 1
        %vm1473 = vcmp.eq.s32.totalorder %v1457, 1
        %vm1474 = vcmp.eq.s32.totalorder %v1458, 1
        %vm1475 = vcmp.eq.s32.totalorder %v1459, 1
        %vm1476 = vcmp.eq.s32.totalorder %v1460, 1
        %vm1477 = vcmp.eq.s32.totalorder %v1461, 1
        %vm1478 = vcmp.eq.s32.totalorder %v1462, 1
        %vm1479 = vcmp.eq.s32.totalorder %v1463, 1
        %v1480 = vsel %vm1464, %v1432, 0.0
        %v1481 = vsel %vm1465, %v1433, 0.0
        %v1482 = vsel %vm1466, %v1434, 0.0
        %v1483 = vsel %vm1467, %v1435, 0.0
        %v1484 = vsel %vm1468, %v1436, 0.0
        %v1485 = vsel %vm1469, %v1437, 0.0
        %v1486 = vsel %vm1470, %v1438, 0.0
        %v1487 = vsel %vm1471, %v1439, 0.0
        %v1488 = vsel %vm1472, %v1440, 0.0
        %v1489 = vsel %vm1473, %v1441, 0.0
        %v1490 = vsel %vm1474, %v1442, 0.0
        %v1491 = vsel %vm1475, %v1443, 0.0
        %v1492 = vsel %vm1476, %v1444, 0.0
        %v1493 = vsel %vm1477, %v1445, 0.0
        %v1494 = vsel %vm1478, %v1446, 0.0
        %v1495 = vsel %vm1479, %v1447, 0.0
        %v1496 = vsel %vm362, %v1480, 0.0
        %v1497 = vsel %vm362, %v1481, 0.0
        %v1498 = vadd.f32 %v1496, %v1497
        %v1499 = vsel %vm362, %v1482, 0.0
        %v1500 = vadd.f32 %v1498, %v1499
        %v1501 = vsel %vm362, %v1483, 0.0
        %v1502 = vadd.f32 %v1500, %v1501
        %v1503 = vsel %vm362, %v1484, 0.0
        %v1504 = vadd.f32 %v1502, %v1503
        %v1505 = vsel %vm362, %v1485, 0.0
        %v1506 = vadd.f32 %v1504, %v1505
        %v1507 = vsel %vm362, %v1486, 0.0
        %v1508 = vadd.f32 %v1506, %v1507
        %v1509 = vsel %vm362, %v1487, 0.0
        %v1510 = vadd.f32 %v1508, %v1509
        %v1511 = vsel %vm362, %v1488, 0.0
        %v1512 = vadd.f32 %v1510, %v1511
        %v1513 = vsel %vm362, %v1489, 0.0
        %v1514 = vadd.f32 %v1512, %v1513
        %v1515 = vsel %vm362, %v1490, 0.0
        %v1516 = vadd.f32 %v1514, %v1515
        %v1517 = vsel %vm362, %v1491, 0.0
        %v1518 = vadd.f32 %v1516, %v1517
        %v1519 = vsel %vm362, %v1492, 0.0
        %v1520 = vadd.f32 %v1518, %v1519
        %v1521 = vsel %vm362, %v1493, 0.0
        %v1522 = vadd.f32 %v1520, %v1521
        %v1523 = vsel %vm362, %v1494, 0.0
        %v1524 = vadd.f32 %v1522, %v1523
        %v1525 = vsel %vm362, %v1495, 0.0
        %v1526 = vadd.f32 %v1524, %v1525
        %v1527 = vrot.slane %v1526, 4
        %v1528 = vadd.f32 %v1526, %v1527
        %v1529 = vrot.slane %v1528, 2
        %v1530 = vadd.f32 %v1528, %v1529
        %v1531 = vrot.slane %v1530, 1
        %v1532 = vadd.f32 %v1530, %v1531
        %vm1533 = vcmask 253952
        %1534 = vst.msk [vmem:[%s288] sm:$0x1] %vm1533, %v1532
        %s1535 = smul.u32 16, %s25
        %p1536 = scmp.lt.s32.totalorder %s1535, 31
        %s1537 = scalar_select %p1536, %s1535, 31
        %s1538 = smul.addr %s1537, 4
        %s1539 = scalar_lea.vmem %s5, %s1538
        %s1540 = sand.u32 %s169, 1
        %s1541 = scalar_lea.sflag [#allocation3], %s1540
        %s1542 = sand.u32 %s169, 1
        %s1543 = scalar_lea.vmem [#allocation2], %s1542
        %s1544 = sand.u32 %s195, 1
        %s1545 = scalar_lea.sflag [#allocation5], %s1544
        %s1546 = sand.u32 %s195, 1
        %s1547 = scalar_lea.vmem [#allocation4], %s1546
        // Predicated region
        $region41: #{tpu_custom_call.1} parent=39 // pred_check
          %p1548 = pneg %p153
        $region42: #{tpu_custom_call.1} parent=39 // pred_check_branch
          %1550 = sbr.rel (%p1548) target = $region44
        $region43: #{tpu_custom_call.1} parent=39 // pred_region
          %s1551 = smul.u32 16, %s25
        $region44: #{tpu_custom_call.1} parent=39 // pred_fallthru
          _
        // Predicated region
        $region45: #{tpu_custom_call.1} parent=39 // pred_check
          %p1552 = pneg %p179
        $region46: #{tpu_custom_call.1} parent=39 // pred_check_branch
          %1554 = sbr.rel (%p1552) target = $region48
        $region47: #{tpu_custom_call.1} parent=39 // pred_region
          %s1556 = ssub.s32 16, 16
          %1557 = vsyncadd %s1541, %s1556
          %s1558 = smul.addr %s25, 16
          %s1559 = scalar_lea.hbm %s6, %s1558
          %s1561 = sshll.u32 %s1543, 4
          %s1562 = int_to_ptr.vmem [resolvable:$true] %s1561
          %1564 = dma.vmem_to_hbm [thread:$0]  %s1562, 16, %s1559, %s1541
        $region48: #{tpu_custom_call.1} parent=39 // pred_fallthru
          _
        // Predicated region
        $region49: #{tpu_custom_call.1} parent=39 // pred_check
          %p1565 = pneg %p205
        $region50: #{tpu_custom_call.1} parent=39 // pred_check_branch
          %1567 = sbr.rel (%p1565) target = $region52
        $region51: #{tpu_custom_call.1} parent=39 // pred_region
          %s1569 = ssub.s32 16, 16
          %1570 = vsyncadd %s1545, %s1569
          %s1571 = smul.addr %s25, 16
          %s1572 = scalar_lea.hbm %s7, %s1571
          %s1574 = sshll.u32 %s1547, 4
          %s1575 = int_to_ptr.vmem [resolvable:$true] %s1574
          %1577 = dma.vmem_to_hbm [thread:$0]  %s1575, 16, %s1572, %s1545
        $region52: #{tpu_custom_call.1} parent=39 // pred_fallthru
          _
      $region40: #{tpu_custom_call.1} parent=5 // pred_fallthru
        _
      %p1578 = scmp.le.s32.totalorder 2, %s20
      // Predicated region
      $region53: #{tpu_custom_call.1} parent=5 // pred_check
        %p1579 = pneg %p1578
      $region54: #{tpu_custom_call.1} parent=5 // pred_check_branch
        %1581 = sbr.rel (%p1579) target = $region56
      $region55: #{tpu_custom_call.1} parent=5 // pred_region
        %s1582 = ssub.s32 %s20, 2
        // Predicated region
        $region57: #{tpu_custom_call.1} parent=55 // pred_check
          %p1583 = pneg %p159
        $region58: #{tpu_custom_call.1} parent=55 // pred_check_branch
          %1585 = sbr.rel (%p1583) target = $region60
        $region59: #{tpu_custom_call.1} parent=55 // pred_region
          %s1586 = smul.u32 16, %s26
          %p1587 = scmp.lt.s32.totalorder %s1586, 31
          %s1588 = scalar_select %p1587, %s1586, 31
          %s1589 = smul.addr %s1588, 4
          %s1590 = scalar_lea.vmem %s5, %s1589
        $region60: #{tpu_custom_call.1} parent=55 // pred_fallthru
          _
        // Predicated region
        $region61: #{tpu_custom_call.1} parent=55 // pred_check
          %p1591 = pneg %p185
        $region62: #{tpu_custom_call.1} parent=55 // pred_check_branch
          %1593 = sbr.rel (%p1591) target = $region64
        $region63: #{tpu_custom_call.1} parent=55 // pred_region
          %s1594 = sand.u32 %s170, 1
          %s1595 = scalar_lea.sflag [#allocation3], %s1594
          %s1596 = sand.u32 %s170, 1
          %s1597 = scalar_lea.vmem [#allocation2], %s1596
          %1598 = dma.done %s1595, 16
        $region64: #{tpu_custom_call.1} parent=55 // pred_fallthru
          _
        // Predicated region
        $region65: #{tpu_custom_call.1} parent=55 // pred_check
          %p1599 = pneg %p211
        $region66: #{tpu_custom_call.1} parent=55 // pred_check_branch
          %1601 = sbr.rel (%p1599) target = $region68
        $region67: #{tpu_custom_call.1} parent=55 // pred_region
          %s1602 = sand.u32 %s196, 1
          %s1603 = scalar_lea.sflag [#allocation5], %s1602
          %s1604 = sand.u32 %s196, 1
          %s1605 = scalar_lea.vmem [#allocation4], %s1604
          %1606 = dma.done %s1603, 16
        $region68: #{tpu_custom_call.1} parent=55 // pred_fallthru
          _
      $region56: #{tpu_custom_call.1} parent=5 // pred_fallthru
        _
    $region6: #{tpu_custom_call.1} parent=1 // loop_footer
      %s24 = sadd.s32 1, %s20
    $region7: #{tpu_custom_call.1} parent=1 // loop_footer_branch
      %19 = sbr.rel target = $region3
    $region8: #{tpu_custom_call.1} parent=1 // loop_exit
      _
    %1607 = vsyncpa [#allocation3], 1
    %s1608 = scalar_lea.sflag [#allocation3], 1
    %1609 = vsyncpa %s1608, 1
    %1610 = vsyncpa [#allocation5], 1
    %s1611 = scalar_lea.sflag [#allocation5], 1
    %1612 = vsyncpa %s1611, 1

</llo_original>
